<compile_context>
chip_gen: v5e
topology: v5e:2x2
jax: 0.10.0
libtpu: 0.0.40
codegen_flags: <defaults>
</compile_context>

<pallas_src>
import functools

import jax
import jax.numpy as jnp
from jax.experimental import pallas as pl
from jax.experimental.pallas import tpu as pltpu


def _round_up(x, m):
    return (x + m - 1) // m * m


@functools.lru_cache(maxsize=None)
def _vmem_limit_bytes():
    # Generation-aware scoped-VMEM limit: ~half of physical VMEM
    # (v5e/v6e: 128 MiB -> 64 MiB, v7x: 64 MiB -> 32 MiB).  Falls back to the
    # v7x-safe 32 MiB if the hardware query is unavailable (e.g. interpret mode).
    try:
        cap = int(pltpu.get_tpu_info().vmem_capacity_bytes)
    except Exception:
        cap = 64 * 1024 * 1024
    return max(32 * 1024 * 1024, min(cap // 2, 96 * 1024 * 1024))


def _compiler_params():
    return pltpu.CompilerParams(
        dimension_semantics=("parallel",),          # split M tiles across TCs (v7x)
        vmem_limit_bytes=_vmem_limit_bytes())


def _pick_tm(mpad, kp, cp, out_bytes):
    """Pick the M tile: 16-aligned (bf16 sublanes), divides mpad (no pad copy),
    prefers >= 2 grid steps (megacore split), fits the double-buffered working
    set inside ~60% of the scoped VMEM limit, capped at 1024 rows."""
    budget = int(_vmem_limit_bytes() * 0.6)
    cands = sorted((d for d in range(16, min(1024, mpad) + 1, 16) if mpad % d == 0),
                   reverse=True)
    if not cands:
        return mpad
    multi = [d for d in cands if mpad // d >= 2]
    order = multi + [d for d in cands if mpad // d < 2]
    for tm in order:
        foot = (2 * tm * kp * 2          # patches: double-buffered bf16 blocks
                + 2 * kp * cp * 2        # weights (conservatively double-buffered)
                + 2 * tm * cp * out_bytes  # output blocks
                + 2 * 2 * cp * 4)        # stats block
        if foot <= budget:
            return tm
    return cands[-1]


# ------------------------- Pallas kernels -------------------------

def _conv_mm_kernel(*refs, add_bias, with_stats, apply_leaky):
    """(TM, Kp) @ (Kp, CP): bf16 operands, f32 MXU accumulation; optional bias,
    per-tile BN partial stats (sum / sumsq) and LeakyReLU(0.2) epilogue."""
    it = iter(refs)
    p_ref = next(it)
    w_ref = next(it)
    b_ref = next(it) if add_bias else None
    o_ref = next(it)
    stats_ref = next(it) if with_stats else None

    acc = jnp.dot(p_ref[...], w_ref[...], preferred_element_type=jnp.float32)
    if add_bias:
        acc = acc + b_ref[...]
    if with_stats:
        # Per-tile per-channel partial sums of the f32 pre-activation.  Lanes
        # are dense (CP = k*128); zero-padded M rows contribute exact zeros
        # because norm convs are bias-free.
        s1 = jnp.sum(acc, axis=0, keepdims=True)            # (1, CP)
        s2 = jnp.sum(acc * acc, axis=0, keepdims=True)      # (1, CP)
        stats_ref[...] = jnp.concatenate([s1, s2], axis=0)[None]
    if apply_leaky:
        acc = jnp.where(acc >= 0.0, acc, 0.2 * acc)
    o_ref[...] = acc.astype(o_ref.dtype)


def _affine_leaky_kernel(x_ref, scale_ref, shift_ref, o_ref):
    """BN finalize: y = LeakyReLU(x * scale + shift). Pure streaming VPU pass
    (scale/shift precomputed from the global batch stats outside the kernel)."""
    y = x_ref[...].astype(jnp.float32) * scale_ref[...] + shift_ref[...]
    o_ref[...] = jnp.where(y >= 0.0, y, 0.2 * y).astype(o_ref.dtype)


# ------------------------- pallas_call wrappers -------------------------

def _conv_matmul(patches, w_pad, bias_pad, *, tm, with_stats, apply_leaky, out_dtype):
    mpad, kp = patches.shape
    cp = w_pad.shape[1]
    t = mpad // tm

    in_specs = [pl.BlockSpec((tm, kp), lambda i: (i, 0)),
                pl.BlockSpec((kp, cp), lambda i: (0, 0))]
    args = [patches, w_pad]
    if bias_pad is not None:
        in_specs.append(pl.BlockSpec((1, cp), lambda i: (0, 0)))
        args.append(bias_pad)

    out_shapes = [jax.ShapeDtypeStruct((mpad, cp), out_dtype)]
    out_specs = [pl.BlockSpec((tm, cp), lambda i: (i, 0))]
    if with_stats:
        out_shapes.append(jax.ShapeDtypeStruct((t, 2, cp), jnp.float32))
        out_specs.append(pl.BlockSpec((1, 2, cp), lambda i: (i, 0, 0)))

    kernel = functools.partial(_conv_mm_kernel,
                               add_bias=bias_pad is not None,
                               with_stats=with_stats,
                               apply_leaky=apply_leaky)
    return pl.pallas_call(
        kernel,
        out_shape=tuple(out_shapes) if with_stats else out_shapes[0],
        grid=(t,),
        in_specs=in_specs,
        out_specs=tuple(out_specs) if with_stats else out_specs[0],
        compiler_params=_compiler_params(),
    )(*args)


def _affine_leaky(x, scale, shift, *, tm, out_dtype):
    mpad, cp = x.shape
    return pl.pallas_call(
        _affine_leaky_kernel,
        out_shape=jax.ShapeDtypeStruct((mpad, cp), out_dtype),
        grid=(mpad // tm,),
        in_specs=[pl.BlockSpec((tm, cp), lambda i: (i, 0)),
                  pl.BlockSpec((1, cp), lambda i: (0, 0)),
                  pl.BlockSpec((1, cp), lambda i: (0, 0))],
        out_specs=pl.BlockSpec((tm, cp), lambda i: (i, 0)),
        compiler_params=_compiler_params(),
    )(x, scale, shift)


# ------------------------- JAX glue -------------------------

def _im2col(x_nhwc, kh, kw, stride, pad):
    # Rectangular zero padding + strided slicing only (no compute).
    x = jnp.pad(x_nhwc, ((0, 0), (pad, pad), (pad, pad), (0, 0)))
    n, h, w, c = x.shape
    ho = (h - kh) // stride + 1
    wo = (w - kw) // stride + 1
    if ho <= 0 or wo <= 0:
        raise ValueError(
            f"conv output spatial size is non-positive (ho={ho}, wo={wo}); "
            "input image is too small for this layer stack")
    cols = []
    for i in range(kh):
        for j in range(kw):
            cols.append(x[:, i:i + (ho - 1) * stride + 1:stride,
                             j:j + (wo - 1) * stride + 1:stride, :])
    p = jnp.stack(cols, axis=3)                     # (N, Ho, Wo, kh*kw, C)
    return p.reshape(n * ho * wo, kh * kw * c), n, ho, wo


def _conv_block(x_nhwc, layer):
    w = layer["w"]                                  # torch layout (Cout, Cin, KH, KW)
    stride = layer["stride"]
    norm = layer["norm"]
    is_final = layer.get("final", False)
    cout, cin, kh, kw_ = w.shape
    k = kh * kw_ * cin
    kp = _round_up(k, 128)                          # lane-dense contraction dim
    cp = _round_up(cout, 128)                       # lane-dense output channels

    # TODO(synk): build patches tile-by-tile inside the kernel (manual strided
    # DMA of kh input rows + tap accumulation) instead of materializing the
    # bf16 im2col slab in HBM — ~16x patch-traffic reduction for large images.
    patches, n, ho, wo = _im2col(x_nhwc.astype(jnp.bfloat16), kh, kw_, stride, 1)
    m = n * ho * wo
    mpad = _round_up(m, 16)

    out_dtype = jnp.float32 if is_final else jnp.bfloat16
    tm = _pick_tm(mpad, kp, cp, 4 if out_dtype == jnp.float32 else 2)

    if mpad != m or kp != k:                        # big layers take no pad copy
        patches = jnp.pad(patches, ((0, mpad - m), (0, kp - k)))

    w2d = jnp.transpose(w, (2, 3, 1, 0)).reshape(k, cout)
    w_pad = jnp.pad(w2d, ((0, kp - k), (0, cp - cout))).astype(jnp.bfloat16)

    if norm:
        # BatchNorm2d => use_bias=False, so zero-padded patch rows produce
        # exactly-zero pre-activations and the partial stats exclude padding.
        assert "b" not in layer, "norm convs must be bias-free (padded-row stats invariant)"
        conv, stats = _conv_matmul(patches, w_pad, None, tm=tm, with_stats=True,
                                   apply_leaky=False, out_dtype=jnp.bfloat16)
        # Tiny finalize in plain JAX: one (1,CP) scale/shift per layer, so the
        # streaming Pallas pass below does no reductions and pins no stats.
        s = jnp.sum(stats, axis=0)                           # (2, CP)
        mean = s[0] / float(m)
        # E[x^2]-E[x]^2 in f32: fine at 0.02-scale init; a shifted two-pass
        # formulation would be safer for trained weights with large means.
        var = jnp.maximum(s[1] / float(m) - mean * mean, 0.0)
        inv_std = jax.lax.rsqrt(var + 1e-5)
        gamma = jnp.pad(layer["gamma"], (0, cp - cout))
        beta = jnp.pad(layer["beta"], (0, cp - cout))
        scale = (gamma * inv_std).reshape(1, cp)
        shift = (beta - mean * gamma * inv_std).reshape(1, cp)
        out = _affine_leaky(conv, scale, shift, tm=tm, out_dtype=jnp.bfloat16)
    else:
        bias_pad = jnp.pad(layer["b"].astype(jnp.float32), (0, cp - cout)).reshape(1, cp)
        out = _conv_matmul(patches, w_pad, bias_pad, tm=tm, with_stats=False,
                           apply_leaky=not is_final, out_dtype=out_dtype)

    return out[:m, :cout].reshape(n, ho, wo, cout)


# ------------------------- model -------------------------

def init_params(key, input_nc, ndf=8, n_layers=3):
    """Deterministic parameters matching NLayerDiscriminator(input_nc, ndf,
    n_layers, norm_layer=nn.BatchNorm2d)  (=> use_bias=False on norm convs)."""
    kw = 4
    params = []
    keys = jax.random.split(key, n_layers + 2)
    ki = 0

    def conv_w(cout, cin):
        nonlocal ki
        w = 0.02 * jax.random.normal(keys[ki], (cout, cin, kw, kw), jnp.float32)
        ki += 1
        return w

    # layer 0: conv(input_nc -> ndf, s=2) + bias, LeakyReLU
    params.append(dict(w=conv_w(ndf, input_nc),
                       b=jnp.zeros((ndf,), jnp.float32),
                       stride=2, norm=False))
    nf_mult = 1
    for n in range(1, n_layers):
        nf_prev, nf_mult = nf_mult, min(2 ** n, 8)
        c_out = ndf * nf_mult
        params.append(dict(w=conv_w(c_out, ndf * nf_prev),
                           gamma=jnp.ones((c_out,), jnp.float32),
                           beta=jnp.zeros((c_out,), jnp.float32),
                           stride=2, norm=True))
    nf_prev, nf_mult = nf_mult, min(2 ** n_layers, 8)
    c_out = ndf * nf_mult
    params.append(dict(w=conv_w(c_out, ndf * nf_prev),
                       gamma=jnp.ones((c_out,), jnp.float32),
                       beta=jnp.zeros((c_out,), jnp.float32),
                       stride=1, norm=True))
    # final 1-channel prediction map, with bias, no norm, no activation
    params.append(dict(w=conv_w(1, c_out),
                       b=jnp.zeros((1,), jnp.float32),
                       stride=1, norm=False, final=True))
    return params


def nlayer_discriminator(params, x_nchw):
    # NCHW (PyTorch) -> NHWC (kernel layout)
    x = jnp.transpose(x_nchw, (0, 2, 3, 1))
    for layer in params:
        x = _conv_block(x, layer)
    # back to NCHW
    return jnp.transpose(x, (0, 3, 1, 2)).astype(jnp.float32)


if __name__ == "__main__":
    key = jax.random.PRNGKey(0)
    k_in, k_par = jax.random.split(key)

    input_nc, ndf, n_layers = 4, 8, 3
    # n_layers=3 stack (k=4, p=1): 32 -> 16 -> 8 -> 4 -> 3 (s=1) -> 2 (final)
    x = jax.random.normal(k_in, (2, input_nc, 32, 32), jnp.float32)

    params = init_params(k_par, input_nc, ndf=ndf, n_layers=n_layers)
    fwd = jax.jit(lambda inp: nlayer_discriminator(params, inp))
    out = jax.block_until_ready(fwd(x))

    assert out.shape == (2, 1, 2, 2), out.shape
    assert bool(jnp.all(jnp.isfinite(out)))
    print("KERNEL_OK")
</pallas_src>

<mosaic_0001>
module attributes {stable_mosaic.version = 11 : i64} {
  func.func @_conv_mm_kernel(%arg0: i32, %arg1: memref<256x128xbf16, #tpu.memory_space<vmem>>, %arg2: memref<128x128xbf16, #tpu.memory_space<vmem>>, %arg3: memref<1x128xf32, #tpu.memory_space<vmem>>, %arg4: memref<256x128xbf16, #tpu.memory_space<vmem>>) attributes {dimension_semantics = [#tpu.dimension_semantics<parallel>], iteration_bounds = array<i64: 2>, scalar_prefetch = 0 : i64, scratch_operands = 0 : i64, tpu.core_type = #tpu.core_type<tc>, window_params = [{transform_indices = @transform_0, window_bounds = array<i64: 256, 128>}, {pipeline_mode = #tpu.pipeline_mode<synchronous>, transform_indices = @transform_1, window_bounds = array<i64: 128, 128>}, {pipeline_mode = #tpu.pipeline_mode<synchronous>, transform_indices = @transform_2, window_bounds = array<i64: 1, 128>}, {transform_indices = @transform_3, window_bounds = array<i64: 256, 128>}]} {
    %c0 = arith.constant 0 : index
    %c0_0 = arith.constant 0 : index
    %0 = vector.load %arg1[%c0, %c0_0] : memref<256x128xbf16, #tpu.memory_space<vmem>>, vector<256x128xbf16>
    %c0_1 = arith.constant 0 : index
    %c0_2 = arith.constant 0 : index
    %1 = vector.load %arg2[%c0_1, %c0_2] : memref<128x128xbf16, #tpu.memory_space<vmem>>, vector<128x128xbf16>
    %cst = arith.constant dense<0.000000e+00> : vector<256x128xf32>
    %2 = tpu.matmul %0, %1, %cst {dimension_numbers = #tpu.dot_dimension_numbers<[1], [0], [0], [1], [0, 0, 1, 1], [], []>} : vector<256x128xbf16>, vector<128x128xbf16>, vector<256x128xf32> -> vector<256x128xf32>
    %c0_3 = arith.constant 0 : index
    %c0_4 = arith.constant 0 : index
    %3 = vector.load %arg3[%c0_3, %c0_4] : memref<1x128xf32, #tpu.memory_space<vmem>>, vector<1x128xf32>
    %4 = vector.broadcast %3 : vector<1x128xf32> to vector<256x128xf32>
    %5 = arith.addf %2, %4 : vector<256x128xf32>
    %cst_5 = arith.constant 0.000000e+00 : f32
    %6 = vector.broadcast %cst_5 : f32 to vector<256x128xf32>
    %7 = arith.cmpf oge, %5, %6 : vector<256x128xf32>
    %cst_6 = arith.constant 2.000000e-01 : f32
    %8 = vector.broadcast %cst_6 : f32 to vector<256x128xf32>
    %9 = arith.mulf %8, %5 : vector<256x128xf32>
    %10 = arith.select %7, %5, %9 : vector<256x128xi1>, vector<256x128xf32>
    %11 = arith.truncf %10 : vector<256x128xf32> to vector<256x128xbf16>
    %c0_7 = arith.constant 0 : index
    %c0_8 = arith.constant 0 : index
    %12 = vector.load %arg4[%c0_7, %c0_8] : memref<256x128xbf16, #tpu.memory_space<vmem>>, vector<256x128xbf16>
    tpu.vector_store %arg4[%c0_7, %c0_8], %11 {strides = array<i32>} : memref<256x128xbf16, #tpu.memory_space<vmem>>, vector<256x128xbf16>,
    return
  }
  func.func @transform_0(%arg0: i32) -> (i32, i32) {
    %c0_i32 = arith.constant 0 : i32
    %c0_i32_0 = arith.constant 0 : i32
    return %arg0, %c0_i32 : i32, i32
  }
  func.func @transform_1(%arg0: i32) -> (i32, i32) {
    %c0_i32 = arith.constant 0 : i32
    %c0_i32_0 = arith.constant 0 : i32
    %c0_i32_1 = arith.constant 0 : i32
    return %c0_i32, %c0_i32_0 : i32, i32
  }
  func.func @transform_2(%arg0: i32) -> (i32, i32) {
    %c0_i32 = arith.constant 0 : i32
    %c0_i32_0 = arith.constant 0 : i32
    %c0_i32_1 = arith.constant 0 : i32
    return %c0_i32, %c0_i32_0 : i32, i32
  }
  func.func @transform_3(%arg0: i32) -> (i32, i32) {
    %c0_i32 = arith.constant 0 : i32
    %c0_i32_0 = arith.constant 0 : i32
    return %arg0, %c0_i32 : i32, i32
  }
}

module attributes {stable_mosaic.version = 11 : i64} {
  func.func @_conv_mm_kernel(%arg0: i32, %arg1: memref<64x128xbf16, #tpu.memory_space<vmem>>, %arg2: memref<128x128xbf16, #tpu.memory_space<vmem>>, %arg3: memref<64x128xbf16, #tpu.memory_space<vmem>>, %arg4: memref<1x2x128xf32, #tpu.memory_space<vmem>>) attributes {dimension_semantics = [#tpu.dimension_semantics<parallel>], iteration_bounds = array<i64: 2>, scalar_prefetch = 0 : i64, scratch_operands = 0 : i64, tpu.core_type = #tpu.core_type<tc>, window_params = [{transform_indices = @transform_0, window_bounds = array<i64: 64, 128>}, {pipeline_mode = #tpu.pipeline_mode<synchronous>, transform_indices = @transform_1, window_bounds = array<i64: 128, 128>}, {transform_indices = @transform_2, window_bounds = array<i64: 64, 128>}, {transform_indices = @transform_3, window_bounds = array<i64: 1, 2, 128>}]} {
    %c0 = arith.constant 0 : index
    %c0_0 = arith.constant 0 : index
    %0 = vector.load %arg1[%c0, %c0_0] : memref<64x128xbf16, #tpu.memory_space<vmem>>, vector<64x128xbf16>
    %c0_1 = arith.constant 0 : index
    %c0_2 = arith.constant 0 : index
    %1 = vector.load %arg2[%c0_1, %c0_2] : memref<128x128xbf16, #tpu.memory_space<vmem>>, vector<128x128xbf16>
    %cst = arith.constant dense<0.000000e+00> : vector<64x128xf32>
    %2 = tpu.matmul %0, %1, %cst {dimension_numbers = #tpu.dot_dimension_numbers<[1], [0], [0], [1], [0, 0, 1, 1], [], []>} : vector<64x128xbf16>, vector<128x128xbf16>, vector<64x128xf32> -> vector<64x128xf32>
    %cst_3 = arith.constant dense<0.000000e+00> : vector<128xf32>
    %3 = vector.multi_reduction <add>, %2, %cst_3 [0] : vector<64x128xf32> to vector<128xf32>
    %4 = vector.shape_cast %3 : vector<128xf32> to vector<1x128xf32>
    %5 = arith.mulf %2, %2 : vector<64x128xf32>
    %cst_4 = arith.constant dense<0.000000e+00> : vector<128xf32>
    %6 = vector.multi_reduction <add>, %5, %cst_4 [0] : vector<64x128xf32> to vector<128xf32>
    %7 = vector.shape_cast %6 : vector<128xf32> to vector<1x128xf32>
    %8 = tpu.concatenate %4, %7 in 0 : vector<1x128xf32>, vector<1x128xf32> -> vector<2x128xf32>
    %9 = vector.shape_cast %8 : vector<2x128xf32> to vector<1x2x128xf32>
    %c0_5 = arith.constant 0 : index
    %c0_6 = arith.constant 0 : index
    %c0_7 = arith.constant 0 : index
    %10 = vector.load %arg4[%c0_5, %c0_6, %c0_7] : memref<1x2x128xf32, #tpu.memory_space<vmem>>, vector<1x2x128xf32>
    tpu.vector_store %arg4[%c0_5, %c0_6, %c0_7], %9 {strides = array<i32>} : memref<1x2x128xf32, #tpu.memory_space<vmem>>, vector<1x2x128xf32>,
    %11 = arith.truncf %2 : vector<64x128xf32> to vector<64x128xbf16>
    %c0_8 = arith.constant 0 : index
    %c0_9 = arith.constant 0 : index
    %12 = vector.load %arg3[%c0_8, %c0_9] : memref<64x128xbf16, #tpu.memory_space<vmem>>, vector<64x128xbf16>
    tpu.vector_store %arg3[%c0_8, %c0_9], %11 {strides = array<i32>} : memref<64x128xbf16, #tpu.memory_space<vmem>>, vector<64x128xbf16>,
    return
  }
  func.func @transform_0(%arg0: i32) -> (i32, i32) {
    %c0_i32 = arith.constant 0 : i32
    %c0_i32_0 = arith.constant 0 : i32
    return %arg0, %c0_i32 : i32, i32
  }
  func.func @transform_1(%arg0: i32) -> (i32, i32) {
    %c0_i32 = arith.constant 0 : i32
    %c0_i32_0 = arith.constant 0 : i32
    %c0_i32_1 = arith.constant 0 : i32
    return %c0_i32, %c0_i32_0 : i32, i32
  }
  func.func @transform_2(%arg0: i32) -> (i32, i32) {
    %c0_i32 = arith.constant 0 : i32
    %c0_i32_0 = arith.constant 0 : i32
    return %arg0, %c0_i32 : i32, i32
  }
  func.func @transform_3(%arg0: i32) -> (i32, i32, i32) {
    %c0_i32 = arith.constant 0 : i32
    %c0_i32_0 = arith.constant 0 : i32
    %c0_i32_1 = arith.constant 0 : i32
    return %arg0, %c0_i32, %c0_i32_0 : i32, i32, i32
  }
}

module attributes {stable_mosaic.version = 11 : i64} {
  func.func @_affine_leaky_kernel(%arg0: i32, %arg1: memref<64x128xbf16, #tpu.memory_space<vmem>>, %arg2: memref<1x128xf32, #tpu.memory_space<vmem>>, %arg3: memref<1x128xf32, #tpu.memory_space<vmem>>, %arg4: memref<64x128xbf16, #tpu.memory_space<vmem>>) attributes {dimension_semantics = [#tpu.dimension_semantics<parallel>], iteration_bounds = array<i64: 2>, scalar_prefetch = 0 : i64, scratch_operands = 0 : i64, tpu.core_type = #tpu.core_type<tc>, window_params = [{transform_indices = @transform_0, window_bounds = array<i64: 64, 128>}, {pipeline_mode = #tpu.pipeline_mode<synchronous>, transform_indices = @transform_1, window_bounds = array<i64: 1, 128>}, {pipeline_mode = #tpu.pipeline_mode<synchronous>, transform_indices = @transform_2, window_bounds = array<i64: 1, 128>}, {transform_indices = @transform_3, window_bounds = array<i64: 64, 128>}]} {
    %c0 = arith.constant 0 : index
    %c0_0 = arith.constant 0 : index
    %0 = vector.load %arg1[%c0, %c0_0] : memref<64x128xbf16, #tpu.memory_space<vmem>>, vector<64x128xbf16>
    %1 = arith.extf %0 : vector<64x128xbf16> to vector<64x128xf32>
    %c0_1 = arith.constant 0 : index
    %c0_2 = arith.constant 0 : index
    %2 = vector.load %arg2[%c0_1, %c0_2] : memref<1x128xf32, #tpu.memory_space<vmem>>, vector<1x128xf32>
    %3 = vector.broadcast %2 : vector<1x128xf32> to vector<64x128xf32>
    %4 = arith.mulf %1, %3 : vector<64x128xf32>
    %c0_3 = arith.constant 0 : index
    %c0_4 = arith.constant 0 : index
    %5 = vector.load %arg3[%c0_3, %c0_4] : memref<1x128xf32, #tpu.memory_space<vmem>>, vector<1x128xf32>
    %6 = vector.broadcast %5 : vector<1x128xf32> to vector<64x128xf32>
    %7 = arith.addf %4, %6 : vector<64x128xf32>
    %cst = arith.constant 0.000000e+00 : f32
    %8 = vector.broadcast %cst : f32 to vector<64x128xf32>
    %9 = arith.cmpf oge, %7, %8 : vector<64x128xf32>
    %cst_5 = arith.constant 2.000000e-01 : f32
    %10 = vector.broadcast %cst_5 : f32 to vector<64x128xf32>
    %11 = arith.mulf %10, %7 : vector<64x128xf32>
    %12 = arith.select %9, %7, %11 : vector<64x128xi1>, vector<64x128xf32>
    %13 = arith.truncf %12 : vector<64x128xf32> to vector<64x128xbf16>
    %c0_6 = arith.constant 0 : index
    %c0_7 = arith.constant 0 : index
    %14 = vector.load %arg4[%c0_6, %c0_7] : memref<64x128xbf16, #tpu.memory_space<vmem>>, vector<64x128xbf16>
    tpu.vector_store %arg4[%c0_6, %c0_7], %13 {strides = array<i32>} : memref<64x128xbf16, #tpu.memory_space<vmem>>, vector<64x128xbf16>,
    return
  }
  func.func @transform_0(%arg0: i32) -> (i32, i32) {
    %c0_i32 = arith.constant 0 : i32
    %c0_i32_0 = arith.constant 0 : i32
    return %arg0, %c0_i32 : i32, i32
  }
  func.func @transform_1(%arg0: i32) -> (i32, i32) {
    %c0_i32 = arith.constant 0 : i32
    %c0_i32_0 = arith.constant 0 : i32
    %c0_i32_1 = arith.constant 0 : i32
    return %c0_i32, %c0_i32_0 : i32, i32
  }
  func.func @transform_2(%arg0: i32) -> (i32, i32) {
    %c0_i32 = arith.constant 0 : i32
    %c0_i32_0 = arith.constant 0 : i32
    %c0_i32_1 = arith.constant 0 : i32
    return %c0_i32, %c0_i32_0 : i32, i32
  }
  func.func @transform_3(%arg0: i32) -> (i32, i32) {
    %c0_i32 = arith.constant 0 : i32
    %c0_i32_0 = arith.constant 0 : i32
    return %arg0, %c0_i32 : i32, i32
  }
}

module attributes {stable_mosaic.version = 11 : i64} {
  func.func @_affine_leaky_kernel(%arg0: i32, %arg1: memref<16x128xbf16, #tpu.memory_space<vmem>>, %arg2: memref<1x128xf32, #tpu.memory_space<vmem>>, %arg3: memref<1x128xf32, #tpu.memory_space<vmem>>, %arg4: memref<16x128xbf16, #tpu.memory_space<vmem>>) attributes {dimension_semantics = [#tpu.dimension_semantics<parallel>], iteration_bounds = array<i64: 2>, scalar_prefetch = 0 : i64, scratch_operands = 0 : i64, tpu.core_type = #tpu.core_type<tc>, window_params = [{transform_indices = @transform_0, window_bounds = array<i64: 16, 128>}, {pipeline_mode = #tpu.pipeline_mode<synchronous>, transform_indices = @transform_1, window_bounds = array<i64: 1, 128>}, {pipeline_mode = #tpu.pipeline_mode<synchronous>, transform_indices = @transform_2, window_bounds = array<i64: 1, 128>}, {transform_indices = @transform_3, window_bounds = array<i64: 16, 128>}]} {
    %c0 = arith.constant 0 : index
    %c0_0 = arith.constant 0 : index
    %0 = vector.load %arg1[%c0, %c0_0] : memref<16x128xbf16, #tpu.memory_space<vmem>>, vector<16x128xbf16>
    %1 = arith.extf %0 : vector<16x128xbf16> to vector<16x128xf32>
    %c0_1 = arith.constant 0 : index
    %c0_2 = arith.constant 0 : index
    %2 = vector.load %arg2[%c0_1, %c0_2] : memref<1x128xf32, #tpu.memory_space<vmem>>, vector<1x128xf32>
    %3 = vector.broadcast %2 : vector<1x128xf32> to vector<16x128xf32>
    %4 = arith.mulf %1, %3 : vector<16x128xf32>
    %c0_3 = arith.constant 0 : index
    %c0_4 = arith.constant 0 : index
    %5 = vector.load %arg3[%c0_3, %c0_4] : memref<1x128xf32, #tpu.memory_space<vmem>>, vector<1x128xf32>
    %6 = vector.broadcast %5 : vector<1x128xf32> to vector<16x128xf32>
    %7 = arith.addf %4, %6 : vector<16x128xf32>
    %cst = arith.constant 0.000000e+00 : f32
    %8 = vector.broadcast %cst : f32 to vector<16x128xf32>
    %9 = arith.cmpf oge, %7, %8 : vector<16x128xf32>
    %cst_5 = arith.constant 2.000000e-01 : f32
    %10 = vector.broadcast %cst_5 : f32 to vector<16x128xf32>
    %11 = arith.mulf %10, %7 : vector<16x128xf32>
    %12 = arith.select %9, %7, %11 : vector<16x128xi1>, vector<16x128xf32>
    %13 = arith.truncf %12 : vector<16x128xf32> to vector<16x128xbf16>
    %c0_6 = arith.constant 0 : index
    %c0_7 = arith.constant 0 : index
    %14 = vector.load %arg4[%c0_6, %c0_7] : memref<16x128xbf16, #tpu.memory_space<vmem>>, vector<16x128xbf16>
    tpu.vector_store %arg4[%c0_6, %c0_7], %13 {strides = array<i32>} : memref<16x128xbf16, #tpu.memory_space<vmem>>, vector<16x128xbf16>,
    return
  }
  func.func @transform_0(%arg0: i32) -> (i32, i32) {
    %c0_i32 = arith.constant 0 : i32
    %c0_i32_0 = arith.constant 0 : i32
    return %arg0, %c0_i32 : i32, i32
  }
  func.func @transform_1(%arg0: i32) -> (i32, i32) {
    %c0_i32 = arith.constant 0 : i32
    %c0_i32_0 = arith.constant 0 : i32
    %c0_i32_1 = arith.constant 0 : i32
    return %c0_i32, %c0_i32_0 : i32, i32
  }
  func.func @transform_2(%arg0: i32) -> (i32, i32) {
    %c0_i32 = arith.constant 0 : i32
    %c0_i32_0 = arith.constant 0 : i32
    %c0_i32_1 = arith.constant 0 : i32
    return %c0_i32, %c0_i32_0 : i32, i32
  }
  func.func @transform_3(%arg0: i32) -> (i32, i32) {
    %c0_i32 = arith.constant 0 : i32
    %c0_i32_0 = arith.constant 0 : i32
    return %arg0, %c0_i32 : i32, i32
  }
}

module attributes {stable_mosaic.version = 11 : i64} {
  func.func @_conv_mm_kernel(%arg0: i32, %arg1: memref<16x256xbf16, #tpu.memory_space<vmem>>, %arg2: memref<256x128xbf16, #tpu.memory_space<vmem>>, %arg3: memref<16x128xbf16, #tpu.memory_space<vmem>>, %arg4: memref<1x2x128xf32, #tpu.memory_space<vmem>>) attributes {dimension_semantics = [#tpu.dimension_semantics<parallel>], iteration_bounds = array<i64: 2>, scalar_prefetch = 0 : i64, scratch_operands = 0 : i64, tpu.core_type = #tpu.core_type<tc>, window_params = [{transform_indices = @transform_0, window_bounds = array<i64: 16, 256>}, {pipeline_mode = #tpu.pipeline_mode<synchronous>, transform_indices = @transform_1, window_bounds = array<i64: 256, 128>}, {transform_indices = @transform_2, window_bounds = array<i64: 16, 128>}, {transform_indices = @transform_3, window_bounds = array<i64: 1, 2, 128>}]} {
    %c0 = arith.constant 0 : index
    %c0_0 = arith.constant 0 : index
    %0 = vector.load %arg1[%c0, %c0_0] : memref<16x256xbf16, #tpu.memory_space<vmem>>, vector<16x256xbf16>
    %c0_1 = arith.constant 0 : index
    %c0_2 = arith.constant 0 : index
    %1 = vector.load %arg2[%c0_1, %c0_2] : memref<256x128xbf16, #tpu.memory_space<vmem>>, vector<256x128xbf16>
    %cst = arith.constant dense<0.000000e+00> : vector<16x128xf32>
    %2 = tpu.matmul %0, %1, %cst {dimension_numbers = #tpu.dot_dimension_numbers<[1], [0], [0], [1], [0, 0, 1, 1], [], []>} : vector<16x256xbf16>, vector<256x128xbf16>, vector<16x128xf32> -> vector<16x128xf32>
    %cst_3 = arith.constant dense<0.000000e+00> : vector<128xf32>
    %3 = vector.multi_reduction <add>, %2, %cst_3 [0] : vector<16x128xf32> to vector<128xf32>
    %4 = vector.shape_cast %3 : vector<128xf32> to vector<1x128xf32>
    %5 = arith.mulf %2, %2 : vector<16x128xf32>
    %cst_4 = arith.constant dense<0.000000e+00> : vector<128xf32>
    %6 = vector.multi_reduction <add>, %5, %cst_4 [0] : vector<16x128xf32> to vector<128xf32>
    %7 = vector.shape_cast %6 : vector<128xf32> to vector<1x128xf32>
    %8 = tpu.concatenate %4, %7 in 0 : vector<1x128xf32>, vector<1x128xf32> -> vector<2x128xf32>
    %9 = vector.shape_cast %8 : vector<2x128xf32> to vector<1x2x128xf32>
    %c0_5 = arith.constant 0 : index
    %c0_6 = arith.constant 0 : index
    %c0_7 = arith.constant 0 : index
    %10 = vector.load %arg4[%c0_5, %c0_6, %c0_7] : memref<1x2x128xf32, #tpu.memory_space<vmem>>, vector<1x2x128xf32>
    tpu.vector_store %arg4[%c0_5, %c0_6, %c0_7], %9 {strides = array<i32>} : memref<1x2x128xf32, #tpu.memory_space<vmem>>, vector<1x2x128xf32>,
    %11 = arith.truncf %2 : vector<16x128xf32> to vector<16x128xbf16>
    %c0_8 = arith.constant 0 : index
    %c0_9 = arith.constant 0 : index
    %12 = vector.load %arg3[%c0_8, %c0_9] : memref<16x128xbf16, #tpu.memory_space<vmem>>, vector<16x128xbf16>
    tpu.vector_store %arg3[%c0_8, %c0_9], %11 {strides = array<i32>} : memref<16x128xbf16, #tpu.memory_space<vmem>>, vector<16x128xbf16>,
    return
  }
  func.func @transform_0(%arg0: i32) -> (i32, i32) {
    %c0_i32 = arith.constant 0 : i32
    %c0_i32_0 = arith.constant 0 : i32
    return %arg0, %c0_i32 : i32, i32
  }
  func.func @transform_1(%arg0: i32) -> (i32, i32) {
    %c0_i32 = arith.constant 0 : i32
    %c0_i32_0 = arith.constant 0 : i32
    %c0_i32_1 = arith.constant 0 : i32
    return %c0_i32, %c0_i32_0 : i32, i32
  }
  func.func @transform_2(%arg0: i32) -> (i32, i32) {
    %c0_i32 = arith.constant 0 : i32
    %c0_i32_0 = arith.constant 0 : i32
    return %arg0, %c0_i32 : i32, i32
  }
  func.func @transform_3(%arg0: i32) -> (i32, i32, i32) {
    %c0_i32 = arith.constant 0 : i32
    %c0_i32_0 = arith.constant 0 : i32
    %c0_i32_1 = arith.constant 0 : i32
    return %arg0, %c0_i32, %c0_i32_0 : i32, i32, i32
  }
}

module attributes {stable_mosaic.version = 11 : i64} {
  func.func @_conv_mm_kernel(%arg0: i32, %arg1: memref<16x512xbf16, #tpu.memory_space<vmem>>, %arg2: memref<512x128xbf16, #tpu.memory_space<vmem>>, %arg3: memref<16x128xbf16, #tpu.memory_space<vmem>>, %arg4: memref<1x2x128xf32, #tpu.memory_space<vmem>>) attributes {dimension_semantics = [#tpu.dimension_semantics<parallel>], iteration_bounds = array<i64: 2>, scalar_prefetch = 0 : i64, scratch_operands = 0 : i64, tpu.core_type = #tpu.core_type<tc>, window_params = [{transform_indices = @transform_0, window_bounds = array<i64: 16, 512>}, {pipeline_mode = #tpu.pipeline_mode<synchronous>, transform_indices = @transform_1, window_bounds = array<i64: 512, 128>}, {transform_indices = @transform_2, window_bounds = array<i64: 16, 128>}, {transform_indices = @transform_3, window_bounds = array<i64: 1, 2, 128>}]} {
    %c0 = arith.constant 0 : index
    %c0_0 = arith.constant 0 : index
    %0 = vector.load %arg1[%c0, %c0_0] : memref<16x512xbf16, #tpu.memory_space<vmem>>, vector<16x512xbf16>
    %c0_1 = arith.constant 0 : index
    %c0_2 = arith.constant 0 : index
    %1 = vector.load %arg2[%c0_1, %c0_2] : memref<512x128xbf16, #tpu.memory_space<vmem>>, vector<512x128xbf16>
    %cst = arith.constant dense<0.000000e+00> : vector<16x128xf32>
    %2 = tpu.matmul %0, %1, %cst {dimension_numbers = #tpu.dot_dimension_numbers<[1], [0], [0], [1], [0, 0, 1, 1], [], []>} : vector<16x512xbf16>, vector<512x128xbf16>, vector<16x128xf32> -> vector<16x128xf32>
    %cst_3 = arith.constant dense<0.000000e+00> : vector<128xf32>
    %3 = vector.multi_reduction <add>, %2, %cst_3 [0] : vector<16x128xf32> to vector<128xf32>
    %4 = vector.shape_cast %3 : vector<128xf32> to vector<1x128xf32>
    %5 = arith.mulf %2, %2 : vector<16x128xf32>
    %cst_4 = arith.constant dense<0.000000e+00> : vector<128xf32>
    %6 = vector.multi_reduction <add>, %5, %cst_4 [0] : vector<16x128xf32> to vector<128xf32>
    %7 = vector.shape_cast %6 : vector<128xf32> to vector<1x128xf32>
    %8 = tpu.concatenate %4, %7 in 0 : vector<1x128xf32>, vector<1x128xf32> -> vector<2x128xf32>
    %9 = vector.shape_cast %8 : vector<2x128xf32> to vector<1x2x128xf32>
    %c0_5 = arith.constant 0 : index
    %c0_6 = arith.constant 0 : index
    %c0_7 = arith.constant 0 : index
    %10 = vector.load %arg4[%c0_5, %c0_6, %c0_7] : memref<1x2x128xf32, #tpu.memory_space<vmem>>, vector<1x2x128xf32>
    tpu.vector_store %arg4[%c0_5, %c0_6, %c0_7], %9 {strides = array<i32>} : memref<1x2x128xf32, #tpu.memory_space<vmem>>, vector<1x2x128xf32>,
    %11 = arith.truncf %2 : vector<16x128xf32> to vector<16x128xbf16>
    %c0_8 = arith.constant 0 : index
    %c0_9 = arith.constant 0 : index
    %12 = vector.load %arg3[%c0_8, %c0_9] : memref<16x128xbf16, #tpu.memory_space<vmem>>, vector<16x128xbf16>
    tpu.vector_store %arg3[%c0_8, %c0_9], %11 {strides = array<i32>} : memref<16x128xbf16, #tpu.memory_space<vmem>>, vector<16x128xbf16>,
    return
  }
  func.func @transform_0(%arg0: i32) -> (i32, i32) {
    %c0_i32 = arith.constant 0 : i32
    %c0_i32_0 = arith.constant 0 : i32
    return %arg0, %c0_i32 : i32, i32
  }
  func.func @transform_1(%arg0: i32) -> (i32, i32) {
    %c0_i32 = arith.constant 0 : i32
    %c0_i32_0 = arith.constant 0 : i32
    %c0_i32_1 = arith.constant 0 : i32
    return %c0_i32, %c0_i32_0 : i32, i32
  }
  func.func @transform_2(%arg0: i32) -> (i32, i32) {
    %c0_i32 = arith.constant 0 : i32
    %c0_i32_0 = arith.constant 0 : i32
    return %arg0, %c0_i32 : i32, i32
  }
  func.func @transform_3(%arg0: i32) -> (i32, i32, i32) {
    %c0_i32 = arith.constant 0 : i32
    %c0_i32_0 = arith.constant 0 : i32
    %c0_i32_1 = arith.constant 0 : i32
    return %arg0, %c0_i32, %c0_i32_0 : i32, i32, i32
  }
}

module attributes {stable_mosaic.version = 11 : i64} {
  func.func @_conv_mm_kernel(%arg0: i32, %arg1: memref<16x1024xbf16, #tpu.memory_space<vmem>>, %arg2: memref<1024x128xbf16, #tpu.memory_space<vmem>>, %arg3: memref<1x128xf32, #tpu.memory_space<vmem>>, %arg4: memref<16x128xf32, #tpu.memory_space<vmem>>) attributes {dimension_semantics = [#tpu.dimension_semantics<parallel>], iteration_bounds = array<i64: 1>, scalar_prefetch = 0 : i64, scratch_operands = 0 : i64, tpu.core_type = #tpu.core_type<tc>, window_params = [{transform_indices = @transform_0, window_bounds = array<i64: 16, 1024>}, {pipeline_mode = #tpu.pipeline_mode<synchronous>, transform_indices = @transform_1, window_bounds = array<i64: 1024, 128>}, {pipeline_mode = #tpu.pipeline_mode<synchronous>, transform_indices = @transform_2, window_bounds = array<i64: 1, 128>}, {transform_indices = @transform_3, window_bounds = array<i64: 16, 128>}]} {
    %c0 = arith.constant 0 : index
    %c0_0 = arith.constant 0 : index
    %0 = vector.load %arg1[%c0, %c0_0] : memref<16x1024xbf16, #tpu.memory_space<vmem>>, vector<16x1024xbf16>
    %c0_1 = arith.constant 0 : index
    %c0_2 = arith.constant 0 : index
    %1 = vector.load %arg2[%c0_1, %c0_2] : memref<1024x128xbf16, #tpu.memory_space<vmem>>, vector<1024x128xbf16>
    %cst = arith.constant dense<0.000000e+00> : vector<16x128xf32>
    %2 = tpu.matmul %0, %1, %cst {dimension_numbers = #tpu.dot_dimension_numbers<[1], [0], [0], [1], [0, 0, 1, 1], [], []>} : vector<16x1024xbf16>, vector<1024x128xbf16>, vector<16x128xf32> -> vector<16x128xf32>
    %c0_3 = arith.constant 0 : index
    %c0_4 = arith.constant 0 : index
    %3 = vector.load %arg3[%c0_3, %c0_4] : memref<1x128xf32, #tpu.memory_space<vmem>>, vector<1x128xf32>
    %4 = vector.broadcast %3 : vector<1x128xf32> to vector<16x128xf32>
    %5 = arith.addf %2, %4 : vector<16x128xf32>
    %c0_5 = arith.constant 0 : index
    %c0_6 = arith.constant 0 : index
    %6 = vector.load %arg4[%c0_5, %c0_6] : memref<16x128xf32, #tpu.memory_space<vmem>>, vector<16x128xf32>
    tpu.vector_store %arg4[%c0_5, %c0_6], %5 {strides = array<i32>} : memref<16x128xf32, #tpu.memory_space<vmem>>, vector<16x128xf32>,
    return
  }
  func.func @transform_0(%arg0: i32) -> (i32, i32) {
    %c0_i32 = arith.constant 0 : i32
    %c0_i32_0 = arith.constant 0 : i32
    return %arg0, %c0_i32 : i32, i32
  }
  func.func @transform_1(%arg0: i32) -> (i32, i32) {
    %c0_i32 = arith.constant 0 : i32
    %c0_i32_0 = arith.constant 0 : i32
    %c0_i32_1 = arith.constant 0 : i32
    return %c0_i32, %c0_i32_0 : i32, i32
  }
  func.func @transform_2(%arg0: i32) -> (i32, i32) {
    %c0_i32 = arith.constant 0 : i32
    %c0_i32_0 = arith.constant 0 : i32
    %c0_i32_1 = arith.constant 0 : i32
    return %c0_i32, %c0_i32_0 : i32, i32
  }
  func.func @transform_3(%arg0: i32) -> (i32, i32) {
    %c0_i32 = arith.constant 0 : i32
    %c0_i32_0 = arith.constant 0 : i32
    return %arg0, %c0_i32 : i32, i32
  }
}

</mosaic_0001>

<llo_original>
// kernel: _lambda_.8
$region0: #{_lambda_.8}
  #allocation0 [shape = 'u32[]', space=smem, size = 0x4, offset = 0x4, fixed_abs, tag = 'smem constant byte address 0x4 - core index']
  #allocation1 [shape = 'u32[72,128]{1,0:T(1,128)}', space=vmem, size = 0x9000, scoped, tag = 'internal scratch']
  %s0 = inlined_call_operand.vmem [shape: bf16[512,128], index: 0, kind: input, shape index: {}]
  %s1 = inlined_call_operand.vmem [shape: bf16[128,128], index: 1, kind: input, shape index: {}]
  %s2 = inlined_call_operand.vmem [shape: f32[1,128], index: 2, kind: input, shape index: {}]
  %s3 = inlined_call_operand.vmem [shape: bf16[512,128], index: 3, kind: output, shape index: {}]
  %s4 = sld [smem:[#allocation0]]
  $region45: #{_lambda_.8} parent=0
    _
  %s6 = ssub.s32 1, %s4
  %s7 = scalar_select 0, %s6, %s4
  loop: start=0, step=1, limit=4
  $region2: #{_lambda_.8} parent=0 // loop_pre_header
    _
  $region3: #{_lambda_.8} parent=0 // loop_header
    %s9 = sphi 0, %s13
    %p10 = scmp.ge.s32.totalorder %s9, 4
    %s19 = sphi 0, %s21
    %s22 = sphi 0, %s19
    %s23 = sphi 0, %s22
    %s39 = sphi 0, %s23
    %s43 = sphi 0, %s43
    %s45 = sphi 0, %s43
    %s46 = sphi 0, %s45
    %s60 = sphi 0, %s46
    %s64 = sphi 0, %s64
    %s66 = sphi 0, %s64
    %s67 = sphi 0, %s66
    %s81 = sphi 0, %s67
    %s87 = sphi 0, %s89
    %s90 = sphi 0, %s87
    %s91 = sphi 0, %s90
    %s107 = sphi 0, %s91
  $region4: #{_lambda_.8} parent=0 // loop_header_branch
    %12 = sbr.rel (%p10) target = $region8
  $region5: #{_lambda_.8} parent=0 // loop_body
    %s14 = ssub.s32 %s9, 1
    %s15 = ssub.s32 %s9, 2
    %s16 = sadd.s32 %s9, 1
    %s17 = ssub.s32 %s9, %s16
    %p18 = scmp.eq.s32.totalorder %s17, 0
    %s20 = sadd.s32 %s19, 1
    %s21 = scalar_select %p18, %s19, %s20
    %p24 = pneg %p18
    %p25 = scmp.eq.s32.totalorder %s9, 1
    %p26 = por %p24, %p25
    %p27 = scmp.ne.s32.totalorder %s19, %s22
    %p28 = scmp.eq.s32.totalorder %s9, 0
    %p29 = por %p27, %p28
    %p30 = scmp.ne.s32.totalorder %s19, %s22
    %p31 = scmp.eq.s32.totalorder %s14, 1
    %p32 = por %p30, %p31
    %p33 = scmp.ne.s32.totalorder %s22, %s23
    %p34 = scmp.eq.s32.totalorder %s14, 0
    %p35 = por %p33, %p34
    %p36 = scmp.ne.s32.totalorder %s22, %s23
    %p37 = scmp.eq.s32.totalorder %s15, 1
    %p38 = por %p36, %p37
    %p40 = scmp.ne.s32.totalorder %s23, %s39
    %p41 = scmp.eq.s32.totalorder %s15, 0
    %p42 = por %p40, %p41
    %s44 = sadd.s32 %s43, 1
    %p47 = scmp.eq.s32.totalorder %s9, 1
    %p48 = scmp.ne.s32.totalorder %s43, %s45
    %p49 = scmp.eq.s32.totalorder %s9, 0
    %p50 = por %p48, %p49
    %p51 = scmp.ne.s32.totalorder %s43, %s45
    %p52 = scmp.eq.s32.totalorder %s14, 1
    %p53 = por %p51, %p52
    %p54 = scmp.ne.s32.totalorder %s45, %s46
    %p55 = scmp.eq.s32.totalorder %s14, 0
    %p56 = por %p54, %p55
    %p57 = scmp.ne.s32.totalorder %s45, %s46
    %p58 = scmp.eq.s32.totalorder %s15, 1
    %p59 = por %p57, %p58
    %p61 = scmp.ne.s32.totalorder %s46, %s60
    %p62 = scmp.eq.s32.totalorder %s15, 0
    %p63 = por %p61, %p62
    %s65 = sadd.s32 %s64, 1
    %p68 = scmp.eq.s32.totalorder %s9, 1
    %p69 = scmp.ne.s32.totalorder %s64, %s66
    %p70 = scmp.eq.s32.totalorder %s9, 0
    %p71 = por %p69, %p70
    %p72 = scmp.ne.s32.totalorder %s64, %s66
    %p73 = scmp.eq.s32.totalorder %s14, 1
    %p74 = por %p72, %p73
    %p75 = scmp.ne.s32.totalorder %s66, %s67
    %p76 = scmp.eq.s32.totalorder %s14, 0
    %p77 = por %p75, %p76
    %p78 = scmp.ne.s32.totalorder %s66, %s67
    %p79 = scmp.eq.s32.totalorder %s15, 1
    %p80 = por %p78, %p79
    %p82 = scmp.ne.s32.totalorder %s67, %s81
    %p83 = scmp.eq.s32.totalorder %s15, 0
    %p84 = por %p82, %p83
    %s85 = ssub.s32 %s9, %s16
    %p86 = scmp.eq.s32.totalorder %s85, 0
    %s88 = sadd.s32 %s87, 1
    %s89 = scalar_select %p86, %s87, %s88
    %p92 = pneg %p86
    %p93 = scmp.eq.s32.totalorder %s9, 1
    %p94 = por %p92, %p93
    %p95 = scmp.ne.s32.totalorder %s87, %s90
    %p96 = scmp.eq.s32.totalorder %s9, 0
    %p97 = por %p95, %p96
    %p98 = scmp.ne.s32.totalorder %s87, %s90
    %p99 = scmp.eq.s32.totalorder %s14, 1
    %p100 = por %p98, %p99
    %p101 = scmp.ne.s32.totalorder %s90, %s91
    %p102 = scmp.eq.s32.totalorder %s14, 0
    %p103 = por %p101, %p102
    %p104 = scmp.ne.s32.totalorder %s90, %s91
    %p105 = scmp.eq.s32.totalorder %s15, 1
    %p106 = por %p104, %p105
    %p108 = scmp.ne.s32.totalorder %s91, %s107
    %p109 = scmp.eq.s32.totalorder %s15, 0
    %p110 = por %p108, %p109
    %p111 = scmp.le.s32.totalorder 1, %s9
    %p112 = scmp.lt.s32.totalorder %s9, 3
    %p113 = pnand %p111, %p112
    %p114 = pneg %p113
    // Predicated region
    $region9: #{_lambda_.8} parent=5 // pred_check
      _
    $region10: #{_lambda_.8} parent=5 // pred_check_branch
      %116 = sbr.rel (%p113) target = $region12
    $region11: #{_lambda_.8} parent=5 // pred_region
      %s117 = ssub.s32 %s9, 1
      // Predicated region
      $region13: #{_lambda_.8} parent=11 // pred_check
        %p118 = pneg %p56
      $region14: #{_lambda_.8} parent=11 // pred_check_branch
        %120 = sbr.rel (%p118) target = $region16
      $region15: #{_lambda_.8} parent=11 // pred_region
        _
      $region16: #{_lambda_.8} parent=11 // pred_fallthru
        _
      // Predicated region
      $region17: #{_lambda_.8} parent=11 // pred_check
        %p121 = pneg %p77
      $region18: #{_lambda_.8} parent=11 // pred_check_branch
        %123 = sbr.rel (%p121) target = $region20
      $region19: #{_lambda_.8} parent=11 // pred_region
        _
      $region20: #{_lambda_.8} parent=11 // pred_fallthru
        _
    $region12: #{_lambda_.8} parent=5 // pred_fallthru
      _
    %p124 = scmp.lt.s32.totalorder %s9, 2
    // Predicated region
    $region21: #{_lambda_.8} parent=5 // pred_check
      %p125 = pneg %p124
    $region22: #{_lambda_.8} parent=5 // pred_check_branch
      %127 = sbr.rel (%p125) target = $region24
    $region23: #{_lambda_.8} parent=5 // pred_region
      // Predicated region
      $region25: #{_lambda_.8} parent=23 // pred_check
        %p128 = pneg %p29
      $region26: #{_lambda_.8} parent=23 // pred_check_branch
        %130 = sbr.rel (%p128) target = $region28
      $region27: #{_lambda_.8} parent=23 // pred_region
        %s131 = smul.u32 32, %s9
        %p132 = scmp.lt.s32.totalorder %s131, 63
        %s133 = scalar_select %p132, %s131, 63
        %s134 = smul.addr %s133, 4
        %s135 = scalar_lea.vmem %s0, %s134
        %s136 = smul.u32 32, %s9
      $region28: #{_lambda_.8} parent=23 // pred_fallthru
        _
    $region24: #{_lambda_.8} parent=5 // pred_fallthru
      _
    %p137 = scmp.le.s32.totalorder 1, %s9
    %p138 = scmp.lt.s32.totalorder %s9, 3
    %p139 = pnand %p137, %p138
    %p140 = pneg %p139
    // Predicated region
    $region29: #{_lambda_.8} parent=5 // pred_check
      _
    $region30: #{_lambda_.8} parent=5 // pred_check_branch
      %142 = sbr.rel (%p139) target = $region32
    $region31: #{_lambda_.8} parent=5 // pred_region
      %s143 = ssub.s32 %s9, 1
      %s144 = smul.u32 32, %s14
      %p145 = scmp.lt.s32.totalorder %s144, 63
      %s146 = scalar_select %p145, %s144, 63
      %s147 = smul.addr %s146, 4
      %s148 = scalar_lea.vmem %s0, %s147
      %p149 = pneg %p35
      %p150 = pneg %p32
      %p151 = pneg %p56
      %p152 = pneg %p53
      %p153 = pneg %p77
      %p154 = pneg %p74
      %p155 = pneg %p103
      %p156 = pneg %p100
      %s157 = smul.u32 32, %s14
      %p158 = scmp.lt.s32.totalorder %s157, 63
      %s159 = scalar_select %p158, %s157, 63
      %s160 = smul.addr %s159, 4
      %s161 = scalar_lea.vmem %s3, %s160
      %s162 = smul.u32 32, %s14
      %p163 = scmp.lt.s32.totalorder %s162, 63
      %s164 = scalar_select %p163, %s162, 63
      %s165 = smul.addr %s164, 4
      %s166 = scalar_lea.vmem %s0, %s165
      %s167 = smul.u32 32, %s14
      %s168 = smul.u32 32, %s14
      %p169 = scmp.lt.s32.totalorder %s168, 63
      %s170 = scalar_select %p169, %s168, 63
      %s171 = smul.addr %s170, 4
      %s172 = scalar_lea.vmem %s3, %s171
      %s173 = smul.u32 32, %s14
      %v174 = vld [vmem:[%s166] sm:$0xf]
      %v175 = vld [vmem:[%s166 + $0x4] sm:$0xf]
      %v176 = vld [vmem:[%s166 + $0x8] sm:$0xf]
      %v177 = vld [vmem:[%s166 + $0xc] sm:$0xf]
      %v178 = vld [vmem:[%s166 + $0x10] sm:$0xf]
      %v179 = vld [vmem:[%s166 + $0x14] sm:$0xf]
      %v180 = vld [vmem:[%s166 + $0x18] sm:$0xf]
      %v181 = vld [vmem:[%s166 + $0x1c] sm:$0xf]
      %v182 = vld [vmem:[%s166 + $0x20] sm:$0xf]
      %v183 = vld [vmem:[%s166 + $0x24] sm:$0xf]
      %v184 = vld [vmem:[%s166 + $0x28] sm:$0xf]
      %v185 = vld [vmem:[%s166 + $0x2c] sm:$0xf]
      %v186 = vld [vmem:[%s166 + $0x30] sm:$0xf]
      %v187 = vld [vmem:[%s166 + $0x34] sm:$0xf]
      %v188 = vld [vmem:[%s166 + $0x38] sm:$0xf]
      %v189 = vld [vmem:[%s166 + $0x3c] sm:$0xf]
      %v190 = vld [vmem:[%s166 + $0x40] sm:$0xf]
      %v191 = vld [vmem:[%s166 + $0x44] sm:$0xf]
      %v192 = vld [vmem:[%s166 + $0x48] sm:$0xf]
      %v193 = vld [vmem:[%s166 + $0x4c] sm:$0xf]
      %v194 = vld [vmem:[%s166 + $0x50] sm:$0xf]
      %v195 = vld [vmem:[%s166 + $0x54] sm:$0xf]
      %v196 = vld [vmem:[%s166 + $0x58] sm:$0xf]
      %v197 = vld [vmem:[%s166 + $0x5c] sm:$0xf]
      %v198 = vld [vmem:[%s166 + $0x60] sm:$0xf]
      %v199 = vld [vmem:[%s166 + $0x64] sm:$0xf]
      %v200 = vld [vmem:[%s166 + $0x68] sm:$0xf]
      %v201 = vld [vmem:[%s166 + $0x6c] sm:$0xf]
      %v202 = vld [vmem:[%s166 + $0x70] sm:$0xf]
      %v203 = vld [vmem:[%s166 + $0x74] sm:$0xf]
      %v204 = vld [vmem:[%s166 + $0x78] sm:$0xf]
      %v205 = vld [vmem:[%s166 + $0x7c] sm:$0xf]
      %v206 = vld [vmem:[%s1] sm:$0xf]
      %v207 = vld [vmem:[%s1 + $0x4] sm:$0xf]
      %v208 = vld [vmem:[%s1 + $0x8] sm:$0xf]
      %v209 = vld [vmem:[%s1 + $0xc] sm:$0xf]
      %v210 = vld [vmem:[%s1 + $0x10] sm:$0xf]
      %v211 = vld [vmem:[%s1 + $0x14] sm:$0xf]
      %v212 = vld [vmem:[%s1 + $0x18] sm:$0xf]
      %v213 = vld [vmem:[%s1 + $0x1c] sm:$0xf]
      %v214 = vld [vmem:[%s1 + $0x20] sm:$0xf]
      %v215 = vld [vmem:[%s1 + $0x24] sm:$0xf]
      %v216 = vld [vmem:[%s1 + $0x28] sm:$0xf]
      %v217 = vld [vmem:[%s1 + $0x2c] sm:$0xf]
      %v218 = vld [vmem:[%s1 + $0x30] sm:$0xf]
      %v219 = vld [vmem:[%s1 + $0x34] sm:$0xf]
      %v220 = vld [vmem:[%s1 + $0x38] sm:$0xf]
      %v221 = vld [vmem:[%s1 + $0x3c] sm:$0xf]
      %v222 = vld [vmem:[%s2] sm:$0x1]
      %v224 = vperm.slane %v222, 0
      %v258 = vunpack.c.l.b16 %v174
      %v259 = vunpack.c.l.b16 %v175
      %v260 = vunpack.c.l.b16 %v176
      %v261 = vunpack.c.l.b16 %v177
      %v262 = vunpack.c.l.b16 %v178
      %v263 = vunpack.c.l.b16 %v179
      %v264 = vunpack.c.l.b16 %v180
      %v265 = vunpack.c.l.b16 %v181
      %v266 = vunpack.c.l.b16 %v182
      %v267 = vunpack.c.l.b16 %v183
      %v268 = vunpack.c.l.b16 %v184
      %v269 = vunpack.c.l.b16 %v185
      %v270 = vunpack.c.l.b16 %v186
      %v271 = vunpack.c.l.b16 %v187
      %v272 = vunpack.c.l.b16 %v188
      %v273 = vunpack.c.l.b16 %v189
      %v274 = vunpack.c.l.b16 %v190
      %v275 = vunpack.c.l.b16 %v191
      %v276 = vunpack.c.l.b16 %v192
      %v277 = vunpack.c.l.b16 %v193
      %v278 = vunpack.c.l.b16 %v194
      %v279 = vunpack.c.l.b16 %v195
      %v280 = vunpack.c.l.b16 %v196
      %v281 = vunpack.c.l.b16 %v197
      %v282 = vunpack.c.l.b16 %v198
      %v283 = vunpack.c.l.b16 %v199
      %v284 = vunpack.c.l.b16 %v200
      %v285 = vunpack.c.l.b16 %v201
      %v286 = vunpack.c.l.b16 %v202
      %v287 = vunpack.c.l.b16 %v203
      %v288 = vunpack.c.l.b16 %v204
      %v289 = vunpack.c.l.b16 %v205
      %v290 = vpack.c.b16 %v259, %v258
      %v291 = vpack.c.b16 %v261, %v260
      %v292 = vpack.c.b16 %v263, %v262
      %v293 = vpack.c.b16 %v265, %v264
      %v294 = vpack.c.b16 %v267, %v266
      %v295 = vpack.c.b16 %v269, %v268
      %v296 = vpack.c.b16 %v271, %v270
      %v297 = vpack.c.b16 %v273, %v272
      %v298 = vpack.c.b16 %v275, %v274
      %v299 = vpack.c.b16 %v277, %v276
      %v300 = vpack.c.b16 %v279, %v278
      %v301 = vpack.c.b16 %v281, %v280
      %v302 = vpack.c.b16 %v283, %v282
      %v303 = vpack.c.b16 %v285, %v284
      %v304 = vpack.c.b16 %v287, %v286
      %v305 = vpack.c.b16 %v289, %v288
      %v338 = vunpack.c.l.b16 %v206
      %v339 = vunpack.c.l.b16 %v207
      %v340 = vunpack.c.l.b16 %v208
      %v341 = vunpack.c.l.b16 %v209
      %v342 = vunpack.c.l.b16 %v210
      %v343 = vunpack.c.l.b16 %v211
      %v344 = vunpack.c.l.b16 %v212
      %v345 = vunpack.c.l.b16 %v213
      %v346 = vunpack.c.l.b16 %v214
      %v347 = vunpack.c.l.b16 %v215
      %v348 = vunpack.c.l.b16 %v216
      %v349 = vunpack.c.l.b16 %v217
      %v350 = vunpack.c.l.b16 %v218
      %v351 = vunpack.c.l.b16 %v219
      %v352 = vunpack.c.l.b16 %v220
      %v353 = vunpack.c.l.b16 %v221
      %v354 = vpack.c.b16 %v339, %v338
      %v355 = vpack.c.b16 %v341, %v340
      %v356 = vpack.c.b16 %v343, %v342
      %v357 = vpack.c.b16 %v345, %v344
      %v358 = vpack.c.b16 %v347, %v346
      %v359 = vpack.c.b16 %v349, %v348
      %v360 = vpack.c.b16 %v351, %v350
      %v361 = vpack.c.b16 %v353, %v352
      %370 = vmatpush.bf16.msra.mxu0 %v361
      %371 = vmatpush.bf16.msra.mxu0 %v360
      %372 = vmatpush.bf16.msra.mxu0 %v359
      %373 = vmatpush.bf16.msra.mxu0 %v358
      %374 = vmatpush.bf16.msra.mxu0 %v357
      %375 = vmatpush.bf16.msra.mxu0 %v356
      %376 = vmatpush.bf16.msra.mxu0 %v355
      %377 = vmatpush.bf16.msra.mxu0 %v354
      %378 = vmatmul.bf16.gmra.mxu0 %v290
      %v379 = vpop.f32.mrf.mxu0
      %v380 = vadd.f32 %v224, %v379
      %v381 = vpop.f32.mrf.mxu0
      %v382 = vadd.f32 %v224, %v381
      %383 = vmatmul.bf16.gmra.mxu0 %v291
      %v384 = vpop.f32.mrf.mxu0
      %v385 = vadd.f32 %v224, %v384
      %v386 = vpop.f32.mrf.mxu0
      %v387 = vadd.f32 %v224, %v386
      %388 = vmatmul.bf16.gmra.mxu0 %v292
      %v389 = vpop.f32.mrf.mxu0
      %v390 = vadd.f32 %v224, %v389
      %v391 = vpop.f32.mrf.mxu0
      %v392 = vadd.f32 %v224, %v391
      %393 = vmatmul.bf16.gmra.mxu0 %v293
      %v394 = vpop.f32.mrf.mxu0
      %v395 = vadd.f32 %v224, %v394
      %v396 = vpop.f32.mrf.mxu0
      %v397 = vadd.f32 %v224, %v396
      %398 = vmatmul.bf16.gmra.mxu0 %v294
      %v399 = vpop.f32.mrf.mxu0
      %v400 = vadd.f32 %v224, %v399
      %v401 = vpop.f32.mrf.mxu0
      %v402 = vadd.f32 %v224, %v401
      %403 = vmatmul.bf16.gmra.mxu0 %v295
      %v404 = vpop.f32.mrf.mxu0
      %v405 = vadd.f32 %v224, %v404
      %v406 = vpop.f32.mrf.mxu0
      %v407 = vadd.f32 %v224, %v406
      %408 = vmatmul.bf16.gmra.mxu0 %v296
      %v409 = vpop.f32.mrf.mxu0
      %v410 = vadd.f32 %v224, %v409
      %v411 = vpop.f32.mrf.mxu0
      %v412 = vadd.f32 %v224, %v411
      %413 = vmatmul.bf16.gmra.mxu0 %v297
      %v414 = vpop.f32.mrf.mxu0
      %v415 = vadd.f32 %v224, %v414
      %v416 = vpop.f32.mrf.mxu0
      %v417 = vadd.f32 %v224, %v416
      %418 = vmatmul.bf16.gmra.mxu0 %v298
      %v419 = vpop.f32.mrf.mxu0
      %v420 = vadd.f32 %v224, %v419
      %v421 = vpop.f32.mrf.mxu0
      %v422 = vadd.f32 %v224, %v421
      %423 = vmatmul.bf16.gmra.mxu0 %v299
      %v424 = vpop.f32.mrf.mxu0
      %v425 = vadd.f32 %v224, %v424
      %v426 = vpop.f32.mrf.mxu0
      %v427 = vadd.f32 %v224, %v426
      %428 = vmatmul.bf16.gmra.mxu0 %v300
      %v429 = vpop.f32.mrf.mxu0
      %v430 = vadd.f32 %v224, %v429
      %v431 = vpop.f32.mrf.mxu0
      %v432 = vadd.f32 %v224, %v431
      %433 = vmatmul.bf16.gmra.mxu0 %v301
      %v434 = vpop.f32.mrf.mxu0
      %v435 = vadd.f32 %v224, %v434
      %v436 = vpop.f32.mrf.mxu0
      %v437 = vadd.f32 %v224, %v436
      %438 = vmatmul.bf16.gmra.mxu0 %v302
      %v439 = vpop.f32.mrf.mxu0
      %v440 = vadd.f32 %v224, %v439
      %v441 = vpop.f32.mrf.mxu0
      %v442 = vadd.f32 %v224, %v441
      %443 = vmatmul.bf16.gmra.mxu0 %v303
      %v444 = vpop.f32.mrf.mxu0
      %v445 = vadd.f32 %v224, %v444
      %v446 = vpop.f32.mrf.mxu0
      %v447 = vadd.f32 %v224, %v446
      %448 = vmatmul.bf16.gmra.mxu0 %v304
      %v449 = vpop.f32.mrf.mxu0
      %v450 = vadd.f32 %v224, %v449
      %v451 = vpop.f32.mrf.mxu0
      %v452 = vadd.f32 %v224, %v451
      %453 = vmatmul.bf16.gmra.mxu0 %v305
      %v454 = vpop.f32.mrf.mxu0
      %v455 = vadd.f32 %v224, %v454
      %v456 = vpop.f32.mrf.mxu0
      %v457 = vadd.f32 %v224, %v456
      %458 = vdwg.mxu0
      %vm459 = vcmp.ge.f32.partialorder %v380, 0.0
      %vm460 = vcmp.ge.f32.partialorder %v382, 0.0
      %vm461 = vcmp.ge.f32.partialorder %v385, 0.0
      %vm462 = vcmp.ge.f32.partialorder %v387, 0.0
      %vm463 = vcmp.ge.f32.partialorder %v390, 0.0
      %vm464 = vcmp.ge.f32.partialorder %v392, 0.0
      %vm465 = vcmp.ge.f32.partialorder %v395, 0.0
      %vm466 = vcmp.ge.f32.partialorder %v397, 0.0
      %vm467 = vcmp.ge.f32.partialorder %v400, 0.0
      %vm468 = vcmp.ge.f32.partialorder %v402, 0.0
      %vm469 = vcmp.ge.f32.partialorder %v405, 0.0
      %vm470 = vcmp.ge.f32.partialorder %v407, 0.0
      %vm471 = vcmp.ge.f32.partialorder %v410, 0.0
      %vm472 = vcmp.ge.f32.partialorder %v412, 0.0
      %vm473 = vcmp.ge.f32.partialorder %v415, 0.0
      %vm474 = vcmp.ge.f32.partialorder %v417, 0.0
      %vm475 = vcmp.ge.f32.partialorder %v420, 0.0
      %vm476 = vcmp.ge.f32.partialorder %v422, 0.0
      %vm477 = vcmp.ge.f32.partialorder %v425, 0.0
      %vm478 = vcmp.ge.f32.partialorder %v427, 0.0
      %vm479 = vcmp.ge.f32.partialorder %v430, 0.0
      %vm480 = vcmp.ge.f32.partialorder %v432, 0.0
      %vm481 = vcmp.ge.f32.partialorder %v435, 0.0
      %vm482 = vcmp.ge.f32.partialorder %v437, 0.0
      %vm483 = vcmp.ge.f32.partialorder %v440, 0.0
      %vm484 = vcmp.ge.f32.partialorder %v442, 0.0
      %vm485 = vcmp.ge.f32.partialorder %v445, 0.0
      %vm486 = vcmp.ge.f32.partialorder %v447, 0.0
      %vm487 = vcmp.ge.f32.partialorder %v450, 0.0
      %vm488 = vcmp.ge.f32.partialorder %v452, 0.0
      %vm489 = vcmp.ge.f32.partialorder %v455, 0.0
      %vm490 = vcmp.ge.f32.partialorder %v457, 0.0
      %v491 = vmul.f32 %v380, 0.2
      %v492 = vmul.f32 %v382, 0.2
      %v493 = vmul.f32 %v385, 0.2
      %v494 = vmul.f32 %v387, 0.2
      %v495 = vmul.f32 %v390, 0.2
      %v496 = vmul.f32 %v392, 0.2
      %v497 = vmul.f32 %v395, 0.2
      %v498 = vmul.f32 %v397, 0.2
      %v499 = vmul.f32 %v400, 0.2
      %v500 = vmul.f32 %v402, 0.2
      %v501 = vmul.f32 %v405, 0.2
      %v502 = vmul.f32 %v407, 0.2
      %v503 = vmul.f32 %v410, 0.2
      %v504 = vmul.f32 %v412, 0.2
      %v505 = vmul.f32 %v415, 0.2
      %v506 = vmul.f32 %v417, 0.2
      %v507 = vmul.f32 %v420, 0.2
      %v508 = vmul.f32 %v422, 0.2
      %v509 = vmul.f32 %v425, 0.2
      %v510 = vmul.f32 %v427, 0.2
      %v511 = vmul.f32 %v430, 0.2
      %v512 = vmul.f32 %v432, 0.2
      %v513 = vmul.f32 %v435, 0.2
      %v514 = vmul.f32 %v437, 0.2
      %v515 = vmul.f32 %v440, 0.2
      %v516 = vmul.f32 %v442, 0.2
      %v517 = vmul.f32 %v445, 0.2
      %v518 = vmul.f32 %v447, 0.2
      %v519 = vmul.f32 %v450, 0.2
      %v520 = vmul.f32 %v452, 0.2
      %v521 = vmul.f32 %v455, 0.2
      %v522 = vmul.f32 %v457, 0.2
      %v523 = vsel %vm459, %v380, %v491
      %v524 = vsel %vm460, %v382, %v492
      %v525 = vsel %vm461, %v385, %v493
      %v526 = vsel %vm462, %v387, %v494
      %v527 = vsel %vm463, %v390, %v495
      %v528 = vsel %vm464, %v392, %v496
      %v529 = vsel %vm465, %v395, %v497
      %v530 = vsel %vm466, %v397, %v498
      %v531 = vsel %vm467, %v400, %v499
      %v532 = vsel %vm468, %v402, %v500
      %v533 = vsel %vm469, %v405, %v501
      %v534 = vsel %vm470, %v407, %v502
      %v535 = vsel %vm471, %v410, %v503
      %v536 = vsel %vm472, %v412, %v504
      %v537 = vsel %vm473, %v415, %v505
      %v538 = vsel %vm474, %v417, %v506
      %v539 = vsel %vm475, %v420, %v507
      %v540 = vsel %vm476, %v422, %v508
      %v541 = vsel %vm477, %v425, %v509
      %v542 = vsel %vm478, %v427, %v510
      %v543 = vsel %vm479, %v430, %v511
      %v544 = vsel %vm480, %v432, %v512
      %v545 = vsel %vm481, %v435, %v513
      %v546 = vsel %vm482, %v437, %v514
      %v547 = vsel %vm483, %v440, %v515
      %v548 = vsel %vm484, %v442, %v516
      %v549 = vsel %vm485, %v445, %v517
      %v550 = vsel %vm486, %v447, %v518
      %v551 = vsel %vm487, %v450, %v519
      %v552 = vsel %vm488, %v452, %v520
      %v553 = vsel %vm489, %v455, %v521
      %v554 = vsel %vm490, %v457, %v522
      %v555 = vpack.c.bf16 %v523, %v523
      %v556 = vpack.c.bf16 %v524, %v524
      %v557 = vpack.c.bf16 %v525, %v525
      %v558 = vpack.c.bf16 %v526, %v526
      %v559 = vpack.c.bf16 %v527, %v527
      %v560 = vpack.c.bf16 %v528, %v528
      %v561 = vpack.c.bf16 %v529, %v529
      %v562 = vpack.c.bf16 %v530, %v530
      %v563 = vpack.c.bf16 %v531, %v531
      %v564 = vpack.c.bf16 %v532, %v532
      %v565 = vpack.c.bf16 %v533, %v533
      %v566 = vpack.c.bf16 %v534, %v534
      %v567 = vpack.c.bf16 %v535, %v535
      %v568 = vpack.c.bf16 %v536, %v536
      %v569 = vpack.c.bf16 %v537, %v537
      %v570 = vpack.c.bf16 %v538, %v538
      %v571 = vpack.c.bf16 %v539, %v539
      %v572 = vpack.c.bf16 %v540, %v540
      %v573 = vpack.c.bf16 %v541, %v541
      %v574 = vpack.c.bf16 %v542, %v542
      %v575 = vpack.c.bf16 %v543, %v543
      %v576 = vpack.c.bf16 %v544, %v544
      %v577 = vpack.c.bf16 %v545, %v545
      %v578 = vpack.c.bf16 %v546, %v546
      %v579 = vpack.c.bf16 %v547, %v547
      %v580 = vpack.c.bf16 %v548, %v548
      %v581 = vpack.c.bf16 %v549, %v549
      %v582 = vpack.c.bf16 %v550, %v550
      %v583 = vpack.c.bf16 %v551, %v551
      %v584 = vpack.c.bf16 %v552, %v552
      %v585 = vpack.c.bf16 %v553, %v553
      %v586 = vpack.c.bf16 %v554, %v554
      %587 = vst [vmem:[%s172] sm:$0xf] %v555
      %588 = vst [vmem:[%s172 + $0x4] sm:$0xf] %v556
      %589 = vst [vmem:[%s172 + $0x8] sm:$0xf] %v557
      %590 = vst [vmem:[%s172 + $0xc] sm:$0xf] %v558
      %591 = vst [vmem:[%s172 + $0x10] sm:$0xf] %v559
      %592 = vst [vmem:[%s172 + $0x14] sm:$0xf] %v560
      %593 = vst [vmem:[%s172 + $0x18] sm:$0xf] %v561
      %594 = vst [vmem:[%s172 + $0x1c] sm:$0xf] %v562
      %595 = vst [vmem:[%s172 + $0x20] sm:$0xf] %v563
      %596 = vst [vmem:[%s172 + $0x24] sm:$0xf] %v564
      %597 = vst [vmem:[%s172 + $0x28] sm:$0xf] %v565
      %598 = vst [vmem:[%s172 + $0x2c] sm:$0xf] %v566
      %599 = vst [vmem:[%s172 + $0x30] sm:$0xf] %v567
      %600 = vst [vmem:[%s172 + $0x34] sm:$0xf] %v568
      %601 = vst [vmem:[%s172 + $0x38] sm:$0xf] %v569
      %602 = vst [vmem:[%s172 + $0x3c] sm:$0xf] %v570
      %603 = vst [vmem:[%s172 + $0x40] sm:$0xf] %v571
      %604 = vst [vmem:[%s172 + $0x44] sm:$0xf] %v572
      %605 = vst [vmem:[%s172 + $0x48] sm:$0xf] %v573
      %606 = vst [vmem:[%s172 + $0x4c] sm:$0xf] %v574
      %607 = vst [vmem:[%s172 + $0x50] sm:$0xf] %v575
      %608 = vst [vmem:[%s172 + $0x54] sm:$0xf] %v576
      %609 = vst [vmem:[%s172 + $0x58] sm:$0xf] %v577
      %610 = vst [vmem:[%s172 + $0x5c] sm:$0xf] %v578
      %611 = vst [vmem:[%s172 + $0x60] sm:$0xf] %v579
      %612 = vst [vmem:[%s172 + $0x64] sm:$0xf] %v580
      %613 = vst [vmem:[%s172 + $0x68] sm:$0xf] %v581
      %614 = vst [vmem:[%s172 + $0x6c] sm:$0xf] %v582
      %615 = vst [vmem:[%s172 + $0x70] sm:$0xf] %v583
      %616 = vst [vmem:[%s172 + $0x74] sm:$0xf] %v584
      %617 = vst [vmem:[%s172 + $0x78] sm:$0xf] %v585
      %618 = vst [vmem:[%s172 + $0x7c] sm:$0xf] %v586
      %s619 = smul.u32 32, %s14
      %p620 = scmp.lt.s32.totalorder %s619, 63
      %s621 = scalar_select %p620, %s619, 63
      %s622 = smul.addr %s621, 4
      %s623 = scalar_lea.vmem %s3, %s622
      // Predicated region
      $region33: #{_lambda_.8} parent=31 // pred_check
        %p624 = pneg %p100
      $region34: #{_lambda_.8} parent=31 // pred_check_branch
        %626 = sbr.rel (%p624) target = $region36
      $region35: #{_lambda_.8} parent=31 // pred_region
        %s627 = smul.u32 32, %s14
      $region36: #{_lambda_.8} parent=31 // pred_fallthru
        _
    $region32: #{_lambda_.8} parent=5 // pred_fallthru
      _
    %p628 = scmp.le.s32.totalorder 2, %s9
    // Predicated region
    $region37: #{_lambda_.8} parent=5 // pred_check
      %p629 = pneg %p628
    $region38: #{_lambda_.8} parent=5 // pred_check_branch
      %631 = sbr.rel (%p629) target = $region40
    $region39: #{_lambda_.8} parent=5 // pred_region
      %s632 = ssub.s32 %s9, 2
      // Predicated region
      $region41: #{_lambda_.8} parent=39 // pred_check
        %p633 = pneg %p106
      $region42: #{_lambda_.8} parent=39 // pred_check_branch
        %635 = sbr.rel (%p633) target = $region44
      $region43: #{_lambda_.8} parent=39 // pred_region
        %s636 = smul.u32 32, %s15
        %p637 = scmp.lt.s32.totalorder %s636, 63
        %s638 = scalar_select %p637, %s636, 63
        %s639 = smul.addr %s638, 4
        %s640 = scalar_lea.vmem %s3, %s639
      $region44: #{_lambda_.8} parent=39 // pred_fallthru
        _
    $region40: #{_lambda_.8} parent=5 // pred_fallthru
      _
  $region6: #{_lambda_.8} parent=0 // loop_footer
    %s13 = sadd.s32 1, %s9
  $region7: #{_lambda_.8} parent=0 // loop_footer_branch
    %8 = sbr.rel target = $region3
  $region8: #{_lambda_.8} parent=0 // loop_exit
    _

// kernel: _lambda_.9
$region0: #{_lambda_.9}
  #allocation0 [shape = 'u32[]', space=smem, size = 0x4, offset = 0x4, fixed_abs, tag = 'smem constant byte address 0x4 - core index']
  #allocation1 [shape = 'u32[72,128]{1,0:T(1,128)}', space=vmem, size = 0x9000, scoped, tag = 'internal scratch']
  %s0 = inlined_call_operand.vmem [shape: bf16[128,128], index: 0, kind: input, shape index: {}]
  %s1 = inlined_call_operand.vmem [shape: bf16[128,128], index: 1, kind: input, shape index: {}]
  %s2 = inlined_call_operand.vmem [shape: bf16[128,128], index: 2, kind: output, shape index: {0}]
  %s3 = inlined_call_operand.vmem [shape: f32[2,2,128], index: 3, kind: output, shape index: {1}]
  %4 = xla_tuple %s2, %s3
  %s5 = sld [smem:[#allocation0]]
  $region49: #{_lambda_.9} parent=0
    _
  %s7 = ssub.s32 1, %s5
  %s8 = scalar_select 0, %s7, %s5
  loop: start=0, step=1, limit=4
  $region2: #{_lambda_.9} parent=0 // loop_pre_header
    _
  $region3: #{_lambda_.9} parent=0 // loop_header
    %s10 = sphi 0, %s14
    %p11 = scmp.ge.s32.totalorder %s10, 4
    %s20 = sphi 0, %s22
    %s23 = sphi 0, %s20
    %s24 = sphi 0, %s23
    %s40 = sphi 0, %s24
    %s44 = sphi 0, %s44
    %s46 = sphi 0, %s44
    %s47 = sphi 0, %s46
    %s61 = sphi 0, %s47
    %s67 = sphi 0, %s69
    %s70 = sphi 0, %s67
    %s71 = sphi 0, %s70
    %s87 = sphi 0, %s71
    %s93 = sphi 0, %s95
    %s96 = sphi 0, %s93
    %s97 = sphi 0, %s96
    %s113 = sphi 0, %s97
  $region4: #{_lambda_.9} parent=0 // loop_header_branch
    %13 = sbr.rel (%p11) target = $region8
  $region5: #{_lambda_.9} parent=0 // loop_body
    %s15 = ssub.s32 %s10, 1
    %s16 = ssub.s32 %s10, 2
    %s17 = sadd.s32 %s10, 1
    %s18 = ssub.s32 %s10, %s17
    %p19 = scmp.eq.s32.totalorder %s18, 0
    %s21 = sadd.s32 %s20, 1
    %s22 = scalar_select %p19, %s20, %s21
    %p25 = pneg %p19
    %p26 = scmp.eq.s32.totalorder %s10, 1
    %p27 = por %p25, %p26
    %p28 = scmp.ne.s32.totalorder %s20, %s23
    %p29 = scmp.eq.s32.totalorder %s10, 0
    %p30 = por %p28, %p29
    %p31 = scmp.ne.s32.totalorder %s20, %s23
    %p32 = scmp.eq.s32.totalorder %s15, 1
    %p33 = por %p31, %p32
    %p34 = scmp.ne.s32.totalorder %s23, %s24
    %p35 = scmp.eq.s32.totalorder %s15, 0
    %p36 = por %p34, %p35
    %p37 = scmp.ne.s32.totalorder %s23, %s24
    %p38 = scmp.eq.s32.totalorder %s16, 1
    %p39 = por %p37, %p38
    %p41 = scmp.ne.s32.totalorder %s24, %s40
    %p42 = scmp.eq.s32.totalorder %s16, 0
    %p43 = por %p41, %p42
    %s45 = sadd.s32 %s44, 1
    %p48 = scmp.eq.s32.totalorder %s10, 1
    %p49 = scmp.ne.s32.totalorder %s44, %s46
    %p50 = scmp.eq.s32.totalorder %s10, 0
    %p51 = por %p49, %p50
    %p52 = scmp.ne.s32.totalorder %s44, %s46
    %p53 = scmp.eq.s32.totalorder %s15, 1
    %p54 = por %p52, %p53
    %p55 = scmp.ne.s32.totalorder %s46, %s47
    %p56 = scmp.eq.s32.totalorder %s15, 0
    %p57 = por %p55, %p56
    %p58 = scmp.ne.s32.totalorder %s46, %s47
    %p59 = scmp.eq.s32.totalorder %s16, 1
    %p60 = por %p58, %p59
    %p62 = scmp.ne.s32.totalorder %s47, %s61
    %p63 = scmp.eq.s32.totalorder %s16, 0
    %p64 = por %p62, %p63
    %s65 = ssub.s32 %s10, %s17
    %p66 = scmp.eq.s32.totalorder %s65, 0
    %s68 = sadd.s32 %s67, 1
    %s69 = scalar_select %p66, %s67, %s68
    %p72 = pneg %p66
    %p73 = scmp.eq.s32.totalorder %s10, 1
    %p74 = por %p72, %p73
    %p75 = scmp.ne.s32.totalorder %s67, %s70
    %p76 = scmp.eq.s32.totalorder %s10, 0
    %p77 = por %p75, %p76
    %p78 = scmp.ne.s32.totalorder %s67, %s70
    %p79 = scmp.eq.s32.totalorder %s15, 1
    %p80 = por %p78, %p79
    %p81 = scmp.ne.s32.totalorder %s70, %s71
    %p82 = scmp.eq.s32.totalorder %s15, 0
    %p83 = por %p81, %p82
    %p84 = scmp.ne.s32.totalorder %s70, %s71
    %p85 = scmp.eq.s32.totalorder %s16, 1
    %p86 = por %p84, %p85
    %p88 = scmp.ne.s32.totalorder %s71, %s87
    %p89 = scmp.eq.s32.totalorder %s16, 0
    %p90 = por %p88, %p89
    %s91 = ssub.s32 %s10, %s17
    %p92 = scmp.eq.s32.totalorder %s91, 0
    %s94 = sadd.s32 %s93, 1
    %s95 = scalar_select %p92, %s93, %s94
    %p98 = pneg %p92
    %p99 = scmp.eq.s32.totalorder %s10, 1
    %p100 = por %p98, %p99
    %p101 = scmp.ne.s32.totalorder %s93, %s96
    %p102 = scmp.eq.s32.totalorder %s10, 0
    %p103 = por %p101, %p102
    %p104 = scmp.ne.s32.totalorder %s93, %s96
    %p105 = scmp.eq.s32.totalorder %s15, 1
    %p106 = por %p104, %p105
    %p107 = scmp.ne.s32.totalorder %s96, %s97
    %p108 = scmp.eq.s32.totalorder %s15, 0
    %p109 = por %p107, %p108
    %p110 = scmp.ne.s32.totalorder %s96, %s97
    %p111 = scmp.eq.s32.totalorder %s16, 1
    %p112 = por %p110, %p111
    %p114 = scmp.ne.s32.totalorder %s97, %s113
    %p115 = scmp.eq.s32.totalorder %s16, 0
    %p116 = por %p114, %p115
    %p117 = scmp.le.s32.totalorder 1, %s10
    %p118 = scmp.lt.s32.totalorder %s10, 3
    %p119 = pnand %p117, %p118
    %p120 = pneg %p119
    // Predicated region
    $region9: #{_lambda_.9} parent=5 // pred_check
      _
    $region10: #{_lambda_.9} parent=5 // pred_check_branch
      %122 = sbr.rel (%p119) target = $region12
    $region11: #{_lambda_.9} parent=5 // pred_region
      %s123 = ssub.s32 %s10, 1
      // Predicated region
      $region13: #{_lambda_.9} parent=11 // pred_check
        %p124 = pneg %p57
      $region14: #{_lambda_.9} parent=11 // pred_check_branch
        %126 = sbr.rel (%p124) target = $region16
      $region15: #{_lambda_.9} parent=11 // pred_region
        _
      $region16: #{_lambda_.9} parent=11 // pred_fallthru
        _
    $region12: #{_lambda_.9} parent=5 // pred_fallthru
      _
    %p127 = scmp.lt.s32.totalorder %s10, 2
    // Predicated region
    $region17: #{_lambda_.9} parent=5 // pred_check
      %p128 = pneg %p127
    $region18: #{_lambda_.9} parent=5 // pred_check_branch
      %130 = sbr.rel (%p128) target = $region20
    $region19: #{_lambda_.9} parent=5 // pred_region
      // Predicated region
      $region21: #{_lambda_.9} parent=19 // pred_check
        %p131 = pneg %p30
      $region22: #{_lambda_.9} parent=19 // pred_check_branch
        %133 = sbr.rel (%p131) target = $region24
      $region23: #{_lambda_.9} parent=19 // pred_region
        %s134 = smul.u32 8, %s10
        %p135 = scmp.lt.s32.totalorder %s134, 15
        %s136 = scalar_select %p135, %s134, 15
        %s137 = smul.addr %s136, 4
        %s138 = scalar_lea.vmem %s0, %s137
        %s139 = smul.u32 8, %s10
      $region24: #{_lambda_.9} parent=19 // pred_fallthru
        _
    $region20: #{_lambda_.9} parent=5 // pred_fallthru
      _
    %p140 = scmp.le.s32.totalorder 1, %s10
    %p141 = scmp.lt.s32.totalorder %s10, 3
    %p142 = pnand %p140, %p141
    %p143 = pneg %p142
    // Predicated region
    $region25: #{_lambda_.9} parent=5 // pred_check
      _
    $region26: #{_lambda_.9} parent=5 // pred_check_branch
      %145 = sbr.rel (%p142) target = $region28
    $region27: #{_lambda_.9} parent=5 // pred_region
      %s146 = ssub.s32 %s10, 1
      %s147 = smul.u32 8, %s15
      %p148 = scmp.lt.s32.totalorder %s147, 15
      %s149 = scalar_select %p148, %s147, 15
      %s150 = smul.addr %s149, 4
      %s151 = scalar_lea.vmem %s0, %s150
      %p152 = pneg %p36
      %p153 = pneg %p33
      %p154 = pneg %p57
      %p155 = pneg %p54
      %p156 = pneg %p83
      %p157 = pneg %p80
      %s158 = smul.u32 8, %s15
      %p159 = scmp.lt.s32.totalorder %s158, 15
      %s160 = scalar_select %p159, %s158, 15
      %s161 = smul.addr %s160, 4
      %s162 = scalar_lea.vmem %s2, %s161
      %p163 = pneg %p109
      %p164 = pneg %p106
      %p165 = scmp.lt.s32.totalorder %s15, 1
      %s166 = scalar_select %p165, %s15, 1
      %s167 = smul.addr %s166, 2
      %s168 = scalar_lea.vmem %s3, %s167
      %s169 = smul.u32 8, %s15
      %p170 = scmp.lt.s32.totalorder %s169, 15
      %s171 = scalar_select %p170, %s169, 15
      %s172 = smul.addr %s171, 4
      %s173 = scalar_lea.vmem %s0, %s172
      %s174 = smul.u32 8, %s15
      %s175 = smul.u32 8, %s15
      %p176 = scmp.lt.s32.totalorder %s175, 15
      %s177 = scalar_select %p176, %s175, 15
      %s178 = smul.addr %s177, 4
      %s179 = scalar_lea.vmem %s2, %s178
      %s180 = smul.u32 8, %s15
      %p181 = scmp.lt.s32.totalorder %s15, 1
      %s182 = scalar_select %p181, %s15, 1
      %s183 = smul.addr %s182, 2
      %s184 = scalar_lea.vmem %s3, %s183
      %v185 = vld [vmem:[%s173] sm:$0xf]
      %v186 = vld [vmem:[%s173 + $0x4] sm:$0xf]
      %v187 = vld [vmem:[%s173 + $0x8] sm:$0xf]
      %v188 = vld [vmem:[%s173 + $0xc] sm:$0xf]
      %v189 = vld [vmem:[%s173 + $0x10] sm:$0xf]
      %v190 = vld [vmem:[%s173 + $0x14] sm:$0xf]
      %v191 = vld [vmem:[%s173 + $0x18] sm:$0xf]
      %v192 = vld [vmem:[%s173 + $0x1c] sm:$0xf]
      %v193 = vld [vmem:[%s1] sm:$0xf]
      %v194 = vld [vmem:[%s1 + $0x4] sm:$0xf]
      %v195 = vld [vmem:[%s1 + $0x8] sm:$0xf]
      %v196 = vld [vmem:[%s1 + $0xc] sm:$0xf]
      %v197 = vld [vmem:[%s1 + $0x10] sm:$0xf]
      %v198 = vld [vmem:[%s1 + $0x14] sm:$0xf]
      %v199 = vld [vmem:[%s1 + $0x18] sm:$0xf]
      %v200 = vld [vmem:[%s1 + $0x1c] sm:$0xf]
      %v201 = vld [vmem:[%s1 + $0x20] sm:$0xf]
      %v202 = vld [vmem:[%s1 + $0x24] sm:$0xf]
      %v203 = vld [vmem:[%s1 + $0x28] sm:$0xf]
      %v204 = vld [vmem:[%s1 + $0x2c] sm:$0xf]
      %v205 = vld [vmem:[%s1 + $0x30] sm:$0xf]
      %v206 = vld [vmem:[%s1 + $0x34] sm:$0xf]
      %v207 = vld [vmem:[%s1 + $0x38] sm:$0xf]
      %v208 = vld [vmem:[%s1 + $0x3c] sm:$0xf]
      %v217 = vunpack.c.l.b16 %v185
      %v218 = vunpack.c.l.b16 %v186
      %v219 = vunpack.c.l.b16 %v187
      %v220 = vunpack.c.l.b16 %v188
      %v221 = vunpack.c.l.b16 %v189
      %v222 = vunpack.c.l.b16 %v190
      %v223 = vunpack.c.l.b16 %v191
      %v224 = vunpack.c.l.b16 %v192
      %v225 = vpack.c.b16 %v218, %v217
      %v226 = vpack.c.b16 %v220, %v219
      %v227 = vpack.c.b16 %v222, %v221
      %v228 = vpack.c.b16 %v224, %v223
      %v249 = vunpack.c.l.b16 %v193
      %v250 = vunpack.c.l.b16 %v194
      %v251 = vunpack.c.l.b16 %v195
      %v252 = vunpack.c.l.b16 %v196
      %v253 = vunpack.c.l.b16 %v197
      %v254 = vunpack.c.l.b16 %v198
      %v255 = vunpack.c.l.b16 %v199
      %v256 = vunpack.c.l.b16 %v200
      %v257 = vunpack.c.l.b16 %v201
      %v258 = vunpack.c.l.b16 %v202
      %v259 = vunpack.c.l.b16 %v203
      %v260 = vunpack.c.l.b16 %v204
      %v261 = vunpack.c.l.b16 %v205
      %v262 = vunpack.c.l.b16 %v206
      %v263 = vunpack.c.l.b16 %v207
      %v264 = vunpack.c.l.b16 %v208
      %v265 = vpack.c.b16 %v250, %v249
      %v266 = vpack.c.b16 %v252, %v251
      %v267 = vpack.c.b16 %v254, %v253
      %v268 = vpack.c.b16 %v256, %v255
      %v269 = vpack.c.b16 %v258, %v257
      %v270 = vpack.c.b16 %v260, %v259
      %v271 = vpack.c.b16 %v262, %v261
      %v272 = vpack.c.b16 %v264, %v263
      %281 = vmatpush.bf16.msra.mxu0 %v272
      %282 = vmatpush.bf16.msra.mxu0 %v271
      %283 = vmatpush.bf16.msra.mxu0 %v270
      %284 = vmatpush.bf16.msra.mxu0 %v269
      %285 = vmatpush.bf16.msra.mxu0 %v268
      %286 = vmatpush.bf16.msra.mxu0 %v267
      %287 = vmatpush.bf16.msra.mxu0 %v266
      %288 = vmatpush.bf16.msra.mxu0 %v265
      %289 = vmatmul.bf16.gmra.mxu0 %v225
      %v290 = vpop.f32.mrf.mxu0
      %v291 = vadd.f32 0.0, %v290
      %v292 = vpop.f32.mrf.mxu0
      %v293 = vadd.f32 0.0, %v292
      %294 = vmatmul.bf16.gmra.mxu0 %v226
      %v295 = vpop.f32.mrf.mxu0
      %v296 = vadd.f32 0.0, %v295
      %v297 = vpop.f32.mrf.mxu0
      %v298 = vadd.f32 0.0, %v297
      %299 = vmatmul.bf16.gmra.mxu0 %v227
      %v300 = vpop.f32.mrf.mxu0
      %v301 = vadd.f32 0.0, %v300
      %v302 = vpop.f32.mrf.mxu0
      %v303 = vadd.f32 0.0, %v302
      %304 = vmatmul.bf16.gmra.mxu0 %v228
      %v305 = vpop.f32.mrf.mxu0
      %v306 = vadd.f32 0.0, %v305
      %v307 = vpop.f32.mrf.mxu0
      %v308 = vadd.f32 0.0, %v307
      %309 = vdwg.mxu0
      %v310 = vadd.f32 %v291, %v293
      %v311 = vadd.f32 %v310, %v296
      %v312 = vadd.f32 %v311, %v298
      %v313 = vadd.f32 %v312, %v301
      %v314 = vadd.f32 %v313, %v303
      %v315 = vadd.f32 %v314, %v306
      %v316 = vadd.f32 %v315, %v308
      %v317 = vrot.slane %v316, 4
      %v318 = vadd.f32 %v316, %v317
      %v319 = vrot.slane %v318, 2
      %v320 = vadd.f32 %v318, %v319
      %v321 = vrot.slane %v320, 1
      %v322 = vadd.f32 %v320, %v321
      %v323 = vmul.f32 %v291, %v291
      %v324 = vmul.f32 %v293, %v293
      %v325 = vmul.f32 %v296, %v296
      %v326 = vmul.f32 %v298, %v298
      %v327 = vmul.f32 %v301, %v301
      %v328 = vmul.f32 %v303, %v303
      %v329 = vmul.f32 %v306, %v306
      %v330 = vmul.f32 %v308, %v308
      %v331 = vadd.f32 %v323, %v324
      %v332 = vadd.f32 %v331, %v325
      %v333 = vadd.f32 %v332, %v326
      %v334 = vadd.f32 %v333, %v327
      %v335 = vadd.f32 %v334, %v328
      %v336 = vadd.f32 %v335, %v329
      %v337 = vadd.f32 %v336, %v330
      %v338 = vrot.slane %v337, 4
      %v339 = vadd.f32 %v337, %v338
      %v340 = vrot.slane %v339, 2
      %v341 = vadd.f32 %v339, %v340
      %v342 = vrot.slane %v341, 1
      %v343 = vadd.f32 %v341, %v342
      %vm344 = vcmask 1040384
      %v345 = vsel %vm344, %v322, %v343
      %346 = vst [vmem:[%s184] sm:$0x3] %v345
      %v347 = vpack.c.bf16 %v291, %v291
      %v348 = vpack.c.bf16 %v293, %v293
      %v349 = vpack.c.bf16 %v296, %v296
      %v350 = vpack.c.bf16 %v298, %v298
      %v351 = vpack.c.bf16 %v301, %v301
      %v352 = vpack.c.bf16 %v303, %v303
      %v353 = vpack.c.bf16 %v306, %v306
      %v354 = vpack.c.bf16 %v308, %v308
      %355 = vst [vmem:[%s179] sm:$0xf] %v347
      %356 = vst [vmem:[%s179 + $0x4] sm:$0xf] %v348
      %357 = vst [vmem:[%s179 + $0x8] sm:$0xf] %v349
      %358 = vst [vmem:[%s179 + $0xc] sm:$0xf] %v350
      %359 = vst [vmem:[%s179 + $0x10] sm:$0xf] %v351
      %360 = vst [vmem:[%s179 + $0x14] sm:$0xf] %v352
      %361 = vst [vmem:[%s179 + $0x18] sm:$0xf] %v353
      %362 = vst [vmem:[%s179 + $0x1c] sm:$0xf] %v354
      %s363 = smul.u32 8, %s15
      %p364 = scmp.lt.s32.totalorder %s363, 15
      %s365 = scalar_select %p364, %s363, 15
      %s366 = smul.addr %s365, 4
      %s367 = scalar_lea.vmem %s2, %s366
      %p368 = scmp.lt.s32.totalorder %s15, 1
      %s369 = scalar_select %p368, %s15, 1
      %s370 = smul.addr %s369, 2
      %s371 = scalar_lea.vmem %s3, %s370
      // Predicated region
      $region29: #{_lambda_.9} parent=27 // pred_check
        %p372 = pneg %p80
      $region30: #{_lambda_.9} parent=27 // pred_check_branch
        %374 = sbr.rel (%p372) target = $region32
      $region31: #{_lambda_.9} parent=27 // pred_region
        %s375 = smul.u32 8, %s15
      $region32: #{_lambda_.9} parent=27 // pred_fallthru
        _
      // Predicated region
      $region33: #{_lambda_.9} parent=27 // pred_check
        %p376 = pneg %p106
      $region34: #{_lambda_.9} parent=27 // pred_check_branch
        %378 = sbr.rel (%p376) target = $region36
      $region35: #{_lambda_.9} parent=27 // pred_region
        _
      $region36: #{_lambda_.9} parent=27 // pred_fallthru
        _
    $region28: #{_lambda_.9} parent=5 // pred_fallthru
      _
    %p379 = scmp.le.s32.totalorder 2, %s10
    // Predicated region
    $region37: #{_lambda_.9} parent=5 // pred_check
      %p380 = pneg %p379
    $region38: #{_lambda_.9} parent=5 // pred_check_branch
      %382 = sbr.rel (%p380) target = $region40
    $region39: #{_lambda_.9} parent=5 // pred_region
      %s383 = ssub.s32 %s10, 2
      // Predicated region
      $region41: #{_lambda_.9} parent=39 // pred_check
        %p384 = pneg %p86
      $region42: #{_lambda_.9} parent=39 // pred_check_branch
        %386 = sbr.rel (%p384) target = $region44
      $region43: #{_lambda_.9} parent=39 // pred_region
        %s387 = smul.u32 8, %s16
        %p388 = scmp.lt.s32.totalorder %s387, 15
        %s389 = scalar_select %p388, %s387, 15
        %s390 = smul.addr %s389, 4
        %s391 = scalar_lea.vmem %s2, %s390
      $region44: #{_lambda_.9} parent=39 // pred_fallthru
        _
      // Predicated region
      $region45: #{_lambda_.9} parent=39 // pred_check
        %p392 = pneg %p112
      $region46: #{_lambda_.9} parent=39 // pred_check_branch
        %394 = sbr.rel (%p392) target = $region48
      $region47: #{_lambda_.9} parent=39 // pred_region
        %p395 = scmp.lt.s32.totalorder %s16, 1
        %s396 = scalar_select %p395, %s16, 1
        %s397 = smul.addr %s396, 2
        %s398 = scalar_lea.vmem %s3, %s397
      $region48: #{_lambda_.9} parent=39 // pred_fallthru
        _
    $region40: #{_lambda_.9} parent=5 // pred_fallthru
      _
  $region6: #{_lambda_.9} parent=0 // loop_footer
    %s14 = sadd.s32 1, %s10
  $region7: #{_lambda_.9} parent=0 // loop_footer_branch
    %9 = sbr.rel target = $region3
  $region8: #{_lambda_.9} parent=0 // loop_exit
    _

// kernel: _lambda_.10
$region0: #{_lambda_.10}
  #allocation0 [shape = 'u32[]', space=smem, size = 0x4, offset = 0x4, fixed_abs, tag = 'smem constant byte address 0x4 - core index']
  #allocation1 [shape = 'u32[72,128]{1,0:T(1,128)}', space=vmem, size = 0x9000, scoped, tag = 'internal scratch']
  %s0 = inlined_call_operand.vmem [shape: bf16[128,128], index: 0, kind: input, shape index: {}]
  %s1 = inlined_call_operand.vmem [shape: f32[1,128], index: 1, kind: input, shape index: {}]
  %s2 = inlined_call_operand.vmem [shape: f32[1,128], index: 2, kind: input, shape index: {}]
  %s3 = inlined_call_operand.vmem [shape: bf16[128,128], index: 3, kind: output, shape index: {}]
  %s4 = sld [smem:[#allocation0]]
  $region45: #{_lambda_.10} parent=0
    _
  %s6 = ssub.s32 1, %s4
  %s7 = scalar_select 0, %s6, %s4
  loop: start=0, step=1, limit=4
  $region2: #{_lambda_.10} parent=0 // loop_pre_header
    _
  $region3: #{_lambda_.10} parent=0 // loop_header
    %s9 = sphi 0, %s13
    %p10 = scmp.ge.s32.totalorder %s9, 4
    %s19 = sphi 0, %s21
    %s22 = sphi 0, %s19
    %s23 = sphi 0, %s22
    %s39 = sphi 0, %s23
    %s43 = sphi 0, %s43
    %s45 = sphi 0, %s43
    %s46 = sphi 0, %s45
    %s60 = sphi 0, %s46
    %s64 = sphi 0, %s64
    %s66 = sphi 0, %s64
    %s67 = sphi 0, %s66
    %s81 = sphi 0, %s67
    %s87 = sphi 0, %s89
    %s90 = sphi 0, %s87
    %s91 = sphi 0, %s90
    %s107 = sphi 0, %s91
  $region4: #{_lambda_.10} parent=0 // loop_header_branch
    %12 = sbr.rel (%p10) target = $region8
  $region5: #{_lambda_.10} parent=0 // loop_body
    %s14 = ssub.s32 %s9, 1
    %s15 = ssub.s32 %s9, 2
    %s16 = sadd.s32 %s9, 1
    %s17 = ssub.s32 %s9, %s16
    %p18 = scmp.eq.s32.totalorder %s17, 0
    %s20 = sadd.s32 %s19, 1
    %s21 = scalar_select %p18, %s19, %s20
    %p24 = pneg %p18
    %p25 = scmp.eq.s32.totalorder %s9, 1
    %p26 = por %p24, %p25
    %p27 = scmp.ne.s32.totalorder %s19, %s22
    %p28 = scmp.eq.s32.totalorder %s9, 0
    %p29 = por %p27, %p28
    %p30 = scmp.ne.s32.totalorder %s19, %s22
    %p31 = scmp.eq.s32.totalorder %s14, 1
    %p32 = por %p30, %p31
    %p33 = scmp.ne.s32.totalorder %s22, %s23
    %p34 = scmp.eq.s32.totalorder %s14, 0
    %p35 = por %p33, %p34
    %p36 = scmp.ne.s32.totalorder %s22, %s23
    %p37 = scmp.eq.s32.totalorder %s15, 1
    %p38 = por %p36, %p37
    %p40 = scmp.ne.s32.totalorder %s23, %s39
    %p41 = scmp.eq.s32.totalorder %s15, 0
    %p42 = por %p40, %p41
    %s44 = sadd.s32 %s43, 1
    %p47 = scmp.eq.s32.totalorder %s9, 1
    %p48 = scmp.ne.s32.totalorder %s43, %s45
    %p49 = scmp.eq.s32.totalorder %s9, 0
    %p50 = por %p48, %p49
    %p51 = scmp.ne.s32.totalorder %s43, %s45
    %p52 = scmp.eq.s32.totalorder %s14, 1
    %p53 = por %p51, %p52
    %p54 = scmp.ne.s32.totalorder %s45, %s46
    %p55 = scmp.eq.s32.totalorder %s14, 0
    %p56 = por %p54, %p55
    %p57 = scmp.ne.s32.totalorder %s45, %s46
    %p58 = scmp.eq.s32.totalorder %s15, 1
    %p59 = por %p57, %p58
    %p61 = scmp.ne.s32.totalorder %s46, %s60
    %p62 = scmp.eq.s32.totalorder %s15, 0
    %p63 = por %p61, %p62
    %s65 = sadd.s32 %s64, 1
    %p68 = scmp.eq.s32.totalorder %s9, 1
    %p69 = scmp.ne.s32.totalorder %s64, %s66
    %p70 = scmp.eq.s32.totalorder %s9, 0
    %p71 = por %p69, %p70
    %p72 = scmp.ne.s32.totalorder %s64, %s66
    %p73 = scmp.eq.s32.totalorder %s14, 1
    %p74 = por %p72, %p73
    %p75 = scmp.ne.s32.totalorder %s66, %s67
    %p76 = scmp.eq.s32.totalorder %s14, 0
    %p77 = por %p75, %p76
    %p78 = scmp.ne.s32.totalorder %s66, %s67
    %p79 = scmp.eq.s32.totalorder %s15, 1
    %p80 = por %p78, %p79
    %p82 = scmp.ne.s32.totalorder %s67, %s81
    %p83 = scmp.eq.s32.totalorder %s15, 0
    %p84 = por %p82, %p83
    %s85 = ssub.s32 %s9, %s16
    %p86 = scmp.eq.s32.totalorder %s85, 0
    %s88 = sadd.s32 %s87, 1
    %s89 = scalar_select %p86, %s87, %s88
    %p92 = pneg %p86
    %p93 = scmp.eq.s32.totalorder %s9, 1
    %p94 = por %p92, %p93
    %p95 = scmp.ne.s32.totalorder %s87, %s90
    %p96 = scmp.eq.s32.totalorder %s9, 0
    %p97 = por %p95, %p96
    %p98 = scmp.ne.s32.totalorder %s87, %s90
    %p99 = scmp.eq.s32.totalorder %s14, 1
    %p100 = por %p98, %p99
    %p101 = scmp.ne.s32.totalorder %s90, %s91
    %p102 = scmp.eq.s32.totalorder %s14, 0
    %p103 = por %p101, %p102
    %p104 = scmp.ne.s32.totalorder %s90, %s91
    %p105 = scmp.eq.s32.totalorder %s15, 1
    %p106 = por %p104, %p105
    %p108 = scmp.ne.s32.totalorder %s91, %s107
    %p109 = scmp.eq.s32.totalorder %s15, 0
    %p110 = por %p108, %p109
    %p111 = scmp.le.s32.totalorder 1, %s9
    %p112 = scmp.lt.s32.totalorder %s9, 3
    %p113 = pnand %p111, %p112
    %p114 = pneg %p113
    // Predicated region
    $region9: #{_lambda_.10} parent=5 // pred_check
      _
    $region10: #{_lambda_.10} parent=5 // pred_check_branch
      %116 = sbr.rel (%p113) target = $region12
    $region11: #{_lambda_.10} parent=5 // pred_region
      %s117 = ssub.s32 %s9, 1
      // Predicated region
      $region13: #{_lambda_.10} parent=11 // pred_check
        %p118 = pneg %p56
      $region14: #{_lambda_.10} parent=11 // pred_check_branch
        %120 = sbr.rel (%p118) target = $region16
      $region15: #{_lambda_.10} parent=11 // pred_region
        _
      $region16: #{_lambda_.10} parent=11 // pred_fallthru
        _
      // Predicated region
      $region17: #{_lambda_.10} parent=11 // pred_check
        %p121 = pneg %p77
      $region18: #{_lambda_.10} parent=11 // pred_check_branch
        %123 = sbr.rel (%p121) target = $region20
      $region19: #{_lambda_.10} parent=11 // pred_region
        _
      $region20: #{_lambda_.10} parent=11 // pred_fallthru
        _
    $region12: #{_lambda_.10} parent=5 // pred_fallthru
      _
    %p124 = scmp.lt.s32.totalorder %s9, 2
    // Predicated region
    $region21: #{_lambda_.10} parent=5 // pred_check
      %p125 = pneg %p124
    $region22: #{_lambda_.10} parent=5 // pred_check_branch
      %127 = sbr.rel (%p125) target = $region24
    $region23: #{_lambda_.10} parent=5 // pred_region
      // Predicated region
      $region25: #{_lambda_.10} parent=23 // pred_check
        %p128 = pneg %p29
      $region26: #{_lambda_.10} parent=23 // pred_check_branch
        %130 = sbr.rel (%p128) target = $region28
      $region27: #{_lambda_.10} parent=23 // pred_region
        %s131 = smul.u32 8, %s9
        %p132 = scmp.lt.s32.totalorder %s131, 15
        %s133 = scalar_select %p132, %s131, 15
        %s134 = smul.addr %s133, 4
        %s135 = scalar_lea.vmem %s0, %s134
        %s136 = smul.u32 8, %s9
      $region28: #{_lambda_.10} parent=23 // pred_fallthru
        _
    $region24: #{_lambda_.10} parent=5 // pred_fallthru
      _
    %p137 = scmp.le.s32.totalorder 1, %s9
    %p138 = scmp.lt.s32.totalorder %s9, 3
    %p139 = pnand %p137, %p138
    %p140 = pneg %p139
    // Predicated region
    $region29: #{_lambda_.10} parent=5 // pred_check
      _
    $region30: #{_lambda_.10} parent=5 // pred_check_branch
      %142 = sbr.rel (%p139) target = $region32
    $region31: #{_lambda_.10} parent=5 // pred_region
      %s143 = ssub.s32 %s9, 1
      %s144 = smul.u32 8, %s14
      %p145 = scmp.lt.s32.totalorder %s144, 15
      %s146 = scalar_select %p145, %s144, 15
      %s147 = smul.addr %s146, 4
      %s148 = scalar_lea.vmem %s0, %s147
      %p149 = pneg %p35
      %p150 = pneg %p32
      %p151 = pneg %p56
      %p152 = pneg %p53
      %p153 = pneg %p77
      %p154 = pneg %p74
      %p155 = pneg %p103
      %p156 = pneg %p100
      %s157 = smul.u32 8, %s14
      %p158 = scmp.lt.s32.totalorder %s157, 15
      %s159 = scalar_select %p158, %s157, 15
      %s160 = smul.addr %s159, 4
      %s161 = scalar_lea.vmem %s3, %s160
      %s162 = smul.u32 8, %s14
      %p163 = scmp.lt.s32.totalorder %s162, 15
      %s164 = scalar_select %p163, %s162, 15
      %s165 = smul.addr %s164, 4
      %s166 = scalar_lea.vmem %s0, %s165
      %s167 = smul.u32 8, %s14
      %s168 = smul.u32 8, %s14
      %p169 = scmp.lt.s32.totalorder %s168, 15
      %s170 = scalar_select %p169, %s168, 15
      %s171 = smul.addr %s170, 4
      %s172 = scalar_lea.vmem %s3, %s171
      %s173 = smul.u32 8, %s14
      %v174 = vld [vmem:[%s166] sm:$0xf]
      %v175 = vld [vmem:[%s166 + $0x4] sm:$0xf]
      %v176 = vld [vmem:[%s166 + $0x8] sm:$0xf]
      %v177 = vld [vmem:[%s166 + $0xc] sm:$0xf]
      %v178 = vld [vmem:[%s166 + $0x10] sm:$0xf]
      %v179 = vld [vmem:[%s166 + $0x14] sm:$0xf]
      %v180 = vld [vmem:[%s166 + $0x18] sm:$0xf]
      %v181 = vld [vmem:[%s166 + $0x1c] sm:$0xf]
      %v182 = vunpack.c.l.bf16 %v174
      %v183 = vunpack.c.l.bf16 %v175
      %v184 = vunpack.c.l.bf16 %v176
      %v185 = vunpack.c.l.bf16 %v177
      %v186 = vunpack.c.l.bf16 %v178
      %v187 = vunpack.c.l.bf16 %v179
      %v188 = vunpack.c.l.bf16 %v180
      %v189 = vunpack.c.l.bf16 %v181
      %v190 = vld [vmem:[%s1] sm:$0x1]
      %v192 = vperm.slane %v190, 0
      %v194 = vmul.f32 %v182, %v192
      %v195 = vmul.f32 %v183, %v192
      %v196 = vmul.f32 %v184, %v192
      %v197 = vmul.f32 %v185, %v192
      %v198 = vmul.f32 %v186, %v192
      %v199 = vmul.f32 %v187, %v192
      %v200 = vmul.f32 %v188, %v192
      %v201 = vmul.f32 %v189, %v192
      %v202 = vld [vmem:[%s2] sm:$0x1]
      %v204 = vperm.slane %v202, 0
      %v206 = vadd.f32 %v194, %v204
      %v207 = vadd.f32 %v195, %v204
      %v208 = vadd.f32 %v196, %v204
      %v209 = vadd.f32 %v197, %v204
      %v210 = vadd.f32 %v198, %v204
      %v211 = vadd.f32 %v199, %v204
      %v212 = vadd.f32 %v200, %v204
      %v213 = vadd.f32 %v201, %v204
      %vm214 = vcmp.ge.f32.partialorder %v206, 0.0
      %vm215 = vcmp.ge.f32.partialorder %v207, 0.0
      %vm216 = vcmp.ge.f32.partialorder %v208, 0.0
      %vm217 = vcmp.ge.f32.partialorder %v209, 0.0
      %vm218 = vcmp.ge.f32.partialorder %v210, 0.0
      %vm219 = vcmp.ge.f32.partialorder %v211, 0.0
      %vm220 = vcmp.ge.f32.partialorder %v212, 0.0
      %vm221 = vcmp.ge.f32.partialorder %v213, 0.0
      %v222 = vmul.f32 %v206, 0.2
      %v223 = vmul.f32 %v207, 0.2
      %v224 = vmul.f32 %v208, 0.2
      %v225 = vmul.f32 %v209, 0.2
      %v226 = vmul.f32 %v210, 0.2
      %v227 = vmul.f32 %v211, 0.2
      %v228 = vmul.f32 %v212, 0.2
      %v229 = vmul.f32 %v213, 0.2
      %v230 = vsel %vm214, %v206, %v222
      %v231 = vsel %vm215, %v207, %v223
      %v232 = vsel %vm216, %v208, %v224
      %v233 = vsel %vm217, %v209, %v225
      %v234 = vsel %vm218, %v210, %v226
      %v235 = vsel %vm219, %v211, %v227
      %v236 = vsel %vm220, %v212, %v228
      %v237 = vsel %vm221, %v213, %v229
      %v238 = vpack.c.bf16 %v230, %v230
      %v239 = vpack.c.bf16 %v231, %v231
      %v240 = vpack.c.bf16 %v232, %v232
      %v241 = vpack.c.bf16 %v233, %v233
      %v242 = vpack.c.bf16 %v234, %v234
      %v243 = vpack.c.bf16 %v235, %v235
      %v244 = vpack.c.bf16 %v236, %v236
      %v245 = vpack.c.bf16 %v237, %v237
      %246 = vst [vmem:[%s172] sm:$0xf] %v238
      %247 = vst [vmem:[%s172 + $0x4] sm:$0xf] %v239
      %248 = vst [vmem:[%s172 + $0x8] sm:$0xf] %v240
      %249 = vst [vmem:[%s172 + $0xc] sm:$0xf] %v241
      %250 = vst [vmem:[%s172 + $0x10] sm:$0xf] %v242
      %251 = vst [vmem:[%s172 + $0x14] sm:$0xf] %v243
      %252 = vst [vmem:[%s172 + $0x18] sm:$0xf] %v244
      %253 = vst [vmem:[%s172 + $0x1c] sm:$0xf] %v245
      %s254 = smul.u32 8, %s14
      %p255 = scmp.lt.s32.totalorder %s254, 15
      %s256 = scalar_select %p255, %s254, 15
      %s257 = smul.addr %s256, 4
      %s258 = scalar_lea.vmem %s3, %s257
      // Predicated region
      $region33: #{_lambda_.10} parent=31 // pred_check
        %p259 = pneg %p100
      $region34: #{_lambda_.10} parent=31 // pred_check_branch
        %261 = sbr.rel (%p259) target = $region36
      $region35: #{_lambda_.10} parent=31 // pred_region
        %s262 = smul.u32 8, %s14
      $region36: #{_lambda_.10} parent=31 // pred_fallthru
        _
    $region32: #{_lambda_.10} parent=5 // pred_fallthru
      _
    %p263 = scmp.le.s32.totalorder 2, %s9
    // Predicated region
    $region37: #{_lambda_.10} parent=5 // pred_check
      %p264 = pneg %p263
    $region38: #{_lambda_.10} parent=5 // pred_check_branch
      %266 = sbr.rel (%p264) target = $region40
    $region39: #{_lambda_.10} parent=5 // pred_region
      %s267 = ssub.s32 %s9, 2
      // Predicated region
      $region41: #{_lambda_.10} parent=39 // pred_check
        %p268 = pneg %p106
      $region42: #{_lambda_.10} parent=39 // pred_check_branch
        %270 = sbr.rel (%p268) target = $region44
      $region43: #{_lambda_.10} parent=39 // pred_region
        %s271 = smul.u32 8, %s15
        %p272 = scmp.lt.s32.totalorder %s271, 15
        %s273 = scalar_select %p272, %s271, 15
        %s274 = smul.addr %s273, 4
        %s275 = scalar_lea.vmem %s3, %s274
      $region44: #{_lambda_.10} parent=39 // pred_fallthru
        _
    $region40: #{_lambda_.10} parent=5 // pred_fallthru
      _
  $region6: #{_lambda_.10} parent=0 // loop_footer
    %s13 = sadd.s32 1, %s9
  $region7: #{_lambda_.10} parent=0 // loop_footer_branch
    %8 = sbr.rel target = $region3
  $region8: #{_lambda_.10} parent=0 // loop_exit
    _

// kernel: _lambda_.12
$region0: #{_lambda_.12}
  #allocation0 [shape = 'u32[]', space=smem, size = 0x4, offset = 0x4, fixed_abs, tag = 'smem constant byte address 0x4 - core index']
  #allocation1 [shape = 'u32[72,128]{1,0:T(1,128)}', space=vmem, size = 0x9000, scoped, tag = 'internal scratch']
  %s0 = inlined_call_operand.vmem [shape: bf16[32,128], index: 0, kind: input, shape index: {}]
  %s1 = inlined_call_operand.vmem [shape: f32[1,128], index: 1, kind: input, shape index: {}]
  %s2 = inlined_call_operand.vmem [shape: f32[1,128], index: 2, kind: input, shape index: {}]
  %s3 = inlined_call_operand.vmem [shape: bf16[32,128], index: 3, kind: output, shape index: {}]
  %s4 = sld [smem:[#allocation0]]
  $region45: #{_lambda_.12} parent=0
    _
  %s6 = ssub.s32 1, %s4
  %s7 = scalar_select 0, %s6, %s4
  loop: start=0, step=1, limit=4
  $region2: #{_lambda_.12} parent=0 // loop_pre_header
    _
  $region3: #{_lambda_.12} parent=0 // loop_header
    %s9 = sphi 0, %s13
    %p10 = scmp.ge.s32.totalorder %s9, 4
    %s19 = sphi 0, %s21
    %s22 = sphi 0, %s19
    %s23 = sphi 0, %s22
    %s39 = sphi 0, %s23
    %s43 = sphi 0, %s43
    %s45 = sphi 0, %s43
    %s46 = sphi 0, %s45
    %s60 = sphi 0, %s46
    %s64 = sphi 0, %s64
    %s66 = sphi 0, %s64
    %s67 = sphi 0, %s66
    %s81 = sphi 0, %s67
    %s87 = sphi 0, %s89
    %s90 = sphi 0, %s87
    %s91 = sphi 0, %s90
    %s107 = sphi 0, %s91
  $region4: #{_lambda_.12} parent=0 // loop_header_branch
    %12 = sbr.rel (%p10) target = $region8
  $region5: #{_lambda_.12} parent=0 // loop_body
    %s14 = ssub.s32 %s9, 1
    %s15 = ssub.s32 %s9, 2
    %s16 = sadd.s32 %s9, 1
    %s17 = ssub.s32 %s9, %s16
    %p18 = scmp.eq.s32.totalorder %s17, 0
    %s20 = sadd.s32 %s19, 1
    %s21 = scalar_select %p18, %s19, %s20
    %p24 = pneg %p18
    %p25 = scmp.eq.s32.totalorder %s9, 1
    %p26 = por %p24, %p25
    %p27 = scmp.ne.s32.totalorder %s19, %s22
    %p28 = scmp.eq.s32.totalorder %s9, 0
    %p29 = por %p27, %p28
    %p30 = scmp.ne.s32.totalorder %s19, %s22
    %p31 = scmp.eq.s32.totalorder %s14, 1
    %p32 = por %p30, %p31
    %p33 = scmp.ne.s32.totalorder %s22, %s23
    %p34 = scmp.eq.s32.totalorder %s14, 0
    %p35 = por %p33, %p34
    %p36 = scmp.ne.s32.totalorder %s22, %s23
    %p37 = scmp.eq.s32.totalorder %s15, 1
    %p38 = por %p36, %p37
    %p40 = scmp.ne.s32.totalorder %s23, %s39
    %p41 = scmp.eq.s32.totalorder %s15, 0
    %p42 = por %p40, %p41
    %s44 = sadd.s32 %s43, 1
    %p47 = scmp.eq.s32.totalorder %s9, 1
    %p48 = scmp.ne.s32.totalorder %s43, %s45
    %p49 = scmp.eq.s32.totalorder %s9, 0
    %p50 = por %p48, %p49
    %p51 = scmp.ne.s32.totalorder %s43, %s45
    %p52 = scmp.eq.s32.totalorder %s14, 1
    %p53 = por %p51, %p52
    %p54 = scmp.ne.s32.totalorder %s45, %s46
    %p55 = scmp.eq.s32.totalorder %s14, 0
    %p56 = por %p54, %p55
    %p57 = scmp.ne.s32.totalorder %s45, %s46
    %p58 = scmp.eq.s32.totalorder %s15, 1
    %p59 = por %p57, %p58
    %p61 = scmp.ne.s32.totalorder %s46, %s60
    %p62 = scmp.eq.s32.totalorder %s15, 0
    %p63 = por %p61, %p62
    %s65 = sadd.s32 %s64, 1
    %p68 = scmp.eq.s32.totalorder %s9, 1
    %p69 = scmp.ne.s32.totalorder %s64, %s66
    %p70 = scmp.eq.s32.totalorder %s9, 0
    %p71 = por %p69, %p70
    %p72 = scmp.ne.s32.totalorder %s64, %s66
    %p73 = scmp.eq.s32.totalorder %s14, 1
    %p74 = por %p72, %p73
    %p75 = scmp.ne.s32.totalorder %s66, %s67
    %p76 = scmp.eq.s32.totalorder %s14, 0
    %p77 = por %p75, %p76
    %p78 = scmp.ne.s32.totalorder %s66, %s67
    %p79 = scmp.eq.s32.totalorder %s15, 1
    %p80 = por %p78, %p79
    %p82 = scmp.ne.s32.totalorder %s67, %s81
    %p83 = scmp.eq.s32.totalorder %s15, 0
    %p84 = por %p82, %p83
    %s85 = ssub.s32 %s9, %s16
    %p86 = scmp.eq.s32.totalorder %s85, 0
    %s88 = sadd.s32 %s87, 1
    %s89 = scalar_select %p86, %s87, %s88
    %p92 = pneg %p86
    %p93 = scmp.eq.s32.totalorder %s9, 1
    %p94 = por %p92, %p93
    %p95 = scmp.ne.s32.totalorder %s87, %s90
    %p96 = scmp.eq.s32.totalorder %s9, 0
    %p97 = por %p95, %p96
    %p98 = scmp.ne.s32.totalorder %s87, %s90
    %p99 = scmp.eq.s32.totalorder %s14, 1
    %p100 = por %p98, %p99
    %p101 = scmp.ne.s32.totalorder %s90, %s91
    %p102 = scmp.eq.s32.totalorder %s14, 0
    %p103 = por %p101, %p102
    %p104 = scmp.ne.s32.totalorder %s90, %s91
    %p105 = scmp.eq.s32.totalorder %s15, 1
    %p106 = por %p104, %p105
    %p108 = scmp.ne.s32.totalorder %s91, %s107
    %p109 = scmp.eq.s32.totalorder %s15, 0
    %p110 = por %p108, %p109
    %p111 = scmp.le.s32.totalorder 1, %s9
    %p112 = scmp.lt.s32.totalorder %s9, 3
    %p113 = pnand %p111, %p112
    %p114 = pneg %p113
    // Predicated region
    $region9: #{_lambda_.12} parent=5 // pred_check
      _
    $region10: #{_lambda_.12} parent=5 // pred_check_branch
      %116 = sbr.rel (%p113) target = $region12
    $region11: #{_lambda_.12} parent=5 // pred_region
      %s117 = ssub.s32 %s9, 1
      // Predicated region
      $region13: #{_lambda_.12} parent=11 // pred_check
        %p118 = pneg %p56
      $region14: #{_lambda_.12} parent=11 // pred_check_branch
        %120 = sbr.rel (%p118) target = $region16
      $region15: #{_lambda_.12} parent=11 // pred_region
        _
      $region16: #{_lambda_.12} parent=11 // pred_fallthru
        _
      // Predicated region
      $region17: #{_lambda_.12} parent=11 // pred_check
        %p121 = pneg %p77
      $region18: #{_lambda_.12} parent=11 // pred_check_branch
        %123 = sbr.rel (%p121) target = $region20
      $region19: #{_lambda_.12} parent=11 // pred_region
        _
      $region20: #{_lambda_.12} parent=11 // pred_fallthru
        _
    $region12: #{_lambda_.12} parent=5 // pred_fallthru
      _
    %p124 = scmp.lt.s32.totalorder %s9, 2
    // Predicated region
    $region21: #{_lambda_.12} parent=5 // pred_check
      %p125 = pneg %p124
    $region22: #{_lambda_.12} parent=5 // pred_check_branch
      %127 = sbr.rel (%p125) target = $region24
    $region23: #{_lambda_.12} parent=5 // pred_region
      // Predicated region
      $region25: #{_lambda_.12} parent=23 // pred_check
        %p128 = pneg %p29
      $region26: #{_lambda_.12} parent=23 // pred_check_branch
        %130 = sbr.rel (%p128) target = $region28
      $region27: #{_lambda_.12} parent=23 // pred_region
        %s131 = smul.u32 2, %s9
        %p132 = scmp.lt.s32.totalorder %s131, 3
        %s133 = scalar_select %p132, %s131, 3
        %s134 = smul.addr %s133, 4
        %s135 = scalar_lea.vmem %s0, %s134
        %s136 = smul.u32 2, %s9
      $region28: #{_lambda_.12} parent=23 // pred_fallthru
        _
    $region24: #{_lambda_.12} parent=5 // pred_fallthru
      _
    %p137 = scmp.le.s32.totalorder 1, %s9
    %p138 = scmp.lt.s32.totalorder %s9, 3
    %p139 = pnand %p137, %p138
    %p140 = pneg %p139
    // Predicated region
    $region29: #{_lambda_.12} parent=5 // pred_check
      _
    $region30: #{_lambda_.12} parent=5 // pred_check_branch
      %142 = sbr.rel (%p139) target = $region32
    $region31: #{_lambda_.12} parent=5 // pred_region
      %s143 = ssub.s32 %s9, 1
      %s144 = smul.u32 2, %s14
      %p145 = scmp.lt.s32.totalorder %s144, 3
      %s146 = scalar_select %p145, %s144, 3
      %s147 = smul.addr %s146, 4
      %s148 = scalar_lea.vmem %s0, %s147
      %p149 = pneg %p35
      %p150 = pneg %p32
      %p151 = pneg %p56
      %p152 = pneg %p53
      %p153 = pneg %p77
      %p154 = pneg %p74
      %p155 = pneg %p103
      %p156 = pneg %p100
      %s157 = smul.u32 2, %s14
      %p158 = scmp.lt.s32.totalorder %s157, 3
      %s159 = scalar_select %p158, %s157, 3
      %s160 = smul.addr %s159, 4
      %s161 = scalar_lea.vmem %s3, %s160
      %s162 = smul.u32 2, %s14
      %p163 = scmp.lt.s32.totalorder %s162, 3
      %s164 = scalar_select %p163, %s162, 3
      %s165 = smul.addr %s164, 4
      %s166 = scalar_lea.vmem %s0, %s165
      %s167 = smul.u32 2, %s14
      %s168 = smul.u32 2, %s14
      %p169 = scmp.lt.s32.totalorder %s168, 3
      %s170 = scalar_select %p169, %s168, 3
      %s171 = smul.addr %s170, 4
      %s172 = scalar_lea.vmem %s3, %s171
      %s173 = smul.u32 2, %s14
      %v174 = vld [vmem:[%s166] sm:$0xf]
      %v175 = vld [vmem:[%s166 + $0x4] sm:$0xf]
      %v176 = vunpack.c.l.bf16 %v174
      %v177 = vunpack.c.l.bf16 %v175
      %v178 = vld [vmem:[%s1] sm:$0x1]
      %v180 = vperm.slane %v178, 0
      %v182 = vmul.f32 %v176, %v180
      %v183 = vmul.f32 %v177, %v180
      %v184 = vld [vmem:[%s2] sm:$0x1]
      %v186 = vperm.slane %v184, 0
      %v188 = vadd.f32 %v182, %v186
      %v189 = vadd.f32 %v183, %v186
      %vm190 = vcmp.ge.f32.partialorder %v188, 0.0
      %vm191 = vcmp.ge.f32.partialorder %v189, 0.0
      %v192 = vmul.f32 %v188, 0.2
      %v193 = vmul.f32 %v189, 0.2
      %v194 = vsel %vm190, %v188, %v192
      %v195 = vsel %vm191, %v189, %v193
      %v196 = vpack.c.bf16 %v194, %v194
      %v197 = vpack.c.bf16 %v195, %v195
      %198 = vst [vmem:[%s172] sm:$0xf] %v196
      %199 = vst [vmem:[%s172 + $0x4] sm:$0xf] %v197
      %s200 = smul.u32 2, %s14
      %p201 = scmp.lt.s32.totalorder %s200, 3
      %s202 = scalar_select %p201, %s200, 3
      %s203 = smul.addr %s202, 4
      %s204 = scalar_lea.vmem %s3, %s203
      // Predicated region
      $region33: #{_lambda_.12} parent=31 // pred_check
        %p205 = pneg %p100
      $region34: #{_lambda_.12} parent=31 // pred_check_branch
        %207 = sbr.rel (%p205) target = $region36
      $region35: #{_lambda_.12} parent=31 // pred_region
        %s208 = smul.u32 2, %s14
      $region36: #{_lambda_.12} parent=31 // pred_fallthru
        _
    $region32: #{_lambda_.12} parent=5 // pred_fallthru
      _
    %p209 = scmp.le.s32.totalorder 2, %s9
    // Predicated region
    $region37: #{_lambda_.12} parent=5 // pred_check
      %p210 = pneg %p209
    $region38: #{_lambda_.12} parent=5 // pred_check_branch
      %212 = sbr.rel (%p210) target = $region40
    $region39: #{_lambda_.12} parent=5 // pred_region
      %s213 = ssub.s32 %s9, 2
      // Predicated region
      $region41: #{_lambda_.12} parent=39 // pred_check
        %p214 = pneg %p106
      $region42: #{_lambda_.12} parent=39 // pred_check_branch
        %216 = sbr.rel (%p214) target = $region44
      $region43: #{_lambda_.12} parent=39 // pred_region
        %s217 = smul.u32 2, %s15
        %p218 = scmp.lt.s32.totalorder %s217, 3
        %s219 = scalar_select %p218, %s217, 3
        %s220 = smul.addr %s219, 4
        %s221 = scalar_lea.vmem %s3, %s220
      $region44: #{_lambda_.12} parent=39 // pred_fallthru
        _
    $region40: #{_lambda_.12} parent=5 // pred_fallthru
      _
  $region6: #{_lambda_.12} parent=0 // loop_footer
    %s13 = sadd.s32 1, %s9
  $region7: #{_lambda_.12} parent=0 // loop_footer_branch
    %8 = sbr.rel target = $region3
  $region8: #{_lambda_.12} parent=0 // loop_exit
    _

// kernel: _lambda_.11
$region0: #{_lambda_.11}
  #allocation0 [shape = 'u32[]', space=smem, size = 0x4, offset = 0x4, fixed_abs, tag = 'smem constant byte address 0x4 - core index']
  #allocation1 [shape = 'u32[72,128]{1,0:T(1,128)}', space=vmem, size = 0x9000, scoped, tag = 'internal scratch']
  %s0 = inlined_call_operand.vmem [shape: bf16[32,256], index: 0, kind: input, shape index: {}]
  %s1 = inlined_call_operand.vmem [shape: bf16[256,128], index: 1, kind: input, shape index: {}]
  %s2 = inlined_call_operand.vmem [shape: bf16[32,128], index: 2, kind: output, shape index: {0}]
  %s3 = inlined_call_operand.vmem [shape: f32[2,2,128], index: 3, kind: output, shape index: {1}]
  %4 = xla_tuple %s2, %s3
  %s5 = sld [smem:[#allocation0]]
  $region49: #{_lambda_.11} parent=0
    _
  %s7 = ssub.s32 1, %s5
  %s8 = scalar_select 0, %s7, %s5
  loop: start=0, step=1, limit=4
  $region2: #{_lambda_.11} parent=0 // loop_pre_header
    _
  $region3: #{_lambda_.11} parent=0 // loop_header
    %s10 = sphi 0, %s14
    %p11 = scmp.ge.s32.totalorder %s10, 4
    %s20 = sphi 0, %s22
    %s23 = sphi 0, %s20
    %s24 = sphi 0, %s23
    %s40 = sphi 0, %s24
    %s44 = sphi 0, %s44
    %s46 = sphi 0, %s44
    %s47 = sphi 0, %s46
    %s61 = sphi 0, %s47
    %s67 = sphi 0, %s69
    %s70 = sphi 0, %s67
    %s71 = sphi 0, %s70
    %s87 = sphi 0, %s71
    %s93 = sphi 0, %s95
    %s96 = sphi 0, %s93
    %s97 = sphi 0, %s96
    %s113 = sphi 0, %s97
  $region4: #{_lambda_.11} parent=0 // loop_header_branch
    %13 = sbr.rel (%p11) target = $region8
  $region5: #{_lambda_.11} parent=0 // loop_body
    %s15 = ssub.s32 %s10, 1
    %s16 = ssub.s32 %s10, 2
    %s17 = sadd.s32 %s10, 1
    %s18 = ssub.s32 %s10, %s17
    %p19 = scmp.eq.s32.totalorder %s18, 0
    %s21 = sadd.s32 %s20, 1
    %s22 = scalar_select %p19, %s20, %s21
    %p25 = pneg %p19
    %p26 = scmp.eq.s32.totalorder %s10, 1
    %p27 = por %p25, %p26
    %p28 = scmp.ne.s32.totalorder %s20, %s23
    %p29 = scmp.eq.s32.totalorder %s10, 0
    %p30 = por %p28, %p29
    %p31 = scmp.ne.s32.totalorder %s20, %s23
    %p32 = scmp.eq.s32.totalorder %s15, 1
    %p33 = por %p31, %p32
    %p34 = scmp.ne.s32.totalorder %s23, %s24
    %p35 = scmp.eq.s32.totalorder %s15, 0
    %p36 = por %p34, %p35
    %p37 = scmp.ne.s32.totalorder %s23, %s24
    %p38 = scmp.eq.s32.totalorder %s16, 1
    %p39 = por %p37, %p38
    %p41 = scmp.ne.s32.totalorder %s24, %s40
    %p42 = scmp.eq.s32.totalorder %s16, 0
    %p43 = por %p41, %p42
    %s45 = sadd.s32 %s44, 1
    %p48 = scmp.eq.s32.totalorder %s10, 1
    %p49 = scmp.ne.s32.totalorder %s44, %s46
    %p50 = scmp.eq.s32.totalorder %s10, 0
    %p51 = por %p49, %p50
    %p52 = scmp.ne.s32.totalorder %s44, %s46
    %p53 = scmp.eq.s32.totalorder %s15, 1
    %p54 = por %p52, %p53
    %p55 = scmp.ne.s32.totalorder %s46, %s47
    %p56 = scmp.eq.s32.totalorder %s15, 0
    %p57 = por %p55, %p56
    %p58 = scmp.ne.s32.totalorder %s46, %s47
    %p59 = scmp.eq.s32.totalorder %s16, 1
    %p60 = por %p58, %p59
    %p62 = scmp.ne.s32.totalorder %s47, %s61
    %p63 = scmp.eq.s32.totalorder %s16, 0
    %p64 = por %p62, %p63
    %s65 = ssub.s32 %s10, %s17
    %p66 = scmp.eq.s32.totalorder %s65, 0
    %s68 = sadd.s32 %s67, 1
    %s69 = scalar_select %p66, %s67, %s68
    %p72 = pneg %p66
    %p73 = scmp.eq.s32.totalorder %s10, 1
    %p74 = por %p72, %p73
    %p75 = scmp.ne.s32.totalorder %s67, %s70
    %p76 = scmp.eq.s32.totalorder %s10, 0
    %p77 = por %p75, %p76
    %p78 = scmp.ne.s32.totalorder %s67, %s70
    %p79 = scmp.eq.s32.totalorder %s15, 1
    %p80 = por %p78, %p79
    %p81 = scmp.ne.s32.totalorder %s70, %s71
    %p82 = scmp.eq.s32.totalorder %s15, 0
    %p83 = por %p81, %p82
    %p84 = scmp.ne.s32.totalorder %s70, %s71
    %p85 = scmp.eq.s32.totalorder %s16, 1
    %p86 = por %p84, %p85
    %p88 = scmp.ne.s32.totalorder %s71, %s87
    %p89 = scmp.eq.s32.totalorder %s16, 0
    %p90 = por %p88, %p89
    %s91 = ssub.s32 %s10, %s17
    %p92 = scmp.eq.s32.totalorder %s91, 0
    %s94 = sadd.s32 %s93, 1
    %s95 = scalar_select %p92, %s93, %s94
    %p98 = pneg %p92
    %p99 = scmp.eq.s32.totalorder %s10, 1
    %p100 = por %p98, %p99
    %p101 = scmp.ne.s32.totalorder %s93, %s96
    %p102 = scmp.eq.s32.totalorder %s10, 0
    %p103 = por %p101, %p102
    %p104 = scmp.ne.s32.totalorder %s93, %s96
    %p105 = scmp.eq.s32.totalorder %s15, 1
    %p106 = por %p104, %p105
    %p107 = scmp.ne.s32.totalorder %s96, %s97
    %p108 = scmp.eq.s32.totalorder %s15, 0
    %p109 = por %p107, %p108
    %p110 = scmp.ne.s32.totalorder %s96, %s97
    %p111 = scmp.eq.s32.totalorder %s16, 1
    %p112 = por %p110, %p111
    %p114 = scmp.ne.s32.totalorder %s97, %s113
    %p115 = scmp.eq.s32.totalorder %s16, 0
    %p116 = por %p114, %p115
    %p117 = scmp.le.s32.totalorder 1, %s10
    %p118 = scmp.lt.s32.totalorder %s10, 3
    %p119 = pnand %p117, %p118
    %p120 = pneg %p119
    // Predicated region
    $region9: #{_lambda_.11} parent=5 // pred_check
      _
    $region10: #{_lambda_.11} parent=5 // pred_check_branch
      %122 = sbr.rel (%p119) target = $region12
    $region11: #{_lambda_.11} parent=5 // pred_region
      %s123 = ssub.s32 %s10, 1
      // Predicated region
      $region13: #{_lambda_.11} parent=11 // pred_check
        %p124 = pneg %p57
      $region14: #{_lambda_.11} parent=11 // pred_check_branch
        %126 = sbr.rel (%p124) target = $region16
      $region15: #{_lambda_.11} parent=11 // pred_region
        _
      $region16: #{_lambda_.11} parent=11 // pred_fallthru
        _
    $region12: #{_lambda_.11} parent=5 // pred_fallthru
      _
    %p127 = scmp.lt.s32.totalorder %s10, 2
    // Predicated region
    $region17: #{_lambda_.11} parent=5 // pred_check
      %p128 = pneg %p127
    $region18: #{_lambda_.11} parent=5 // pred_check_branch
      %130 = sbr.rel (%p128) target = $region20
    $region19: #{_lambda_.11} parent=5 // pred_region
      // Predicated region
      $region21: #{_lambda_.11} parent=19 // pred_check
        %p131 = pneg %p30
      $region22: #{_lambda_.11} parent=19 // pred_check_branch
        %133 = sbr.rel (%p131) target = $region24
      $region23: #{_lambda_.11} parent=19 // pred_region
        %s134 = smul.u32 2, %s10
        %p135 = scmp.lt.s32.totalorder %s134, 3
        %s136 = scalar_select %p135, %s134, 3
        %s137 = smul.addr %s136, 2
        %s138 = smul.addr %s137, 4
        %s139 = scalar_lea.vmem %s0, %s138
        %s140 = smul.u32 2, %s10
      $region24: #{_lambda_.11} parent=19 // pred_fallthru
        _
    $region20: #{_lambda_.11} parent=5 // pred_fallthru
      _
    %p141 = scmp.le.s32.totalorder 1, %s10
    %p142 = scmp.lt.s32.totalorder %s10, 3
    %p143 = pnand %p141, %p142
    %p144 = pneg %p143
    // Predicated region
    $region25: #{_lambda_.11} parent=5 // pred_check
      _
    $region26: #{_lambda_.11} parent=5 // pred_check_branch
      %146 = sbr.rel (%p143) target = $region28
    $region27: #{_lambda_.11} parent=5 // pred_region
      %s147 = ssub.s32 %s10, 1
      %s148 = smul.u32 2, %s15
      %p149 = scmp.lt.s32.totalorder %s148, 3
      %s150 = scalar_select %p149, %s148, 3
      %s151 = smul.addr %s150, 2
      %s152 = smul.addr %s151, 4
      %s153 = scalar_lea.vmem %s0, %s152
      %p154 = pneg %p36
      %p155 = pneg %p33
      %p156 = pneg %p57
      %p157 = pneg %p54
      %p158 = pneg %p83
      %p159 = pneg %p80
      %s160 = smul.u32 2, %s15
      %p161 = scmp.lt.s32.totalorder %s160, 3
      %s162 = scalar_select %p161, %s160, 3
      %s163 = smul.addr %s162, 4
      %s164 = scalar_lea.vmem %s2, %s163
      %p165 = pneg %p109
      %p166 = pneg %p106
      %p167 = scmp.lt.s32.totalorder %s15, 1
      %s168 = scalar_select %p167, %s15, 1
      %s169 = smul.addr %s168, 2
      %s170 = scalar_lea.vmem %s3, %s169
      %s171 = smul.u32 2, %s15
      %p172 = scmp.lt.s32.totalorder %s171, 3
      %s173 = scalar_select %p172, %s171, 3
      %s174 = smul.addr %s173, 2
      %s175 = smul.addr %s174, 4
      %s176 = scalar_lea.vmem %s0, %s175
      %s177 = smul.u32 2, %s15
      %s178 = smul.u32 2, %s15
      %p179 = scmp.lt.s32.totalorder %s178, 3
      %s180 = scalar_select %p179, %s178, 3
      %s181 = smul.addr %s180, 4
      %s182 = scalar_lea.vmem %s2, %s181
      %s183 = smul.u32 2, %s15
      %p184 = scmp.lt.s32.totalorder %s15, 1
      %s185 = scalar_select %p184, %s15, 1
      %s186 = smul.addr %s185, 2
      %s187 = scalar_lea.vmem %s3, %s186
      %v188 = vld [vmem:[%s176] sm:$0xff]
      %v189 = vld [vmem:[%s176 + $0x8] sm:$0xff]
      %v190 = vld [vmem:[%s1] sm:$0xf]
      %v191 = vld [vmem:[%s1 + $0x4] sm:$0xf]
      %v192 = vld [vmem:[%s1 + $0x8] sm:$0xf]
      %v193 = vld [vmem:[%s1 + $0xc] sm:$0xf]
      %v194 = vld [vmem:[%s1 + $0x10] sm:$0xf]
      %v195 = vld [vmem:[%s1 + $0x14] sm:$0xf]
      %v196 = vld [vmem:[%s1 + $0x18] sm:$0xf]
      %v197 = vld [vmem:[%s1 + $0x1c] sm:$0xf]
      %v198 = vld [vmem:[%s1 + $0x20] sm:$0xf]
      %v199 = vld [vmem:[%s1 + $0x24] sm:$0xf]
      %v200 = vld [vmem:[%s1 + $0x28] sm:$0xf]
      %v201 = vld [vmem:[%s1 + $0x2c] sm:$0xf]
      %v202 = vld [vmem:[%s1 + $0x30] sm:$0xf]
      %v203 = vld [vmem:[%s1 + $0x34] sm:$0xf]
      %v204 = vld [vmem:[%s1 + $0x38] sm:$0xf]
      %v205 = vld [vmem:[%s1 + $0x3c] sm:$0xf]
      %v206 = vld [vmem:[%s1 + $0x40] sm:$0xf]
      %v207 = vld [vmem:[%s1 + $0x44] sm:$0xf]
      %v208 = vld [vmem:[%s1 + $0x48] sm:$0xf]
      %v209 = vld [vmem:[%s1 + $0x4c] sm:$0xf]
      %v210 = vld [vmem:[%s1 + $0x50] sm:$0xf]
      %v211 = vld [vmem:[%s1 + $0x54] sm:$0xf]
      %v212 = vld [vmem:[%s1 + $0x58] sm:$0xf]
      %v213 = vld [vmem:[%s1 + $0x5c] sm:$0xf]
      %v214 = vld [vmem:[%s1 + $0x60] sm:$0xf]
      %v215 = vld [vmem:[%s1 + $0x64] sm:$0xf]
      %v216 = vld [vmem:[%s1 + $0x68] sm:$0xf]
      %v217 = vld [vmem:[%s1 + $0x6c] sm:$0xf]
      %v218 = vld [vmem:[%s1 + $0x70] sm:$0xf]
      %v219 = vld [vmem:[%s1 + $0x74] sm:$0xf]
      %v220 = vld [vmem:[%s1 + $0x78] sm:$0xf]
      %v221 = vld [vmem:[%s1 + $0x7c] sm:$0xf]
      %v224 = vunpack.c.l.b16 %v188
      %v225 = vunpack.c.h.b16 %v188
      %v226 = vunpack.c.l.b16 %v189
      %v227 = vunpack.c.h.b16 %v189
      %v228 = vpack.c.b16 %v226, %v224
      %v229 = vpack.c.b16 %v227, %v225
      %v264 = vunpack.c.l.b16 %v190
      %v265 = vunpack.c.l.b16 %v191
      %v266 = vunpack.c.l.b16 %v192
      %v267 = vunpack.c.l.b16 %v193
      %v268 = vunpack.c.l.b16 %v194
      %v269 = vunpack.c.l.b16 %v195
      %v270 = vunpack.c.l.b16 %v196
      %v271 = vunpack.c.l.b16 %v197
      %v272 = vunpack.c.l.b16 %v198
      %v273 = vunpack.c.l.b16 %v199
      %v274 = vunpack.c.l.b16 %v200
      %v275 = vunpack.c.l.b16 %v201
      %v276 = vunpack.c.l.b16 %v202
      %v277 = vunpack.c.l.b16 %v203
      %v278 = vunpack.c.l.b16 %v204
      %v279 = vunpack.c.l.b16 %v205
      %v280 = vunpack.c.l.b16 %v206
      %v281 = vunpack.c.l.b16 %v207
      %v282 = vunpack.c.l.b16 %v208
      %v283 = vunpack.c.l.b16 %v209
      %v284 = vunpack.c.l.b16 %v210
      %v285 = vunpack.c.l.b16 %v211
      %v286 = vunpack.c.l.b16 %v212
      %v287 = vunpack.c.l.b16 %v213
      %v288 = vunpack.c.l.b16 %v214
      %v289 = vunpack.c.l.b16 %v215
      %v290 = vunpack.c.l.b16 %v216
      %v291 = vunpack.c.l.b16 %v217
      %v292 = vunpack.c.l.b16 %v218
      %v293 = vunpack.c.l.b16 %v219
      %v294 = vunpack.c.l.b16 %v220
      %v295 = vunpack.c.l.b16 %v221
      %v296 = vpack.c.b16 %v265, %v264
      %v297 = vpack.c.b16 %v267, %v266
      %v298 = vpack.c.b16 %v269, %v268
      %v299 = vpack.c.b16 %v271, %v270
      %v300 = vpack.c.b16 %v273, %v272
      %v301 = vpack.c.b16 %v275, %v274
      %v302 = vpack.c.b16 %v277, %v276
      %v303 = vpack.c.b16 %v279, %v278
      %v304 = vpack.c.b16 %v281, %v280
      %v305 = vpack.c.b16 %v283, %v282
      %v306 = vpack.c.b16 %v285, %v284
      %v307 = vpack.c.b16 %v287, %v286
      %v308 = vpack.c.b16 %v289, %v288
      %v309 = vpack.c.b16 %v291, %v290
      %v310 = vpack.c.b16 %v293, %v292
      %v311 = vpack.c.b16 %v295, %v294
      %328 = vmatpush.bf16.msra.mxu0 %v303
      %329 = vmatpush.bf16.msra.mxu0 %v302
      %330 = vmatpush.bf16.msra.mxu0 %v301
      %331 = vmatpush.bf16.msra.mxu0 %v300
      %332 = vmatpush.bf16.msra.mxu0 %v299
      %333 = vmatpush.bf16.msra.mxu0 %v298
      %334 = vmatpush.bf16.msra.mxu0 %v297
      %335 = vmatpush.bf16.msra.mxu0 %v296
      %336 = vmatmul.bf16.gmra.mxu0 %v228
      %v337 = vpop.f32.mrf.mxu0
      %v338 = vadd.f32 0.0, %v337
      %v339 = vpop.f32.mrf.mxu0
      %v340 = vadd.f32 0.0, %v339
      %341 = vdwg.mxu0
      %342 = vmatpush.bf16.msra.mxu0 %v311
      %343 = vmatpush.bf16.msra.mxu0 %v310
      %344 = vmatpush.bf16.msra.mxu0 %v309
      %345 = vmatpush.bf16.msra.mxu0 %v308
      %346 = vmatpush.bf16.msra.mxu0 %v307
      %347 = vmatpush.bf16.msra.mxu0 %v306
      %348 = vmatpush.bf16.msra.mxu0 %v305
      %349 = vmatpush.bf16.msra.mxu0 %v304
      %350 = vmatmul.bf16.gmra.mxu0 %v229
      %v351 = vpop.f32.mrf.mxu0
      %v352 = vadd.f32 %v338, %v351
      %v353 = vpop.f32.mrf.mxu0
      %v354 = vadd.f32 %v340, %v353
      %355 = vdwg.mxu0
      %v356 = vadd.f32 %v352, %v354
      %v357 = vrot.slane %v356, 4
      %v358 = vadd.f32 %v356, %v357
      %v359 = vrot.slane %v358, 2
      %v360 = vadd.f32 %v358, %v359
      %v361 = vrot.slane %v360, 1
      %v362 = vadd.f32 %v360, %v361
      %v363 = vmul.f32 %v352, %v352
      %v364 = vmul.f32 %v354, %v354
      %v365 = vadd.f32 %v363, %v364
      %v366 = vrot.slane %v365, 4
      %v367 = vadd.f32 %v365, %v366
      %v368 = vrot.slane %v367, 2
      %v369 = vadd.f32 %v367, %v368
      %v370 = vrot.slane %v369, 1
      %v371 = vadd.f32 %v369, %v370
      %vm372 = vcmask 1040384
      %v373 = vsel %vm372, %v362, %v371
      %374 = vst [vmem:[%s187] sm:$0x3] %v373
      %v375 = vpack.c.bf16 %v352, %v352
      %v376 = vpack.c.bf16 %v354, %v354
      %377 = vst [vmem:[%s182] sm:$0xf] %v375
      %378 = vst [vmem:[%s182 + $0x4] sm:$0xf] %v376
      %s379 = smul.u32 2, %s15
      %p380 = scmp.lt.s32.totalorder %s379, 3
      %s381 = scalar_select %p380, %s379, 3
      %s382 = smul.addr %s381, 4
      %s383 = scalar_lea.vmem %s2, %s382
      %p384 = scmp.lt.s32.totalorder %s15, 1
      %s385 = scalar_select %p384, %s15, 1
      %s386 = smul.addr %s385, 2
      %s387 = scalar_lea.vmem %s3, %s386
      // Predicated region
      $region29: #{_lambda_.11} parent=27 // pred_check
        %p388 = pneg %p80
      $region30: #{_lambda_.11} parent=27 // pred_check_branch
        %390 = sbr.rel (%p388) target = $region32
      $region31: #{_lambda_.11} parent=27 // pred_region
        %s391 = smul.u32 2, %s15
      $region32: #{_lambda_.11} parent=27 // pred_fallthru
        _
      // Predicated region
      $region33: #{_lambda_.11} parent=27 // pred_check
        %p392 = pneg %p106
      $region34: #{_lambda_.11} parent=27 // pred_check_branch
        %394 = sbr.rel (%p392) target = $region36
      $region35: #{_lambda_.11} parent=27 // pred_region
        _
      $region36: #{_lambda_.11} parent=27 // pred_fallthru
        _
    $region28: #{_lambda_.11} parent=5 // pred_fallthru
      _
    %p395 = scmp.le.s32.totalorder 2, %s10
    // Predicated region
    $region37: #{_lambda_.11} parent=5 // pred_check
      %p396 = pneg %p395
    $region38: #{_lambda_.11} parent=5 // pred_check_branch
      %398 = sbr.rel (%p396) target = $region40
    $region39: #{_lambda_.11} parent=5 // pred_region
      %s399 = ssub.s32 %s10, 2
      // Predicated region
      $region41: #{_lambda_.11} parent=39 // pred_check
        %p400 = pneg %p86
      $region42: #{_lambda_.11} parent=39 // pred_check_branch
        %402 = sbr.rel (%p400) target = $region44
      $region43: #{_lambda_.11} parent=39 // pred_region
        %s403 = smul.u32 2, %s16
        %p404 = scmp.lt.s32.totalorder %s403, 3
        %s405 = scalar_select %p404, %s403, 3
        %s406 = smul.addr %s405, 4
        %s407 = scalar_lea.vmem %s2, %s406
      $region44: #{_lambda_.11} parent=39 // pred_fallthru
        _
      // Predicated region
      $region45: #{_lambda_.11} parent=39 // pred_check
        %p408 = pneg %p112
      $region46: #{_lambda_.11} parent=39 // pred_check_branch
        %410 = sbr.rel (%p408) target = $region48
      $region47: #{_lambda_.11} parent=39 // pred_region
        %p411 = scmp.lt.s32.totalorder %s16, 1
        %s412 = scalar_select %p411, %s16, 1
        %s413 = smul.addr %s412, 2
        %s414 = scalar_lea.vmem %s3, %s413
      $region48: #{_lambda_.11} parent=39 // pred_fallthru
        _
    $region40: #{_lambda_.11} parent=5 // pred_fallthru
      _
  $region6: #{_lambda_.11} parent=0 // loop_footer
    %s14 = sadd.s32 1, %s10
  $region7: #{_lambda_.11} parent=0 // loop_footer_branch
    %9 = sbr.rel target = $region3
  $region8: #{_lambda_.11} parent=0 // loop_exit
    _

// kernel: _lambda_.13
$region0: #{_lambda_.13}
  #allocation0 [shape = 'u32[]', space=smem, size = 0x4, offset = 0x4, fixed_abs, tag = 'smem constant byte address 0x4 - core index']
  #allocation1 [shape = 'u32[72,128]{1,0:T(1,128)}', space=vmem, size = 0x9000, scoped, tag = 'internal scratch']
  %s0 = inlined_call_operand.vmem [shape: bf16[32,512], index: 0, kind: input, shape index: {}]
  %s1 = inlined_call_operand.vmem [shape: bf16[512,128], index: 1, kind: input, shape index: {}]
  %s2 = inlined_call_operand.vmem [shape: bf16[32,128], index: 2, kind: output, shape index: {0}]
  %s3 = inlined_call_operand.vmem [shape: f32[2,2,128], index: 3, kind: output, shape index: {1}]
  %4 = xla_tuple %s2, %s3
  %s5 = sld [smem:[#allocation0]]
  $region49: #{_lambda_.13} parent=0
    _
  %s7 = ssub.s32 1, %s5
  %s8 = scalar_select 0, %s7, %s5
  loop: start=0, step=1, limit=4
  $region2: #{_lambda_.13} parent=0 // loop_pre_header
    _
  $region3: #{_lambda_.13} parent=0 // loop_header
    %s10 = sphi 0, %s14
    %p11 = scmp.ge.s32.totalorder %s10, 4
    %s20 = sphi 0, %s22
    %s23 = sphi 0, %s20
    %s24 = sphi 0, %s23
    %s40 = sphi 0, %s24
    %s44 = sphi 0, %s44
    %s46 = sphi 0, %s44
    %s47 = sphi 0, %s46
    %s61 = sphi 0, %s47
    %s67 = sphi 0, %s69
    %s70 = sphi 0, %s67
    %s71 = sphi 0, %s70
    %s87 = sphi 0, %s71
    %s93 = sphi 0, %s95
    %s96 = sphi 0, %s93
    %s97 = sphi 0, %s96
    %s113 = sphi 0, %s97
  $region4: #{_lambda_.13} parent=0 // loop_header_branch
    %13 = sbr.rel (%p11) target = $region8
  $region5: #{_lambda_.13} parent=0 // loop_body
    %s15 = ssub.s32 %s10, 1
    %s16 = ssub.s32 %s10, 2
    %s17 = sadd.s32 %s10, 1
    %s18 = ssub.s32 %s10, %s17
    %p19 = scmp.eq.s32.totalorder %s18, 0
    %s21 = sadd.s32 %s20, 1
    %s22 = scalar_select %p19, %s20, %s21
    %p25 = pneg %p19
    %p26 = scmp.eq.s32.totalorder %s10, 1
    %p27 = por %p25, %p26
    %p28 = scmp.ne.s32.totalorder %s20, %s23
    %p29 = scmp.eq.s32.totalorder %s10, 0
    %p30 = por %p28, %p29
    %p31 = scmp.ne.s32.totalorder %s20, %s23
    %p32 = scmp.eq.s32.totalorder %s15, 1
    %p33 = por %p31, %p32
    %p34 = scmp.ne.s32.totalorder %s23, %s24
    %p35 = scmp.eq.s32.totalorder %s15, 0
    %p36 = por %p34, %p35
    %p37 = scmp.ne.s32.totalorder %s23, %s24
    %p38 = scmp.eq.s32.totalorder %s16, 1
    %p39 = por %p37, %p38
    %p41 = scmp.ne.s32.totalorder %s24, %s40
    %p42 = scmp.eq.s32.totalorder %s16, 0
    %p43 = por %p41, %p42
    %s45 = sadd.s32 %s44, 1
    %p48 = scmp.eq.s32.totalorder %s10, 1
    %p49 = scmp.ne.s32.totalorder %s44, %s46
    %p50 = scmp.eq.s32.totalorder %s10, 0
    %p51 = por %p49, %p50
    %p52 = scmp.ne.s32.totalorder %s44, %s46
    %p53 = scmp.eq.s32.totalorder %s15, 1
    %p54 = por %p52, %p53
    %p55 = scmp.ne.s32.totalorder %s46, %s47
    %p56 = scmp.eq.s32.totalorder %s15, 0
    %p57 = por %p55, %p56
    %p58 = scmp.ne.s32.totalorder %s46, %s47
    %p59 = scmp.eq.s32.totalorder %s16, 1
    %p60 = por %p58, %p59
    %p62 = scmp.ne.s32.totalorder %s47, %s61
    %p63 = scmp.eq.s32.totalorder %s16, 0
    %p64 = por %p62, %p63
    %s65 = ssub.s32 %s10, %s17
    %p66 = scmp.eq.s32.totalorder %s65, 0
    %s68 = sadd.s32 %s67, 1
    %s69 = scalar_select %p66, %s67, %s68
    %p72 = pneg %p66
    %p73 = scmp.eq.s32.totalorder %s10, 1
    %p74 = por %p72, %p73
    %p75 = scmp.ne.s32.totalorder %s67, %s70
    %p76 = scmp.eq.s32.totalorder %s10, 0
    %p77 = por %p75, %p76
    %p78 = scmp.ne.s32.totalorder %s67, %s70
    %p79 = scmp.eq.s32.totalorder %s15, 1
    %p80 = por %p78, %p79
    %p81 = scmp.ne.s32.totalorder %s70, %s71
    %p82 = scmp.eq.s32.totalorder %s15, 0
    %p83 = por %p81, %p82
    %p84 = scmp.ne.s32.totalorder %s70, %s71
    %p85 = scmp.eq.s32.totalorder %s16, 1
    %p86 = por %p84, %p85
    %p88 = scmp.ne.s32.totalorder %s71, %s87
    %p89 = scmp.eq.s32.totalorder %s16, 0
    %p90 = por %p88, %p89
    %s91 = ssub.s32 %s10, %s17
    %p92 = scmp.eq.s32.totalorder %s91, 0
    %s94 = sadd.s32 %s93, 1
    %s95 = scalar_select %p92, %s93, %s94
    %p98 = pneg %p92
    %p99 = scmp.eq.s32.totalorder %s10, 1
    %p100 = por %p98, %p99
    %p101 = scmp.ne.s32.totalorder %s93, %s96
    %p102 = scmp.eq.s32.totalorder %s10, 0
    %p103 = por %p101, %p102
    %p104 = scmp.ne.s32.totalorder %s93, %s96
    %p105 = scmp.eq.s32.totalorder %s15, 1
    %p106 = por %p104, %p105
    %p107 = scmp.ne.s32.totalorder %s96, %s97
    %p108 = scmp.eq.s32.totalorder %s15, 0
    %p109 = por %p107, %p108
    %p110 = scmp.ne.s32.totalorder %s96, %s97
    %p111 = scmp.eq.s32.totalorder %s16, 1
    %p112 = por %p110, %p111
    %p114 = scmp.ne.s32.totalorder %s97, %s113
    %p115 = scmp.eq.s32.totalorder %s16, 0
    %p116 = por %p114, %p115
    %p117 = scmp.le.s32.totalorder 1, %s10
    %p118 = scmp.lt.s32.totalorder %s10, 3
    %p119 = pnand %p117, %p118
    %p120 = pneg %p119
    // Predicated region
    $region9: #{_lambda_.13} parent=5 // pred_check
      _
    $region10: #{_lambda_.13} parent=5 // pred_check_branch
      %122 = sbr.rel (%p119) target = $region12
    $region11: #{_lambda_.13} parent=5 // pred_region
      %s123 = ssub.s32 %s10, 1
      // Predicated region
      $region13: #{_lambda_.13} parent=11 // pred_check
        %p124 = pneg %p57
      $region14: #{_lambda_.13} parent=11 // pred_check_branch
        %126 = sbr.rel (%p124) target = $region16
      $region15: #{_lambda_.13} parent=11 // pred_region
        _
      $region16: #{_lambda_.13} parent=11 // pred_fallthru
        _
    $region12: #{_lambda_.13} parent=5 // pred_fallthru
      _
    %p127 = scmp.lt.s32.totalorder %s10, 2
    // Predicated region
    $region17: #{_lambda_.13} parent=5 // pred_check
      %p128 = pneg %p127
    $region18: #{_lambda_.13} parent=5 // pred_check_branch
      %130 = sbr.rel (%p128) target = $region20
    $region19: #{_lambda_.13} parent=5 // pred_region
      // Predicated region
      $region21: #{_lambda_.13} parent=19 // pred_check
        %p131 = pneg %p30
      $region22: #{_lambda_.13} parent=19 // pred_check_branch
        %133 = sbr.rel (%p131) target = $region24
      $region23: #{_lambda_.13} parent=19 // pred_region
        %s134 = smul.u32 2, %s10
        %p135 = scmp.lt.s32.totalorder %s134, 3
        %s136 = scalar_select %p135, %s134, 3
        %s137 = smul.addr %s136, 4
        %s138 = smul.addr %s137, 4
        %s139 = scalar_lea.vmem %s0, %s138
        %s140 = smul.u32 2, %s10
      $region24: #{_lambda_.13} parent=19 // pred_fallthru
        _
    $region20: #{_lambda_.13} parent=5 // pred_fallthru
      _
    %p141 = scmp.le.s32.totalorder 1, %s10
    %p142 = scmp.lt.s32.totalorder %s10, 3
    %p143 = pnand %p141, %p142
    %p144 = pneg %p143
    // Predicated region
    $region25: #{_lambda_.13} parent=5 // pred_check
      _
    $region26: #{_lambda_.13} parent=5 // pred_check_branch
      %146 = sbr.rel (%p143) target = $region28
    $region27: #{_lambda_.13} parent=5 // pred_region
      %s147 = ssub.s32 %s10, 1
      %s148 = smul.u32 2, %s15
      %p149 = scmp.lt.s32.totalorder %s148, 3
      %s150 = scalar_select %p149, %s148, 3
      %s151 = smul.addr %s150, 4
      %s152 = smul.addr %s151, 4
      %s153 = scalar_lea.vmem %s0, %s152
      %p154 = pneg %p36
      %p155 = pneg %p33
      %p156 = pneg %p57
      %p157 = pneg %p54
      %p158 = pneg %p83
      %p159 = pneg %p80
      %s160 = smul.u32 2, %s15
      %p161 = scmp.lt.s32.totalorder %s160, 3
      %s162 = scalar_select %p161, %s160, 3
      %s163 = smul.addr %s162, 4
      %s164 = scalar_lea.vmem %s2, %s163
      %p165 = pneg %p109
      %p166 = pneg %p106
      %p167 = scmp.lt.s32.totalorder %s15, 1
      %s168 = scalar_select %p167, %s15, 1
      %s169 = smul.addr %s168, 2
      %s170 = scalar_lea.vmem %s3, %s169
      %s171 = smul.u32 2, %s15
      %p172 = scmp.lt.s32.totalorder %s171, 3
      %s173 = scalar_select %p172, %s171, 3
      %s174 = smul.addr %s173, 4
      %s175 = smul.addr %s174, 4
      %s176 = scalar_lea.vmem %s0, %s175
      %s177 = smul.u32 2, %s15
      %s178 = smul.u32 2, %s15
      %p179 = scmp.lt.s32.totalorder %s178, 3
      %s180 = scalar_select %p179, %s178, 3
      %s181 = smul.addr %s180, 4
      %s182 = scalar_lea.vmem %s2, %s181
      %s183 = smul.u32 2, %s15
      %p184 = scmp.lt.s32.totalorder %s15, 1
      %s185 = scalar_select %p184, %s15, 1
      %s186 = smul.addr %s185, 2
      %s187 = scalar_lea.vmem %s3, %s186
      %v188 = vld [vmem:[%s176] sm:$0xff]
      %v189 = vld [vmem:[%s176 + $0x8] sm:$0xff]
      %v190 = vld [vmem:[%s176 + $0x10] sm:$0xff]
      %v191 = vld [vmem:[%s176 + $0x18] sm:$0xff]
      %v192 = vld [vmem:[%s1] sm:$0xf]
      %v193 = vld [vmem:[%s1 + $0x4] sm:$0xf]
      %v194 = vld [vmem:[%s1 + $0x8] sm:$0xf]
      %v195 = vld [vmem:[%s1 + $0xc] sm:$0xf]
      %v196 = vld [vmem:[%s1 + $0x10] sm:$0xf]
      %v197 = vld [vmem:[%s1 + $0x14] sm:$0xf]
      %v198 = vld [vmem:[%s1 + $0x18] sm:$0xf]
      %v199 = vld [vmem:[%s1 + $0x1c] sm:$0xf]
      %v200 = vld [vmem:[%s1 + $0x20] sm:$0xf]
      %v201 = vld [vmem:[%s1 + $0x24] sm:$0xf]
      %v202 = vld [vmem:[%s1 + $0x28] sm:$0xf]
      %v203 = vld [vmem:[%s1 + $0x2c] sm:$0xf]
      %v204 = vld [vmem:[%s1 + $0x30] sm:$0xf]
      %v205 = vld [vmem:[%s1 + $0x34] sm:$0xf]
      %v206 = vld [vmem:[%s1 + $0x38] sm:$0xf]
      %v207 = vld [vmem:[%s1 + $0x3c] sm:$0xf]
      %v208 = vld [vmem:[%s1 + $0x40] sm:$0xf]
      %v209 = vld [vmem:[%s1 + $0x44] sm:$0xf]
      %v210 = vld [vmem:[%s1 + $0x48] sm:$0xf]
      %v211 = vld [vmem:[%s1 + $0x4c] sm:$0xf]
      %v212 = vld [vmem:[%s1 + $0x50] sm:$0xf]
      %v213 = vld [vmem:[%s1 + $0x54] sm:$0xf]
      %v214 = vld [vmem:[%s1 + $0x58] sm:$0xf]
      %v215 = vld [vmem:[%s1 + $0x5c] sm:$0xf]
      %v216 = vld [vmem:[%s1 + $0x60] sm:$0xf]
      %v217 = vld [vmem:[%s1 + $0x64] sm:$0xf]
      %v218 = vld [vmem:[%s1 + $0x68] sm:$0xf]
      %v219 = vld [vmem:[%s1 + $0x6c] sm:$0xf]
      %v220 = vld [vmem:[%s1 + $0x70] sm:$0xf]
      %v221 = vld [vmem:[%s1 + $0x74] sm:$0xf]
      %v222 = vld [vmem:[%s1 + $0x78] sm:$0xf]
      %v223 = vld [vmem:[%s1 + $0x7c] sm:$0xf]
      %v224 = vld [vmem:[%s1 + $0x80] sm:$0xf]
      %v225 = vld [vmem:[%s1 + $0x84] sm:$0xf]
      %v226 = vld [vmem:[%s1 + $0x88] sm:$0xf]
      %v227 = vld [vmem:[%s1 + $0x8c] sm:$0xf]
      %v228 = vld [vmem:[%s1 + $0x90] sm:$0xf]
      %v229 = vld [vmem:[%s1 + $0x94] sm:$0xf]
      %v230 = vld [vmem:[%s1 + $0x98] sm:$0xf]
      %v231 = vld [vmem:[%s1 + $0x9c] sm:$0xf]
      %v232 = vld [vmem:[%s1 + $0xa0] sm:$0xf]
      %v233 = vld [vmem:[%s1 + $0xa4] sm:$0xf]
      %v234 = vld [vmem:[%s1 + $0xa8] sm:$0xf]
      %v235 = vld [vmem:[%s1 + $0xac] sm:$0xf]
      %v236 = vld [vmem:[%s1 + $0xb0] sm:$0xf]
      %v237 = vld [vmem:[%s1 + $0xb4] sm:$0xf]
      %v238 = vld [vmem:[%s1 + $0xb8] sm:$0xf]
      %v239 = vld [vmem:[%s1 + $0xbc] sm:$0xf]
      %v240 = vld [vmem:[%s1 + $0xc0] sm:$0xf]
      %v241 = vld [vmem:[%s1 + $0xc4] sm:$0xf]
      %v242 = vld [vmem:[%s1 + $0xc8] sm:$0xf]
      %v243 = vld [vmem:[%s1 + $0xcc] sm:$0xf]
      %v244 = vld [vmem:[%s1 + $0xd0] sm:$0xf]
      %v245 = vld [vmem:[%s1 + $0xd4] sm:$0xf]
      %v246 = vld [vmem:[%s1 + $0xd8] sm:$0xf]
      %v247 = vld [vmem:[%s1 + $0xdc] sm:$0xf]
      %v248 = vld [vmem:[%s1 + $0xe0] sm:$0xf]
      %v249 = vld [vmem:[%s1 + $0xe4] sm:$0xf]
      %v250 = vld [vmem:[%s1 + $0xe8] sm:$0xf]
      %v251 = vld [vmem:[%s1 + $0xec] sm:$0xf]
      %v252 = vld [vmem:[%s1 + $0xf0] sm:$0xf]
      %v253 = vld [vmem:[%s1 + $0xf4] sm:$0xf]
      %v254 = vld [vmem:[%s1 + $0xf8] sm:$0xf]
      %v255 = vld [vmem:[%s1 + $0xfc] sm:$0xf]
      %v260 = vunpack.c.l.b16 %v188
      %v261 = vunpack.c.h.b16 %v188
      %v262 = vunpack.c.l.b16 %v189
      %v263 = vunpack.c.h.b16 %v189
      %v264 = vunpack.c.l.b16 %v190
      %v265 = vunpack.c.h.b16 %v190
      %v266 = vunpack.c.l.b16 %v191
      %v267 = vunpack.c.h.b16 %v191
      %v268 = vpack.c.b16 %v264, %v260
      %v269 = vpack.c.b16 %v265, %v261
      %v270 = vpack.c.b16 %v266, %v262
      %v271 = vpack.c.b16 %v267, %v263
      %v340 = vunpack.c.l.b16 %v192
      %v341 = vunpack.c.l.b16 %v193
      %v342 = vunpack.c.l.b16 %v194
      %v343 = vunpack.c.l.b16 %v195
      %v344 = vunpack.c.l.b16 %v196
      %v345 = vunpack.c.l.b16 %v197
      %v346 = vunpack.c.l.b16 %v198
      %v347 = vunpack.c.l.b16 %v199
      %v348 = vunpack.c.l.b16 %v200
      %v349 = vunpack.c.l.b16 %v201
      %v350 = vunpack.c.l.b16 %v202
      %v351 = vunpack.c.l.b16 %v203
      %v352 = vunpack.c.l.b16 %v204
      %v353 = vunpack.c.l.b16 %v205
      %v354 = vunpack.c.l.b16 %v206
      %v355 = vunpack.c.l.b16 %v207
      %v356 = vunpack.c.l.b16 %v208
      %v357 = vunpack.c.l.b16 %v209
      %v358 = vunpack.c.l.b16 %v210
      %v359 = vunpack.c.l.b16 %v211
      %v360 = vunpack.c.l.b16 %v212
      %v361 = vunpack.c.l.b16 %v213
      %v362 = vunpack.c.l.b16 %v214
      %v363 = vunpack.c.l.b16 %v215
      %v364 = vunpack.c.l.b16 %v216
      %v365 = vunpack.c.l.b16 %v217
      %v366 = vunpack.c.l.b16 %v218
      %v367 = vunpack.c.l.b16 %v219
      %v368 = vunpack.c.l.b16 %v220
      %v369 = vunpack.c.l.b16 %v221
      %v370 = vunpack.c.l.b16 %v222
      %v371 = vunpack.c.l.b16 %v223
      %v372 = vunpack.c.l.b16 %v224
      %v373 = vunpack.c.l.b16 %v225
      %v374 = vunpack.c.l.b16 %v226
      %v375 = vunpack.c.l.b16 %v227
      %v376 = vunpack.c.l.b16 %v228
      %v377 = vunpack.c.l.b16 %v229
      %v378 = vunpack.c.l.b16 %v230
      %v379 = vunpack.c.l.b16 %v231
      %v380 = vunpack.c.l.b16 %v232
      %v381 = vunpack.c.l.b16 %v233
      %v382 = vunpack.c.l.b16 %v234
      %v383 = vunpack.c.l.b16 %v235
      %v384 = vunpack.c.l.b16 %v236
      %v385 = vunpack.c.l.b16 %v237
      %v386 = vunpack.c.l.b16 %v238
      %v387 = vunpack.c.l.b16 %v239
      %v388 = vunpack.c.l.b16 %v240
      %v389 = vunpack.c.l.b16 %v241
      %v390 = vunpack.c.l.b16 %v242
      %v391 = vunpack.c.l.b16 %v243
      %v392 = vunpack.c.l.b16 %v244
      %v393 = vunpack.c.l.b16 %v245
      %v394 = vunpack.c.l.b16 %v246
      %v395 = vunpack.c.l.b16 %v247
      %v396 = vunpack.c.l.b16 %v248
      %v397 = vunpack.c.l.b16 %v249
      %v398 = vunpack.c.l.b16 %v250
      %v399 = vunpack.c.l.b16 %v251
      %v400 = vunpack.c.l.b16 %v252
      %v401 = vunpack.c.l.b16 %v253
      %v402 = vunpack.c.l.b16 %v254
      %v403 = vunpack.c.l.b16 %v255
      %v404 = vpack.c.b16 %v341, %v340
      %v405 = vpack.c.b16 %v343, %v342
      %v406 = vpack.c.b16 %v345, %v344
      %v407 = vpack.c.b16 %v347, %v346
      %v408 = vpack.c.b16 %v349, %v348
      %v409 = vpack.c.b16 %v351, %v350
      %v410 = vpack.c.b16 %v353, %v352
      %v411 = vpack.c.b16 %v355, %v354
      %v412 = vpack.c.b16 %v357, %v356
      %v413 = vpack.c.b16 %v359, %v358
      %v414 = vpack.c.b16 %v361, %v360
      %v415 = vpack.c.b16 %v363, %v362
      %v416 = vpack.c.b16 %v365, %v364
      %v417 = vpack.c.b16 %v367, %v366
      %v418 = vpack.c.b16 %v369, %v368
      %v419 = vpack.c.b16 %v371, %v370
      %v420 = vpack.c.b16 %v373, %v372
      %v421 = vpack.c.b16 %v375, %v374
      %v422 = vpack.c.b16 %v377, %v376
      %v423 = vpack.c.b16 %v379, %v378
      %v424 = vpack.c.b16 %v381, %v380
      %v425 = vpack.c.b16 %v383, %v382
      %v426 = vpack.c.b16 %v385, %v384
      %v427 = vpack.c.b16 %v387, %v386
      %v428 = vpack.c.b16 %v389, %v388
      %v429 = vpack.c.b16 %v391, %v390
      %v430 = vpack.c.b16 %v393, %v392
      %v431 = vpack.c.b16 %v395, %v394
      %v432 = vpack.c.b16 %v397, %v396
      %v433 = vpack.c.b16 %v399, %v398
      %v434 = vpack.c.b16 %v401, %v400
      %v435 = vpack.c.b16 %v403, %v402
      %468 = vmatpush.bf16.msra.mxu0 %v411
      %469 = vmatpush.bf16.msra.mxu0 %v410
      %470 = vmatpush.bf16.msra.mxu0 %v409
      %471 = vmatpush.bf16.msra.mxu0 %v408
      %472 = vmatpush.bf16.msra.mxu0 %v407
      %473 = vmatpush.bf16.msra.mxu0 %v406
      %474 = vmatpush.bf16.msra.mxu0 %v405
      %475 = vmatpush.bf16.msra.mxu0 %v404
      %476 = vmatmul.bf16.gmra.mxu0 %v268
      %v477 = vpop.f32.mrf.mxu0
      %v478 = vadd.f32 0.0, %v477
      %v479 = vpop.f32.mrf.mxu0
      %v480 = vadd.f32 0.0, %v479
      %481 = vdwg.mxu0
      %482 = vmatpush.bf16.msra.mxu0 %v419
      %483 = vmatpush.bf16.msra.mxu0 %v418
      %484 = vmatpush.bf16.msra.mxu0 %v417
      %485 = vmatpush.bf16.msra.mxu0 %v416
      %486 = vmatpush.bf16.msra.mxu0 %v415
      %487 = vmatpush.bf16.msra.mxu0 %v414
      %488 = vmatpush.bf16.msra.mxu0 %v413
      %489 = vmatpush.bf16.msra.mxu0 %v412
      %490 = vmatmul.bf16.gmra.mxu0 %v269
      %v491 = vpop.f32.mrf.mxu0
      %v492 = vadd.f32 %v478, %v491
      %v493 = vpop.f32.mrf.mxu0
      %v494 = vadd.f32 %v480, %v493
      %495 = vdwg.mxu0
      %496 = vmatpush.bf16.msra.mxu0 %v427
      %497 = vmatpush.bf16.msra.mxu0 %v426
      %498 = vmatpush.bf16.msra.mxu0 %v425
      %499 = vmatpush.bf16.msra.mxu0 %v424
      %500 = vmatpush.bf16.msra.mxu0 %v423
      %501 = vmatpush.bf16.msra.mxu0 %v422
      %502 = vmatpush.bf16.msra.mxu0 %v421
      %503 = vmatpush.bf16.msra.mxu0 %v420
      %504 = vmatmul.bf16.gmra.mxu0 %v270
      %v505 = vpop.f32.mrf.mxu0
      %v506 = vadd.f32 %v492, %v505
      %v507 = vpop.f32.mrf.mxu0
      %v508 = vadd.f32 %v494, %v507
      %509 = vdwg.mxu0
      %510 = vmatpush.bf16.msra.mxu0 %v435
      %511 = vmatpush.bf16.msra.mxu0 %v434
      %512 = vmatpush.bf16.msra.mxu0 %v433
      %513 = vmatpush.bf16.msra.mxu0 %v432
      %514 = vmatpush.bf16.msra.mxu0 %v431
      %515 = vmatpush.bf16.msra.mxu0 %v430
      %516 = vmatpush.bf16.msra.mxu0 %v429
      %517 = vmatpush.bf16.msra.mxu0 %v428
      %518 = vmatmul.bf16.gmra.mxu0 %v271
      %v519 = vpop.f32.mrf.mxu0
      %v520 = vadd.f32 %v506, %v519
      %v521 = vpop.f32.mrf.mxu0
      %v522 = vadd.f32 %v508, %v521
      %523 = vdwg.mxu0
      %v524 = vadd.f32 %v520, %v522
      %v525 = vrot.slane %v524, 4
      %v526 = vadd.f32 %v524, %v525
      %v527 = vrot.slane %v526, 2
      %v528 = vadd.f32 %v526, %v527
      %v529 = vrot.slane %v528, 1
      %v530 = vadd.f32 %v528, %v529
      %v531 = vmul.f32 %v520, %v520
      %v532 = vmul.f32 %v522, %v522
      %v533 = vadd.f32 %v531, %v532
      %v534 = vrot.slane %v533, 4
      %v535 = vadd.f32 %v533, %v534
      %v536 = vrot.slane %v535, 2
      %v537 = vadd.f32 %v535, %v536
      %v538 = vrot.slane %v537, 1
      %v539 = vadd.f32 %v537, %v538
      %vm540 = vcmask 1040384
      %v541 = vsel %vm540, %v530, %v539
      %542 = vst [vmem:[%s187] sm:$0x3] %v541
      %v543 = vpack.c.bf16 %v520, %v520
      %v544 = vpack.c.bf16 %v522, %v522
      %545 = vst [vmem:[%s182] sm:$0xf] %v543
      %546 = vst [vmem:[%s182 + $0x4] sm:$0xf] %v544
      %s547 = smul.u32 2, %s15
      %p548 = scmp.lt.s32.totalorder %s547, 3
      %s549 = scalar_select %p548, %s547, 3
      %s550 = smul.addr %s549, 4
      %s551 = scalar_lea.vmem %s2, %s550
      %p552 = scmp.lt.s32.totalorder %s15, 1
      %s553 = scalar_select %p552, %s15, 1
      %s554 = smul.addr %s553, 2
      %s555 = scalar_lea.vmem %s3, %s554
      // Predicated region
      $region29: #{_lambda_.13} parent=27 // pred_check
        %p556 = pneg %p80
      $region30: #{_lambda_.13} parent=27 // pred_check_branch
        %558 = sbr.rel (%p556) target = $region32
      $region31: #{_lambda_.13} parent=27 // pred_region
        %s559 = smul.u32 2, %s15
      $region32: #{_lambda_.13} parent=27 // pred_fallthru
        _
      // Predicated region
      $region33: #{_lambda_.13} parent=27 // pred_check
        %p560 = pneg %p106
      $region34: #{_lambda_.13} parent=27 // pred_check_branch
        %562 = sbr.rel (%p560) target = $region36
      $region35: #{_lambda_.13} parent=27 // pred_region
        _
      $region36: #{_lambda_.13} parent=27 // pred_fallthru
        _
    $region28: #{_lambda_.13} parent=5 // pred_fallthru
      _
    %p563 = scmp.le.s32.totalorder 2, %s10
    // Predicated region
    $region37: #{_lambda_.13} parent=5 // pred_check
      %p564 = pneg %p563
    $region38: #{_lambda_.13} parent=5 // pred_check_branch
      %566 = sbr.rel (%p564) target = $region40
    $region39: #{_lambda_.13} parent=5 // pred_region
      %s567 = ssub.s32 %s10, 2
      // Predicated region
      $region41: #{_lambda_.13} parent=39 // pred_check
        %p568 = pneg %p86
      $region42: #{_lambda_.13} parent=39 // pred_check_branch
        %570 = sbr.rel (%p568) target = $region44
      $region43: #{_lambda_.13} parent=39 // pred_region
        %s571 = smul.u32 2, %s16
        %p572 = scmp.lt.s32.totalorder %s571, 3
        %s573 = scalar_select %p572, %s571, 3
        %s574 = smul.addr %s573, 4
        %s575 = scalar_lea.vmem %s2, %s574
      $region44: #{_lambda_.13} parent=39 // pred_fallthru
        _
      // Predicated region
      $region45: #{_lambda_.13} parent=39 // pred_check
        %p576 = pneg %p112
      $region46: #{_lambda_.13} parent=39 // pred_check_branch
        %578 = sbr.rel (%p576) target = $region48
      $region47: #{_lambda_.13} parent=39 // pred_region
        %p579 = scmp.lt.s32.totalorder %s16, 1
        %s580 = scalar_select %p579, %s16, 1
        %s581 = smul.addr %s580, 2
        %s582 = scalar_lea.vmem %s3, %s581
      $region48: #{_lambda_.13} parent=39 // pred_fallthru
        _
    $region40: #{_lambda_.13} parent=5 // pred_fallthru
      _
  $region6: #{_lambda_.13} parent=0 // loop_footer
    %s14 = sadd.s32 1, %s10
  $region7: #{_lambda_.13} parent=0 // loop_footer_branch
    %9 = sbr.rel target = $region3
  $region8: #{_lambda_.13} parent=0 // loop_exit
    _

// kernel: _lambda_.15
$region0: #{_lambda_.15}
  #allocation0 [shape = 'u32[]', space=smem, size = 0x4, offset = 0x4, fixed_abs, tag = 'smem constant byte address 0x4 - core index']
  #allocation1 [shape = 'u32[72,128]{1,0:T(1,128)}', space=vmem, size = 0x9000, scoped, tag = 'internal scratch']
  %s0 = inlined_call_operand.vmem [shape: bf16[16,1024], index: 0, kind: input, shape index: {}]
  %s1 = inlined_call_operand.vmem [shape: bf16[1024,128], index: 1, kind: input, shape index: {}]
  %s2 = inlined_call_operand.vmem [shape: f32[1,128], index: 2, kind: input, shape index: {}]
  %s3 = inlined_call_operand.vmem [shape: f32[16,128], index: 3, kind: output, shape index: {}]
  %s4 = sld [smem:[#allocation0]]
  $region22: #{_lambda_.15} parent=0
    _
  %s6 = ssub.s32 1, %s4
  %s7 = scalar_select 0, %s6, %s4
  // Predicated region
  $region2: #{_lambda_.15} parent=0 // pred_check
    _
  $region3: #{_lambda_.15} parent=0 // pred_check_branch
    %9 = sbr.rel (0) target = $region5
  $region4: #{_lambda_.15} parent=0 // pred_region
    _
  $region5: #{_lambda_.15} parent=0 // pred_fallthru
    _
  // Predicated region
  $region6: #{_lambda_.15} parent=0 // pred_check
    _
  $region7: #{_lambda_.15} parent=0 // pred_check_branch
    %11 = sbr.rel (0) target = $region9
  $region8: #{_lambda_.15} parent=0 // pred_region
    _
  $region9: #{_lambda_.15} parent=0 // pred_fallthru
    _
  // Predicated region
  $region10: #{_lambda_.15} parent=0 // pred_check
    _
  $region11: #{_lambda_.15} parent=0 // pred_check_branch
    %13 = sbr.rel (0) target = $region13
  $region12: #{_lambda_.15} parent=0 // pred_region
    _
  $region13: #{_lambda_.15} parent=0 // pred_fallthru
    _
  %v14 = vld [vmem:[%s0] sm:$0xff]
  %v15 = vld [vmem:[%s0 + $0x8] sm:$0xff]
  %v16 = vld [vmem:[%s0 + $0x10] sm:$0xff]
  %v17 = vld [vmem:[%s0 + $0x18] sm:$0xff]
  %v18 = vld [vmem:[%s0 + $0x20] sm:$0xff]
  %v19 = vld [vmem:[%s0 + $0x28] sm:$0xff]
  %v20 = vld [vmem:[%s0 + $0x30] sm:$0xff]
  %v21 = vld [vmem:[%s0 + $0x38] sm:$0xff]
  %v22 = vld [vmem:[%s1] sm:$0xf]
  %v23 = vld [vmem:[%s1 + $0x4] sm:$0xf]
  %v24 = vld [vmem:[%s1 + $0x8] sm:$0xf]
  %v25 = vld [vmem:[%s1 + $0xc] sm:$0xf]
  %v26 = vld [vmem:[%s1 + $0x10] sm:$0xf]
  %v27 = vld [vmem:[%s1 + $0x14] sm:$0xf]
  %v28 = vld [vmem:[%s1 + $0x18] sm:$0xf]
  %v29 = vld [vmem:[%s1 + $0x1c] sm:$0xf]
  %v30 = vld [vmem:[%s1 + $0x20] sm:$0xf]
  %v31 = vld [vmem:[%s1 + $0x24] sm:$0xf]
  %v32 = vld [vmem:[%s1 + $0x28] sm:$0xf]
  %v33 = vld [vmem:[%s1 + $0x2c] sm:$0xf]
  %v34 = vld [vmem:[%s1 + $0x30] sm:$0xf]
  %v35 = vld [vmem:[%s1 + $0x34] sm:$0xf]
  %v36 = vld [vmem:[%s1 + $0x38] sm:$0xf]
  %v37 = vld [vmem:[%s1 + $0x3c] sm:$0xf]
  %v38 = vld [vmem:[%s1 + $0x40] sm:$0xf]
  %v39 = vld [vmem:[%s1 + $0x44] sm:$0xf]
  %v40 = vld [vmem:[%s1 + $0x48] sm:$0xf]
  %v41 = vld [vmem:[%s1 + $0x4c] sm:$0xf]
  %v42 = vld [vmem:[%s1 + $0x50] sm:$0xf]
  %v43 = vld [vmem:[%s1 + $0x54] sm:$0xf]
  %v44 = vld [vmem:[%s1 + $0x58] sm:$0xf]
  %v45 = vld [vmem:[%s1 + $0x5c] sm:$0xf]
  %v46 = vld [vmem:[%s1 + $0x60] sm:$0xf]
  %v47 = vld [vmem:[%s1 + $0x64] sm:$0xf]
  %v48 = vld [vmem:[%s1 + $0x68] sm:$0xf]
  %v49 = vld [vmem:[%s1 + $0x6c] sm:$0xf]
  %v50 = vld [vmem:[%s1 + $0x70] sm:$0xf]
  %v51 = vld [vmem:[%s1 + $0x74] sm:$0xf]
  %v52 = vld [vmem:[%s1 + $0x78] sm:$0xf]
  %v53 = vld [vmem:[%s1 + $0x7c] sm:$0xf]
  %v54 = vld [vmem:[%s1 + $0x80] sm:$0xf]
  %v55 = vld [vmem:[%s1 + $0x84] sm:$0xf]
  %v56 = vld [vmem:[%s1 + $0x88] sm:$0xf]
  %v57 = vld [vmem:[%s1 + $0x8c] sm:$0xf]
  %v58 = vld [vmem:[%s1 + $0x90] sm:$0xf]
  %v59 = vld [vmem:[%s1 + $0x94] sm:$0xf]
  %v60 = vld [vmem:[%s1 + $0x98] sm:$0xf]
  %v61 = vld [vmem:[%s1 + $0x9c] sm:$0xf]
  %v62 = vld [vmem:[%s1 + $0xa0] sm:$0xf]
  %v63 = vld [vmem:[%s1 + $0xa4] sm:$0xf]
  %v64 = vld [vmem:[%s1 + $0xa8] sm:$0xf]
  %v65 = vld [vmem:[%s1 + $0xac] sm:$0xf]
  %v66 = vld [vmem:[%s1 + $0xb0] sm:$0xf]
  %v67 = vld [vmem:[%s1 + $0xb4] sm:$0xf]
  %v68 = vld [vmem:[%s1 + $0xb8] sm:$0xf]
  %v69 = vld [vmem:[%s1 + $0xbc] sm:$0xf]
  %v70 = vld [vmem:[%s1 + $0xc0] sm:$0xf]
  %v71 = vld [vmem:[%s1 + $0xc4] sm:$0xf]
  %v72 = vld [vmem:[%s1 + $0xc8] sm:$0xf]
  %v73 = vld [vmem:[%s1 + $0xcc] sm:$0xf]
  %v74 = vld [vmem:[%s1 + $0xd0] sm:$0xf]
  %v75 = vld [vmem:[%s1 + $0xd4] sm:$0xf]
  %v76 = vld [vmem:[%s1 + $0xd8] sm:$0xf]
  %v77 = vld [vmem:[%s1 + $0xdc] sm:$0xf]
  %v78 = vld [vmem:[%s1 + $0xe0] sm:$0xf]
  %v79 = vld [vmem:[%s1 + $0xe4] sm:$0xf]
  %v80 = vld [vmem:[%s1 + $0xe8] sm:$0xf]
  %v81 = vld [vmem:[%s1 + $0xec] sm:$0xf]
  %v82 = vld [vmem:[%s1 + $0xf0] sm:$0xf]
  %v83 = vld [vmem:[%s1 + $0xf4] sm:$0xf]
  %v84 = vld [vmem:[%s1 + $0xf8] sm:$0xf]
  %v85 = vld [vmem:[%s1 + $0xfc] sm:$0xf]
  %v86 = vld [vmem:[%s1 + $0x100] sm:$0xf]
  %v87 = vld [vmem:[%s1 + $0x104] sm:$0xf]
  %v88 = vld [vmem:[%s1 + $0x108] sm:$0xf]
  %v89 = vld [vmem:[%s1 + $0x10c] sm:$0xf]
  %v90 = vld [vmem:[%s1 + $0x110] sm:$0xf]
  %v91 = vld [vmem:[%s1 + $0x114] sm:$0xf]
  %v92 = vld [vmem:[%s1 + $0x118] sm:$0xf]
  %v93 = vld [vmem:[%s1 + $0x11c] sm:$0xf]
  %v94 = vld [vmem:[%s1 + $0x120] sm:$0xf]
  %v95 = vld [vmem:[%s1 + $0x124] sm:$0xf]
  %v96 = vld [vmem:[%s1 + $0x128] sm:$0xf]
  %v97 = vld [vmem:[%s1 + $0x12c] sm:$0xf]
  %v98 = vld [vmem:[%s1 + $0x130] sm:$0xf]
  %v99 = vld [vmem:[%s1 + $0x134] sm:$0xf]
  %v100 = vld [vmem:[%s1 + $0x138] sm:$0xf]
  %v101 = vld [vmem:[%s1 + $0x13c] sm:$0xf]
  %v102 = vld [vmem:[%s1 + $0x140] sm:$0xf]
  %v103 = vld [vmem:[%s1 + $0x144] sm:$0xf]
  %v104 = vld [vmem:[%s1 + $0x148] sm:$0xf]
  %v105 = vld [vmem:[%s1 + $0x14c] sm:$0xf]
  %v106 = vld [vmem:[%s1 + $0x150] sm:$0xf]
  %v107 = vld [vmem:[%s1 + $0x154] sm:$0xf]
  %v108 = vld [vmem:[%s1 + $0x158] sm:$0xf]
  %v109 = vld [vmem:[%s1 + $0x15c] sm:$0xf]
  %v110 = vld [vmem:[%s1 + $0x160] sm:$0xf]
  %v111 = vld [vmem:[%s1 + $0x164] sm:$0xf]
  %v112 = vld [vmem:[%s1 + $0x168] sm:$0xf]
  %v113 = vld [vmem:[%s1 + $0x16c] sm:$0xf]
  %v114 = vld [vmem:[%s1 + $0x170] sm:$0xf]
  %v115 = vld [vmem:[%s1 + $0x174] sm:$0xf]
  %v116 = vld [vmem:[%s1 + $0x178] sm:$0xf]
  %v117 = vld [vmem:[%s1 + $0x17c] sm:$0xf]
  %v118 = vld [vmem:[%s1 + $0x180] sm:$0xf]
  %v119 = vld [vmem:[%s1 + $0x184] sm:$0xf]
  %v120 = vld [vmem:[%s1 + $0x188] sm:$0xf]
  %v121 = vld [vmem:[%s1 + $0x18c] sm:$0xf]
  %v122 = vld [vmem:[%s1 + $0x190] sm:$0xf]
  %v123 = vld [vmem:[%s1 + $0x194] sm:$0xf]
  %v124 = vld [vmem:[%s1 + $0x198] sm:$0xf]
  %v125 = vld [vmem:[%s1 + $0x19c] sm:$0xf]
  %v126 = vld [vmem:[%s1 + $0x1a0] sm:$0xf]
  %v127 = vld [vmem:[%s1 + $0x1a4] sm:$0xf]
  %v128 = vld [vmem:[%s1 + $0x1a8] sm:$0xf]
  %v129 = vld [vmem:[%s1 + $0x1ac] sm:$0xf]
  %v130 = vld [vmem:[%s1 + $0x1b0] sm:$0xf]
  %v131 = vld [vmem:[%s1 + $0x1b4] sm:$0xf]
  %v132 = vld [vmem:[%s1 + $0x1b8] sm:$0xf]
  %v133 = vld [vmem:[%s1 + $0x1bc] sm:$0xf]
  %v134 = vld [vmem:[%s1 + $0x1c0] sm:$0xf]
  %v135 = vld [vmem:[%s1 + $0x1c4] sm:$0xf]
  %v136 = vld [vmem:[%s1 + $0x1c8] sm:$0xf]
  %v137 = vld [vmem:[%s1 + $0x1cc] sm:$0xf]
  %v138 = vld [vmem:[%s1 + $0x1d0] sm:$0xf]
  %v139 = vld [vmem:[%s1 + $0x1d4] sm:$0xf]
  %v140 = vld [vmem:[%s1 + $0x1d8] sm:$0xf]
  %v141 = vld [vmem:[%s1 + $0x1dc] sm:$0xf]
  %v142 = vld [vmem:[%s1 + $0x1e0] sm:$0xf]
  %v143 = vld [vmem:[%s1 + $0x1e4] sm:$0xf]
  %v144 = vld [vmem:[%s1 + $0x1e8] sm:$0xf]
  %v145 = vld [vmem:[%s1 + $0x1ec] sm:$0xf]
  %v146 = vld [vmem:[%s1 + $0x1f0] sm:$0xf]
  %v147 = vld [vmem:[%s1 + $0x1f4] sm:$0xf]
  %v148 = vld [vmem:[%s1 + $0x1f8] sm:$0xf]
  %v149 = vld [vmem:[%s1 + $0x1fc] sm:$0xf]
  %v150 = vld [vmem:[%s2] sm:$0x1]
  %v152 = vperm.slane %v150, 0
  %v162 = vunpack.c.l.b16 %v14
  %v163 = vunpack.c.h.b16 %v14
  %v164 = vunpack.c.l.b16 %v15
  %v165 = vunpack.c.h.b16 %v15
  %v166 = vunpack.c.l.b16 %v16
  %v167 = vunpack.c.h.b16 %v16
  %v168 = vunpack.c.l.b16 %v17
  %v169 = vunpack.c.h.b16 %v17
  %v170 = vunpack.c.l.b16 %v18
  %v171 = vunpack.c.h.b16 %v18
  %v172 = vunpack.c.l.b16 %v19
  %v173 = vunpack.c.h.b16 %v19
  %v174 = vunpack.c.l.b16 %v20
  %v175 = vunpack.c.h.b16 %v20
  %v176 = vunpack.c.l.b16 %v21
  %v177 = vunpack.c.h.b16 %v21
  %v178 = vpack.c.b16 %v170, %v162
  %v179 = vpack.c.b16 %v171, %v163
  %v180 = vpack.c.b16 %v172, %v164
  %v181 = vpack.c.b16 %v173, %v165
  %v182 = vpack.c.b16 %v174, %v166
  %v183 = vpack.c.b16 %v175, %v167
  %v184 = vpack.c.b16 %v176, %v168
  %v185 = vpack.c.b16 %v177, %v169
  %v322 = vunpack.c.l.b16 %v22
  %v323 = vunpack.c.l.b16 %v23
  %v324 = vunpack.c.l.b16 %v24
  %v325 = vunpack.c.l.b16 %v25
  %v326 = vunpack.c.l.b16 %v26
  %v327 = vunpack.c.l.b16 %v27
  %v328 = vunpack.c.l.b16 %v28
  %v329 = vunpack.c.l.b16 %v29
  %v330 = vunpack.c.l.b16 %v30
  %v331 = vunpack.c.l.b16 %v31
  %v332 = vunpack.c.l.b16 %v32
  %v333 = vunpack.c.l.b16 %v33
  %v334 = vunpack.c.l.b16 %v34
  %v335 = vunpack.c.l.b16 %v35
  %v336 = vunpack.c.l.b16 %v36
  %v337 = vunpack.c.l.b16 %v37
  %v338 = vunpack.c.l.b16 %v38
  %v339 = vunpack.c.l.b16 %v39
  %v340 = vunpack.c.l.b16 %v40
  %v341 = vunpack.c.l.b16 %v41
  %v342 = vunpack.c.l.b16 %v42
  %v343 = vunpack.c.l.b16 %v43
  %v344 = vunpack.c.l.b16 %v44
  %v345 = vunpack.c.l.b16 %v45
  %v346 = vunpack.c.l.b16 %v46
  %v347 = vunpack.c.l.b16 %v47
  %v348 = vunpack.c.l.b16 %v48
  %v349 = vunpack.c.l.b16 %v49
  %v350 = vunpack.c.l.b16 %v50
  %v351 = vunpack.c.l.b16 %v51
  %v352 = vunpack.c.l.b16 %v52
  %v353 = vunpack.c.l.b16 %v53
  %v354 = vunpack.c.l.b16 %v54
  %v355 = vunpack.c.l.b16 %v55
  %v356 = vunpack.c.l.b16 %v56
  %v357 = vunpack.c.l.b16 %v57
  %v358 = vunpack.c.l.b16 %v58
  %v359 = vunpack.c.l.b16 %v59
  %v360 = vunpack.c.l.b16 %v60
  %v361 = vunpack.c.l.b16 %v61
  %v362 = vunpack.c.l.b16 %v62
  %v363 = vunpack.c.l.b16 %v63
  %v364 = vunpack.c.l.b16 %v64
  %v365 = vunpack.c.l.b16 %v65
  %v366 = vunpack.c.l.b16 %v66
  %v367 = vunpack.c.l.b16 %v67
  %v368 = vunpack.c.l.b16 %v68
  %v369 = vunpack.c.l.b16 %v69
  %v370 = vunpack.c.l.b16 %v70
  %v371 = vunpack.c.l.b16 %v71
  %v372 = vunpack.c.l.b16 %v72
  %v373 = vunpack.c.l.b16 %v73
  %v374 = vunpack.c.l.b16 %v74
  %v375 = vunpack.c.l.b16 %v75
  %v376 = vunpack.c.l.b16 %v76
  %v377 = vunpack.c.l.b16 %v77
  %v378 = vunpack.c.l.b16 %v78
  %v379 = vunpack.c.l.b16 %v79
  %v380 = vunpack.c.l.b16 %v80
  %v381 = vunpack.c.l.b16 %v81
  %v382 = vunpack.c.l.b16 %v82
  %v383 = vunpack.c.l.b16 %v83
  %v384 = vunpack.c.l.b16 %v84
  %v385 = vunpack.c.l.b16 %v85
  %v386 = vunpack.c.l.b16 %v86
  %v387 = vunpack.c.l.b16 %v87
  %v388 = vunpack.c.l.b16 %v88
  %v389 = vunpack.c.l.b16 %v89
  %v390 = vunpack.c.l.b16 %v90
  %v391 = vunpack.c.l.b16 %v91
  %v392 = vunpack.c.l.b16 %v92
  %v393 = vunpack.c.l.b16 %v93
  %v394 = vunpack.c.l.b16 %v94
  %v395 = vunpack.c.l.b16 %v95
  %v396 = vunpack.c.l.b16 %v96
  %v397 = vunpack.c.l.b16 %v97
  %v398 = vunpack.c.l.b16 %v98
  %v399 = vunpack.c.l.b16 %v99
  %v400 = vunpack.c.l.b16 %v100
  %v401 = vunpack.c.l.b16 %v101
  %v402 = vunpack.c.l.b16 %v102
  %v403 = vunpack.c.l.b16 %v103
  %v404 = vunpack.c.l.b16 %v104
  %v405 = vunpack.c.l.b16 %v105
  %v406 = vunpack.c.l.b16 %v106
  %v407 = vunpack.c.l.b16 %v107
  %v408 = vunpack.c.l.b16 %v108
  %v409 = vunpack.c.l.b16 %v109
  %v410 = vunpack.c.l.b16 %v110
  %v411 = vunpack.c.l.b16 %v111
  %v412 = vunpack.c.l.b16 %v112
  %v413 = vunpack.c.l.b16 %v113
  %v414 = vunpack.c.l.b16 %v114
  %v415 = vunpack.c.l.b16 %v115
  %v416 = vunpack.c.l.b16 %v116
  %v417 = vunpack.c.l.b16 %v117
  %v418 = vunpack.c.l.b16 %v118
  %v419 = vunpack.c.l.b16 %v119
  %v420 = vunpack.c.l.b16 %v120
  %v421 = vunpack.c.l.b16 %v121
  %v422 = vunpack.c.l.b16 %v122
  %v423 = vunpack.c.l.b16 %v123
  %v424 = vunpack.c.l.b16 %v124
  %v425 = vunpack.c.l.b16 %v125
  %v426 = vunpack.c.l.b16 %v126
  %v427 = vunpack.c.l.b16 %v127
  %v428 = vunpack.c.l.b16 %v128
  %v429 = vunpack.c.l.b16 %v129
  %v430 = vunpack.c.l.b16 %v130
  %v431 = vunpack.c.l.b16 %v131
  %v432 = vunpack.c.l.b16 %v132
  %v433 = vunpack.c.l.b16 %v133
  %v434 = vunpack.c.l.b16 %v134
  %v435 = vunpack.c.l.b16 %v135
  %v436 = vunpack.c.l.b16 %v136
  %v437 = vunpack.c.l.b16 %v137
  %v438 = vunpack.c.l.b16 %v138
  %v439 = vunpack.c.l.b16 %v139
  %v440 = vunpack.c.l.b16 %v140
  %v441 = vunpack.c.l.b16 %v141
  %v442 = vunpack.c.l.b16 %v142
  %v443 = vunpack.c.l.b16 %v143
  %v444 = vunpack.c.l.b16 %v144
  %v445 = vunpack.c.l.b16 %v145
  %v446 = vunpack.c.l.b16 %v146
  %v447 = vunpack.c.l.b16 %v147
  %v448 = vunpack.c.l.b16 %v148
  %v449 = vunpack.c.l.b16 %v149
  %v450 = vpack.c.b16 %v323, %v322
  %v451 = vpack.c.b16 %v325, %v324
  %v452 = vpack.c.b16 %v327, %v326
  %v453 = vpack.c.b16 %v329, %v328
  %v454 = vpack.c.b16 %v331, %v330
  %v455 = vpack.c.b16 %v333, %v332
  %v456 = vpack.c.b16 %v335, %v334
  %v457 = vpack.c.b16 %v337, %v336
  %v458 = vpack.c.b16 %v339, %v338
  %v459 = vpack.c.b16 %v341, %v340
  %v460 = vpack.c.b16 %v343, %v342
  %v461 = vpack.c.b16 %v345, %v344
  %v462 = vpack.c.b16 %v347, %v346
  %v463 = vpack.c.b16 %v349, %v348
  %v464 = vpack.c.b16 %v351, %v350
  %v465 = vpack.c.b16 %v353, %v352
  %v466 = vpack.c.b16 %v355, %v354
  %v467 = vpack.c.b16 %v357, %v356
  %v468 = vpack.c.b16 %v359, %v358
  %v469 = vpack.c.b16 %v361, %v360
  %v470 = vpack.c.b16 %v363, %v362
  %v471 = vpack.c.b16 %v365, %v364
  %v472 = vpack.c.b16 %v367, %v366
  %v473 = vpack.c.b16 %v369, %v368
  %v474 = vpack.c.b16 %v371, %v370
  %v475 = vpack.c.b16 %v373, %v372
  %v476 = vpack.c.b16 %v375, %v374
  %v477 = vpack.c.b16 %v377, %v376
  %v478 = vpack.c.b16 %v379, %v378
  %v479 = vpack.c.b16 %v381, %v380
  %v480 = vpack.c.b16 %v383, %v382
  %v481 = vpack.c.b16 %v385, %v384
  %v482 = vpack.c.b16 %v387, %v386
  %v483 = vpack.c.b16 %v389, %v388
  %v484 = vpack.c.b16 %v391, %v390
  %v485 = vpack.c.b16 %v393, %v392
  %v486 = vpack.c.b16 %v395, %v394
  %v487 = vpack.c.b16 %v397, %v396
  %v488 = vpack.c.b16 %v399, %v398
  %v489 = vpack.c.b16 %v401, %v400
  %v490 = vpack.c.b16 %v403, %v402
  %v491 = vpack.c.b16 %v405, %v404
  %v492 = vpack.c.b16 %v407, %v406
  %v493 = vpack.c.b16 %v409, %v408
  %v494 = vpack.c.b16 %v411, %v410
  %v495 = vpack.c.b16 %v413, %v412
  %v496 = vpack.c.b16 %v415, %v414
  %v497 = vpack.c.b16 %v417, %v416
  %v498 = vpack.c.b16 %v419, %v418
  %v499 = vpack.c.b16 %v421, %v420
  %v500 = vpack.c.b16 %v423, %v422
  %v501 = vpack.c.b16 %v425, %v424
  %v502 = vpack.c.b16 %v427, %v426
  %v503 = vpack.c.b16 %v429, %v428
  %v504 = vpack.c.b16 %v431, %v430
  %v505 = vpack.c.b16 %v433, %v432
  %v506 = vpack.c.b16 %v435, %v434
  %v507 = vpack.c.b16 %v437, %v436
  %v508 = vpack.c.b16 %v439, %v438
  %v509 = vpack.c.b16 %v441, %v440
  %v510 = vpack.c.b16 %v443, %v442
  %v511 = vpack.c.b16 %v445, %v444
  %v512 = vpack.c.b16 %v447, %v446
  %v513 = vpack.c.b16 %v449, %v448
  %578 = vmatpush.bf16.msra.mxu0 %v457
  %579 = vmatpush.bf16.msra.mxu0 %v456
  %580 = vmatpush.bf16.msra.mxu0 %v455
  %581 = vmatpush.bf16.msra.mxu0 %v454
  %582 = vmatpush.bf16.msra.mxu0 %v453
  %583 = vmatpush.bf16.msra.mxu0 %v452
  %584 = vmatpush.bf16.msra.mxu0 %v451
  %585 = vmatpush.bf16.msra.mxu0 %v450
  %586 = vmatmul.bf16.gmra.mxu0 %v178
  %v587 = vpop.f32.mrf.mxu0
  %v588 = vadd.f32 %v152, %v587
  %v589 = vpop.f32.mrf.mxu0
  %v590 = vadd.f32 %v152, %v589
  %591 = vdwg.mxu0
  %592 = vmatpush.bf16.msra.mxu0 %v465
  %593 = vmatpush.bf16.msra.mxu0 %v464
  %594 = vmatpush.bf16.msra.mxu0 %v463
  %595 = vmatpush.bf16.msra.mxu0 %v462
  %596 = vmatpush.bf16.msra.mxu0 %v461
  %597 = vmatpush.bf16.msra.mxu0 %v460
  %598 = vmatpush.bf16.msra.mxu0 %v459
  %599 = vmatpush.bf16.msra.mxu0 %v458
  %600 = vmatmul.bf16.gmra.mxu0 %v179
  %v601 = vpop.f32.mrf.mxu0
  %v602 = vadd.f32 %v588, %v601
  %v603 = vpop.f32.mrf.mxu0
  %v604 = vadd.f32 %v590, %v603
  %605 = vdwg.mxu0
  %606 = vmatpush.bf16.msra.mxu0 %v473
  %607 = vmatpush.bf16.msra.mxu0 %v472
  %608 = vmatpush.bf16.msra.mxu0 %v471
  %609 = vmatpush.bf16.msra.mxu0 %v470
  %610 = vmatpush.bf16.msra.mxu0 %v469
  %611 = vmatpush.bf16.msra.mxu0 %v468
  %612 = vmatpush.bf16.msra.mxu0 %v467
  %613 = vmatpush.bf16.msra.mxu0 %v466
  %614 = vmatmul.bf16.gmra.mxu0 %v180
  %v615 = vpop.f32.mrf.mxu0
  %v616 = vadd.f32 %v602, %v615
  %v617 = vpop.f32.mrf.mxu0
  %v618 = vadd.f32 %v604, %v617
  %619 = vdwg.mxu0
  %620 = vmatpush.bf16.msra.mxu0 %v481
  %621 = vmatpush.bf16.msra.mxu0 %v480
  %622 = vmatpush.bf16.msra.mxu0 %v479
  %623 = vmatpush.bf16.msra.mxu0 %v478
  %624 = vmatpush.bf16.msra.mxu0 %v477
  %625 = vmatpush.bf16.msra.mxu0 %v476
  %626 = vmatpush.bf16.msra.mxu0 %v475
  %627 = vmatpush.bf16.msra.mxu0 %v474
  %628 = vmatmul.bf16.gmra.mxu0 %v181
  %v629 = vpop.f32.mrf.mxu0
  %v630 = vadd.f32 %v616, %v629
  %v631 = vpop.f32.mrf.mxu0
  %v632 = vadd.f32 %v618, %v631
  %633 = vdwg.mxu0
  %634 = vmatpush.bf16.msra.mxu0 %v489
  %635 = vmatpush.bf16.msra.mxu0 %v488
  %636 = vmatpush.bf16.msra.mxu0 %v487
  %637 = vmatpush.bf16.msra.mxu0 %v486
  %638 = vmatpush.bf16.msra.mxu0 %v485
  %639 = vmatpush.bf16.msra.mxu0 %v484
  %640 = vmatpush.bf16.msra.mxu0 %v483
  %641 = vmatpush.bf16.msra.mxu0 %v482
  %642 = vmatmul.bf16.gmra.mxu0 %v182
  %v643 = vpop.f32.mrf.mxu0
  %v644 = vadd.f32 %v630, %v643
  %v645 = vpop.f32.mrf.mxu0
  %v646 = vadd.f32 %v632, %v645
  %647 = vdwg.mxu0
  %648 = vmatpush.bf16.msra.mxu0 %v497
  %649 = vmatpush.bf16.msra.mxu0 %v496
  %650 = vmatpush.bf16.msra.mxu0 %v495
  %651 = vmatpush.bf16.msra.mxu0 %v494
  %652 = vmatpush.bf16.msra.mxu0 %v493
  %653 = vmatpush.bf16.msra.mxu0 %v492
  %654 = vmatpush.bf16.msra.mxu0 %v491
  %655 = vmatpush.bf16.msra.mxu0 %v490
  %656 = vmatmul.bf16.gmra.mxu0 %v183
  %v657 = vpop.f32.mrf.mxu0
  %v658 = vadd.f32 %v644, %v657
  %v659 = vpop.f32.mrf.mxu0
  %v660 = vadd.f32 %v646, %v659
  %661 = vdwg.mxu0
  %662 = vmatpush.bf16.msra.mxu0 %v505
  %663 = vmatpush.bf16.msra.mxu0 %v504
  %664 = vmatpush.bf16.msra.mxu0 %v503
  %665 = vmatpush.bf16.msra.mxu0 %v502
  %666 = vmatpush.bf16.msra.mxu0 %v501
  %667 = vmatpush.bf16.msra.mxu0 %v500
  %668 = vmatpush.bf16.msra.mxu0 %v499
  %669 = vmatpush.bf16.msra.mxu0 %v498
  %670 = vmatmul.bf16.gmra.mxu0 %v184
  %v671 = vpop.f32.mrf.mxu0
  %v672 = vadd.f32 %v658, %v671
  %v673 = vpop.f32.mrf.mxu0
  %v674 = vadd.f32 %v660, %v673
  %675 = vdwg.mxu0
  %676 = vmatpush.bf16.msra.mxu0 %v513
  %677 = vmatpush.bf16.msra.mxu0 %v512
  %678 = vmatpush.bf16.msra.mxu0 %v511
  %679 = vmatpush.bf16.msra.mxu0 %v510
  %680 = vmatpush.bf16.msra.mxu0 %v509
  %681 = vmatpush.bf16.msra.mxu0 %v508
  %682 = vmatpush.bf16.msra.mxu0 %v507
  %683 = vmatpush.bf16.msra.mxu0 %v506
  %684 = vmatmul.bf16.gmra.mxu0 %v185
  %v685 = vpop.f32.mrf.mxu0
  %v686 = vadd.f32 %v672, %v685
  %v687 = vpop.f32.mrf.mxu0
  %v688 = vadd.f32 %v674, %v687
  %689 = vdwg.mxu0
  %690 = vst [vmem:[%s3] sm:$0xff] %v686
  %691 = vst [vmem:[%s3 + $0x8] sm:$0xff] %v688
  // Predicated region
  $region14: #{_lambda_.15} parent=0 // pred_check
    _
  $region15: #{_lambda_.15} parent=0 // pred_check_branch
    %693 = sbr.rel (0) target = $region17
  $region16: #{_lambda_.15} parent=0 // pred_region
    _
  $region17: #{_lambda_.15} parent=0 // pred_fallthru
    _
  // Predicated region
  $region18: #{_lambda_.15} parent=0 // pred_check
    _
  $region19: #{_lambda_.15} parent=0 // pred_check_branch
    %695 = sbr.rel (0) target = $region21
  $region20: #{_lambda_.15} parent=0 // pred_region
    _
  $region21: #{_lambda_.15} parent=0 // pred_fallthru
    _

</llo_original>
